<compile_context>
chip_gen: v7x
topology: tpu7x:2x2x1
jax: 0.10.0
libtpu: 0.0.40
codegen_flags: <defaults>
</compile_context>

<pallas_src>
import functools

import jax
import jax.numpy as jnp
from jax.experimental import pallas as pl
from jax.experimental.pallas import tpu as pltpu

LRELU_SLOPE = 0.2
BN_EPS = 1e-5
LANE = 128
SUBLANE = 8
MAX_TILE_M = 1024
VMEM_LIMIT = 16 * 1024 * 1024  # ~8x the largest double-buffered block footprint


def _round_up(x, m):
    return (x + m - 1) // m * m


# ----------------------------------------------------------------------------
# Pallas kernels
# ----------------------------------------------------------------------------
def _conv_bias_lrelu_kernel(p_ref, w_ref, b_ref, o_ref):
    """Layer 1: (tile_m, Kp) @ (Kp, Cout) + bias + LeakyReLU, bf16 store."""
    x = jnp.dot(p_ref[...], w_ref[...], preferred_element_type=jnp.float32)
    x = x + b_ref[...]                                   # (1, Cout) broadcast
    o_ref[...] = jnp.where(x > 0, x, LRELU_SLOPE * x).astype(o_ref.dtype)


def _fused_conv_bn_lrelu_kernel(p_ref, w_ref, g_ref, b_ref, o_ref,
                                sum_sc, sumsq_sc, *, inv_m):
    """Conv(no bias) + BatchNorm(batch stats) + LeakyReLU in one call.

    grid = (2, grid_m): phase 0 accumulates per-channel sum / sum-of-squares
    (padded zero rows contribute nothing; inv_m uses the true row count),
    phase 1 recomputes the matmul and normalizes.  Variance is E[y^2]-E[y]^2
    clamped at 0 (f32 accumulation; acceptable for post-conv activations).
    """
    phase = pl.program_id(0)
    i = pl.program_id(1)

    y = jnp.dot(p_ref[...], w_ref[...], preferred_element_type=jnp.float32)

    @pl.when(jnp.logical_and(phase == 0, i == 0))
    def _():
        sum_sc[...] = jnp.zeros_like(sum_sc)
        sumsq_sc[...] = jnp.zeros_like(sumsq_sc)

    @pl.when(phase == 0)
    def _():
        sum_sc[...] += jnp.sum(y, axis=0, keepdims=True)
        sumsq_sc[...] += jnp.sum(y * y, axis=0, keepdims=True)

    @pl.when(phase == 1)
    def _():
        mean = sum_sc[...] * inv_m
        var = jnp.maximum(sumsq_sc[...] * inv_m - mean * mean, 0.0)
        scale = g_ref[...] * jax.lax.rsqrt(var + BN_EPS)
        shift = b_ref[...] - mean * scale
        a = y * scale + shift
        o_ref[...] = jnp.where(a > 0, a, LRELU_SLOPE * a).astype(o_ref.dtype)


def _fused_conv_bn_lrelu_final_kernel(p_ref, w_ref, g_ref, b_ref,
                                      w5_ref, sel_ref, b5_ref, o_ref,
                                      sum_sc, sumsq_sc, *, inv_m):
    """Layer 4 (conv + BN + LeakyReLU) fused with the final Conv(8f->1)+Sigmoid.

    The layer-4 output map is 4x4, so the final valid conv is a full-map dot:
    out[b] = sigmoid(b5 + sum_rows(sel[b, :] * sum_c(act * w5_rows))).
    w5_ref holds the final weights replicated per output row (zeros on padded
    rows) and sel_ref selects/aggregates each batch element's rows, so no
    in-kernel reshape is needed and the layer-4 activation never hits HBM.
    """
    phase = pl.program_id(0)
    i = pl.program_id(1)
    last_i = pl.num_programs(1) - 1

    y = jnp.dot(p_ref[...], w_ref[...], preferred_element_type=jnp.float32)

    @pl.when(jnp.logical_and(phase == 0, i == 0))
    def _():
        sum_sc[...] = jnp.zeros_like(sum_sc)
        sumsq_sc[...] = jnp.zeros_like(sumsq_sc)

    @pl.when(phase == 0)
    def _():
        sum_sc[...] += jnp.sum(y, axis=0, keepdims=True)
        sumsq_sc[...] += jnp.sum(y * y, axis=0, keepdims=True)

    @pl.when(phase == 1)
    def _():
        mean = sum_sc[...] * inv_m
        var = jnp.maximum(sumsq_sc[...] * inv_m - mean * mean, 0.0)
        scale = g_ref[...] * jax.lax.rsqrt(var + BN_EPS)
        shift = b_ref[...] - mean * scale
        a = y * scale + shift
        a = jnp.where(a > 0, a, LRELU_SLOPE * a)                 # (tile_m, c4) f32

        rowsum = jnp.sum(a * w5_ref[...], axis=1, keepdims=True)  # (tile_m, 1)
        part = jnp.dot(sel_ref[...], rowsum,
                       preferred_element_type=jnp.float32)        # (N, 1)

        @pl.when(i == 0)
        def _():
            o_ref[...] = jnp.zeros_like(o_ref)

        o_ref[...] += part

        @pl.when(i == last_i)
        def _():
            o_ref[...] = jax.nn.sigmoid(o_ref[...] + b5_ref[...])


# ----------------------------------------------------------------------------
# Host-side glue: lean im2col, padding, per-layer drivers
# ----------------------------------------------------------------------------
def _im2col(x_nhwc, k, stride, pad):
    """k=4, s=2 im2col via stride-2 space-to-depth (reshape-based phase split,
    contiguous shifted views only - no strided slices), pad fused in."""
    assert k == 4 and stride == 2
    n, h, w, c = x_nhwc.shape
    xp = jnp.pad(x_nhwc, ((0, 0), (pad, pad), (pad, pad), (0, 0)))
    hp, wp = h + 2 * pad, w + 2 * pad
    assert hp % 2 == 0 and wp % 2 == 0
    ho = (hp - k) // stride + 1
    wo = (wp - k) // stride + 1
    xr = xp.reshape(n, hp // 2, 2, wp // 2, 2, c)   # phase split by reshape
    cols = []
    for r in range(k):
        ar, pr = r // 2, r % 2
        for s in range(k):
            ac, pc = s // 2, s % 2
            cols.append(xr[:, ar:ar + ho, pr, ac:ac + wo, pc, :])
    p = jnp.stack(cols, axis=3)                      # (N, Ho, Wo, k*k, C)
    return p.reshape(n * ho * wo, k * k * c), ho, wo  # feature order [kh,kw,C]


def _pad2d(x, rows, cols):
    r, c = x.shape
    if rows == r and cols == c:
        return x
    return jnp.pad(x, ((0, rows - r), (0, cols - c)))


def _tiles(m):
    tile_m = MAX_TILE_M if m >= MAX_TILE_M else _round_up(m, SUBLANE)
    m_pad = _round_up(m, tile_m)
    return tile_m, m_pad, m_pad // tile_m


def _conv_lrelu(x_nhwc, w_mat, bias_row):
    n = x_nhwc.shape[0]
    patches, ho, wo = _im2col(x_nhwc, 4, 2, 1)
    m, _ = patches.shape
    kpad, cout = w_mat.shape
    tile_m, m_pad, grid_m = _tiles(m)
    p = _pad2d(patches, m_pad, kpad)

    out = pl.pallas_call(
        _conv_bias_lrelu_kernel,
        out_shape=jax.ShapeDtypeStruct((m_pad, cout), jnp.bfloat16),
        grid=(grid_m,),
        in_specs=[
            pl.BlockSpec((tile_m, kpad), lambda i: (i, 0)),
            pl.BlockSpec((kpad, cout), lambda i: (0, 0)),
            pl.BlockSpec((1, cout), lambda i: (0, 0)),
        ],
        out_specs=pl.BlockSpec((tile_m, cout), lambda i: (i, 0)),
        compiler_params=pltpu.CompilerParams(
            dimension_semantics=("parallel",),
            vmem_limit_bytes=VMEM_LIMIT),
    )(p, w_mat, bias_row)

    return out[:m, :].reshape(n, ho, wo, cout)


def _conv_bn_lrelu(x_nhwc, w_mat, gamma_row, beta_row):
    n = x_nhwc.shape[0]
    patches, ho, wo = _im2col(x_nhwc, 4, 2, 1)
    m, _ = patches.shape
    kpad, cout = w_mat.shape
    tile_m, m_pad, grid_m = _tiles(m)
    p = _pad2d(patches, m_pad, kpad)

    out = pl.pallas_call(
        functools.partial(_fused_conv_bn_lrelu_kernel, inv_m=1.0 / m),
        out_shape=jax.ShapeDtypeStruct((m_pad, cout), jnp.bfloat16),
        grid=(2, grid_m),
        in_specs=[
            pl.BlockSpec((tile_m, kpad), lambda ph, i: (i, 0)),
            pl.BlockSpec((kpad, cout), lambda ph, i: (0, 0)),
            pl.BlockSpec((1, cout), lambda ph, i: (0, 0)),
            pl.BlockSpec((1, cout), lambda ph, i: (0, 0)),
        ],
        out_specs=pl.BlockSpec((tile_m, cout), lambda ph, i: (i, 0)),
        scratch_shapes=[pltpu.VMEM((1, cout), jnp.float32),
                        pltpu.VMEM((1, cout), jnp.float32)],
        compiler_params=pltpu.CompilerParams(
            dimension_semantics=("arbitrary", "arbitrary"),
            vmem_limit_bytes=VMEM_LIMIT),
    )(p, w_mat, gamma_row, beta_row)

    return out[:m, :].reshape(n, ho, wo, cout)


def _conv_bn_lrelu_final(x_nhwc, w_mat, gamma_row, beta_row, w5_rows16, b5):
    """Layer 4 fused with Conv(8f->1, k=4, s=2, p=0) + Sigmoid -> (N, 1)."""
    n = x_nhwc.shape[0]
    patches, ho, wo = _im2col(x_nhwc, 4, 2, 1)
    assert ho == 4 and wo == 4, "final 4x4 valid conv needs a 4x4 feature map"
    m, _ = patches.shape
    kpad, cout = w_mat.shape
    tile_m, m_pad, grid_m = _tiles(m)
    p = _pad2d(patches, m_pad, kpad)

    # Final-conv weights replicated per output row (zeros on padded rows) and
    # a per-batch row selector; both tiny, built under jit.
    w5_rows = jnp.tile(w5_rows16, (n, 1))                        # (m, cout)
    w5_rows = jnp.pad(w5_rows, ((0, m_pad - m), (0, 0)))
    sel = jnp.kron(jnp.eye(n, dtype=jnp.float32),
                   jnp.ones((1, ho * wo), jnp.float32))          # (n, m)
    sel = jnp.pad(sel, ((0, 0), (0, m_pad - m)))
    b5_arr = b5.reshape(1, 1).astype(jnp.float32)

    out = pl.pallas_call(
        functools.partial(_fused_conv_bn_lrelu_final_kernel, inv_m=1.0 / m),
        out_shape=jax.ShapeDtypeStruct((n, 1), jnp.float32),
        grid=(2, grid_m),
        in_specs=[
            pl.BlockSpec((tile_m, kpad), lambda ph, i: (i, 0)),
            pl.BlockSpec((kpad, cout), lambda ph, i: (0, 0)),
            pl.BlockSpec((1, cout), lambda ph, i: (0, 0)),
            pl.BlockSpec((1, cout), lambda ph, i: (0, 0)),
            pl.BlockSpec((tile_m, cout), lambda ph, i: (i, 0)),
            pl.BlockSpec((n, tile_m), lambda ph, i: (0, i)),
            pl.BlockSpec((1, 1), lambda ph, i: (0, 0)),
        ],
        out_specs=pl.BlockSpec((n, 1), lambda ph, i: (0, 0)),
        scratch_shapes=[pltpu.VMEM((1, cout), jnp.float32),
                        pltpu.VMEM((1, cout), jnp.float32)],
        compiler_params=pltpu.CompilerParams(
            dimension_semantics=("arbitrary", "arbitrary"),
            vmem_limit_bytes=VMEM_LIMIT),
    )(p, w_mat, gamma_row, beta_row, w5_rows, sel, b5_arr)

    return out                                                    # (N, 1)


# ----------------------------------------------------------------------------
# Parameters: PyTorch-layout init + one-time packing for the TPU kernels
# ----------------------------------------------------------------------------
def init_params(key, channels_img, features_d):
    f = features_d
    ks = jax.random.split(key, 16)

    def w(k_, cout, cin):
        return 0.02 * jax.random.normal(k_, (cout, cin, 4, 4), jnp.float32)

    p = {}
    p["w1"] = w(ks[0], f, channels_img)
    p["b1"] = 0.02 * jax.random.normal(ks[1], (f,), jnp.float32)
    for idx, (cin, cout) in enumerate([(f, 2 * f), (2 * f, 4 * f), (4 * f, 8 * f)],
                                      start=2):
        p[f"w{idx}"] = w(ks[3 * idx - 4], cout, cin)
        p[f"g{idx}"] = 1.0 + 0.02 * jax.random.normal(ks[3 * idx - 3], (cout,),
                                                      jnp.float32)
        p[f"be{idx}"] = 0.02 * jax.random.normal(ks[3 * idx - 2], (cout,),
                                                 jnp.float32)
    p["w5"] = w(ks[14], 1, 8 * f)
    p["b5"] = 0.02 * jax.random.normal(ks[15], (1,), jnp.float32)
    return p


def _pack_weight(w_oihw):
    """(Cout,Cin,kh,kw) -> (K_pad, Cout) bf16; K padded to 128, Cout unpadded."""
    cout, cin, kh, kw = w_oihw.shape
    k = kh * kw * cin
    kpad = _round_up(k, LANE)
    wm = jnp.transpose(w_oihw, (2, 3, 1, 0)).reshape(k, cout)  # [kh,kw,Cin] order
    wm = jnp.pad(wm, ((0, kpad - k), (0, 0)))
    return wm.astype(jnp.bfloat16)


def _pack_row(v):
    return v.astype(jnp.float32).reshape(1, -1)


def prepare_params(params):
    """One-time packing (transpose/pad/cast) so no per-forward weight HLOs."""
    pp = {}
    pp["w1"] = _pack_weight(params["w1"])
    pp["b1"] = _pack_row(params["b1"])
    for idx in (2, 3, 4):
        pp[f"w{idx}"] = _pack_weight(params[f"w{idx}"])
        pp[f"g{idx}"] = _pack_row(params[f"g{idx}"])
        pp[f"be{idx}"] = _pack_row(params[f"be{idx}"])
    w5 = params["w5"]                                   # (1, 8f, 4, 4)
    c4 = w5.shape[1]
    # Row-per-spatial-position layout (16, 8f) in [kh, kw] order for the fused
    # final-conv dot inside the layer-4 kernel.
    pp["w5r"] = jnp.transpose(w5, (2, 3, 1, 0)).reshape(16, c4).astype(jnp.float32)
    pp["b5"] = params["b5"].astype(jnp.float32)
    return pp


# ----------------------------------------------------------------------------
# Full forward pass
# ----------------------------------------------------------------------------
@jax.jit
def discriminator_forward(pp, x_nchw):
    # NCHW -> NHWC, bf16 for the MXU (documented deviation from f32 reference).
    x = jnp.transpose(x_nchw, (0, 2, 3, 1)).astype(jnp.bfloat16)

    # Conv + bias + LeakyReLU
    x = _conv_lrelu(x, pp["w1"], pp["b1"])
    # 2 x (Conv no-bias + BatchNorm(batch stats) + LeakyReLU), fully fused
    x = _conv_bn_lrelu(x, pp["w2"], pp["g2"], pp["be2"])
    x = _conv_bn_lrelu(x, pp["w3"], pp["g3"], pp["be3"])
    # Layer 4 + final Conv(8f->1, k=4, s=2, p=0) + Sigmoid fused in one kernel
    out = _conv_bn_lrelu_final(x, pp["w4"], pp["g4"], pp["be4"],
                               pp["w5r"], pp["b5"])              # (N, 1)

    return out.reshape(-1, 1, 1, 1)                              # NCHW (N,1,1,1)


if __name__ == "__main__":
    # 64x64 is the smallest spatial size this architecture supports
    # (four stride-2 convs with pad=1, then a 4x4 valid conv -> 1x1 output).
    batch, channels_img, features_d, spatial = 2, 3, 8, 64

    key = jax.random.PRNGKey(0)
    k_params, k_x = jax.random.split(key)
    params = init_params(k_params, channels_img, features_d)
    prepped = prepare_params(params)

    x = jax.random.normal(k_x, (batch, channels_img, spatial, spatial),
                          jnp.float32)

    out = discriminator_forward(prepped, x)
    jax.block_until_ready(out)
    assert out.shape == (batch, 1, 1, 1), out.shape
    assert bool(jnp.all(jnp.isfinite(out)))
    assert bool(jnp.all((out >= 0.0) & (out <= 1.0)))
    print("KERNEL_OK")
</pallas_src>

<mosaic_0001>
module attributes {stable_mosaic.version = 11 : i64} {
  func.func @_conv_bias_lrelu_kernel(%arg0: i32, %arg1: memref<1024x128xbf16, #tpu.memory_space<vmem>>, %arg2: memref<128x8xbf16, #tpu.memory_space<vmem>>, %arg3: memref<1x8xf32, #tpu.memory_space<vmem>>, %arg4: memref<1024x8xbf16, #tpu.memory_space<vmem>>) attributes {dimension_semantics = [#tpu.dimension_semantics<parallel>], iteration_bounds = array<i64: 2>, scalar_prefetch = 0 : i64, scratch_operands = 0 : i64, tpu.core_type = #tpu.core_type<tc>, window_params = [{transform_indices = @transform_0, window_bounds = array<i64: 1024, 128>}, {pipeline_mode = #tpu.pipeline_mode<synchronous>, transform_indices = @transform_1, window_bounds = array<i64: 128, 8>}, {pipeline_mode = #tpu.pipeline_mode<synchronous>, transform_indices = @transform_2, window_bounds = array<i64: 1, 8>}, {transform_indices = @transform_3, window_bounds = array<i64: 1024, 8>}]} {
    %c0 = arith.constant 0 : index
    %c0_0 = arith.constant 0 : index
    %0 = vector.load %arg1[%c0, %c0_0] : memref<1024x128xbf16, #tpu.memory_space<vmem>>, vector<1024x128xbf16>
    %c0_1 = arith.constant 0 : index
    %c0_2 = arith.constant 0 : index
    %1 = vector.load %arg2[%c0_1, %c0_2] : memref<128x8xbf16, #tpu.memory_space<vmem>>, vector<128x8xbf16>
    %cst = arith.constant dense<0.000000e+00> : vector<1024x8xf32>
    %2 = tpu.matmul %0, %1, %cst {dimension_numbers = #tpu.dot_dimension_numbers<[1], [0], [0], [1], [0, 0, 1, 1], [], []>} : vector<1024x128xbf16>, vector<128x8xbf16>, vector<1024x8xf32> -> vector<1024x8xf32>
    %c0_3 = arith.constant 0 : index
    %c0_4 = arith.constant 0 : index
    %3 = vector.load %arg3[%c0_3, %c0_4] : memref<1x8xf32, #tpu.memory_space<vmem>>, vector<1x8xf32>
    %4 = vector.broadcast %3 : vector<1x8xf32> to vector<1024x8xf32>
    %5 = arith.addf %2, %4 : vector<1024x8xf32>
    %cst_5 = arith.constant 0.000000e+00 : f32
    %6 = vector.broadcast %cst_5 : f32 to vector<1024x8xf32>
    %7 = arith.cmpf ogt, %5, %6 : vector<1024x8xf32>
    %cst_6 = arith.constant 2.000000e-01 : f32
    %8 = vector.broadcast %cst_6 : f32 to vector<1024x8xf32>
    %9 = arith.mulf %8, %5 : vector<1024x8xf32>
    %10 = arith.select %7, %5, %9 : vector<1024x8xi1>, vector<1024x8xf32>
    %11 = arith.truncf %10 : vector<1024x8xf32> to vector<1024x8xbf16>
    %c0_7 = arith.constant 0 : index
    %c0_8 = arith.constant 0 : index
    %12 = vector.load %arg4[%c0_7, %c0_8] : memref<1024x8xbf16, #tpu.memory_space<vmem>>, vector<1024x8xbf16>
    tpu.vector_store %arg4[%c0_7, %c0_8], %11 {strides = array<i32>} : memref<1024x8xbf16, #tpu.memory_space<vmem>>, vector<1024x8xbf16>,
    return
  }
  func.func @transform_0(%arg0: i32) -> (i32, i32) {
    %c0_i32 = arith.constant 0 : i32
    %c0_i32_0 = arith.constant 0 : i32
    return %arg0, %c0_i32 : i32, i32
  }
  func.func @transform_1(%arg0: i32) -> (i32, i32) {
    %c0_i32 = arith.constant 0 : i32
    %c0_i32_0 = arith.constant 0 : i32
    %c0_i32_1 = arith.constant 0 : i32
    return %c0_i32, %c0_i32_0 : i32, i32
  }
  func.func @transform_2(%arg0: i32) -> (i32, i32) {
    %c0_i32 = arith.constant 0 : i32
    %c0_i32_0 = arith.constant 0 : i32
    %c0_i32_1 = arith.constant 0 : i32
    return %c0_i32, %c0_i32_0 : i32, i32
  }
  func.func @transform_3(%arg0: i32) -> (i32, i32) {
    %c0_i32 = arith.constant 0 : i32
    %c0_i32_0 = arith.constant 0 : i32
    return %arg0, %c0_i32 : i32, i32
  }
}

module attributes {stable_mosaic.version = 11 : i64} {
  func.func @_fused_conv_bn_lrelu_kernel(%arg0: i32, %arg1: i32, %arg2: memref<512x128xbf16, #tpu.memory_space<vmem>>, %arg3: memref<128x16xbf16, #tpu.memory_space<vmem>>, %arg4: memref<1x16xf32, #tpu.memory_space<vmem>>, %arg5: memref<1x16xf32, #tpu.memory_space<vmem>>, %arg6: memref<512x16xbf16, #tpu.memory_space<vmem>>, %arg7: memref<1x16xf32, #tpu.memory_space<vmem>>, %arg8: memref<1x16xf32, #tpu.memory_space<vmem>>) attributes {dimension_semantics = [#tpu.dimension_semantics<arbitrary>, #tpu.dimension_semantics<arbitrary>], iteration_bounds = array<i64: 2, 1>, scalar_prefetch = 0 : i64, scratch_operands = 2 : i64, tpu.core_type = #tpu.core_type<tc>, window_params = [{transform_indices = @transform_0, window_bounds = array<i64: 512, 128>}, {pipeline_mode = #tpu.pipeline_mode<synchronous>, transform_indices = @transform_1, window_bounds = array<i64: 128, 16>}, {pipeline_mode = #tpu.pipeline_mode<synchronous>, transform_indices = @transform_2, window_bounds = array<i64: 1, 16>}, {pipeline_mode = #tpu.pipeline_mode<synchronous>, transform_indices = @transform_3, window_bounds = array<i64: 1, 16>}, {transform_indices = @transform_4, window_bounds = array<i64: 512, 16>}]} {
    %c0 = arith.constant 0 : index
    %c0_0 = arith.constant 0 : index
    %0 = vector.load %arg2[%c0, %c0_0] : memref<512x128xbf16, #tpu.memory_space<vmem>>, vector<512x128xbf16>
    %c0_1 = arith.constant 0 : index
    %c0_2 = arith.constant 0 : index
    %1 = vector.load %arg3[%c0_1, %c0_2] : memref<128x16xbf16, #tpu.memory_space<vmem>>, vector<128x16xbf16>
    %cst = arith.constant dense<0.000000e+00> : vector<512x16xf32>
    %2 = tpu.matmul %0, %1, %cst {dimension_numbers = #tpu.dot_dimension_numbers<[1], [0], [0], [1], [0, 0, 1, 1], [], []>} : vector<512x128xbf16>, vector<128x16xbf16>, vector<512x16xf32> -> vector<512x16xf32>
    %c0_i32 = arith.constant 0 : i32
    %3 = arith.cmpi eq, %arg0, %c0_i32 : i32
    %c0_i32_3 = arith.constant 0 : i32
    %4 = arith.cmpi eq, %arg1, %c0_i32_3 : i32
    %5 = arith.andi %3, %4 : i1
    %6 = arith.extui %5 : i1 to i32
    %c0_i32_4 = arith.constant 0 : i32
    %7 = arith.cmpi ne, %6, %c0_i32_4 : i32
    scf.if %7 {
      %cst_8 = arith.constant 0.000000e+00 : f32
      %14 = vector.broadcast %cst_8 : f32 to vector<1x16xf32>
      %c0_9 = arith.constant 0 : index
      %c0_10 = arith.constant 0 : index
      %15 = vector.load %arg7[%c0_9, %c0_10] : memref<1x16xf32, #tpu.memory_space<vmem>>, vector<1x16xf32>
      tpu.vector_store %arg7[%c0_9, %c0_10], %14 {strides = array<i32>} : memref<1x16xf32, #tpu.memory_space<vmem>>, vector<1x16xf32>,
      %cst_11 = arith.constant 0.000000e+00 : f32
      %16 = vector.broadcast %cst_11 : f32 to vector<1x16xf32>
      %c0_12 = arith.constant 0 : index
      %c0_13 = arith.constant 0 : index
      %17 = vector.load %arg8[%c0_12, %c0_13] : memref<1x16xf32, #tpu.memory_space<vmem>>, vector<1x16xf32>
      tpu.vector_store %arg8[%c0_12, %c0_13], %16 {strides = array<i32>} : memref<1x16xf32, #tpu.memory_space<vmem>>, vector<1x16xf32>,
    } else {
    }
    %c0_i32_5 = arith.constant 0 : i32
    %8 = arith.cmpi eq, %arg0, %c0_i32_5 : i32
    %9 = arith.extui %8 : i1 to i32
    %c0_i32_6 = arith.constant 0 : i32
    %10 = arith.cmpi ne, %9, %c0_i32_6 : i32
    scf.if %10 {
      %c0_8 = arith.constant 0 : index
      %c0_9 = arith.constant 0 : index
      %14 = vector.load %arg7[%c0_8, %c0_9] : memref<1x16xf32, #tpu.memory_space<vmem>>, vector<1x16xf32>
      %cst_10 = arith.constant dense<0.000000e+00> : vector<16xf32>
      %15 = vector.multi_reduction <add>, %2, %cst_10 [0] : vector<512x16xf32> to vector<16xf32>
      %16 = vector.shape_cast %15 : vector<16xf32> to vector<1x16xf32>
      %17 = arith.addf %14, %16 : vector<1x16xf32>
      %c0_11 = arith.constant 0 : index
      %c0_12 = arith.constant 0 : index
      %18 = vector.load %arg7[%c0_11, %c0_12] : memref<1x16xf32, #tpu.memory_space<vmem>>, vector<1x16xf32>
      tpu.vector_store %arg7[%c0_11, %c0_12], %17 {strides = array<i32>} : memref<1x16xf32, #tpu.memory_space<vmem>>, vector<1x16xf32>,
      %c0_13 = arith.constant 0 : index
      %c0_14 = arith.constant 0 : index
      %19 = vector.load %arg8[%c0_13, %c0_14] : memref<1x16xf32, #tpu.memory_space<vmem>>, vector<1x16xf32>
      %20 = arith.mulf %2, %2 : vector<512x16xf32>
      %cst_15 = arith.constant dense<0.000000e+00> : vector<16xf32>
      %21 = vector.multi_reduction <add>, %20, %cst_15 [0] : vector<512x16xf32> to vector<16xf32>
      %22 = vector.shape_cast %21 : vector<16xf32> to vector<1x16xf32>
      %23 = arith.addf %19, %22 : vector<1x16xf32>
      %c0_16 = arith.constant 0 : index
      %c0_17 = arith.constant 0 : index
      %24 = vector.load %arg8[%c0_16, %c0_17] : memref<1x16xf32, #tpu.memory_space<vmem>>, vector<1x16xf32>
      tpu.vector_store %arg8[%c0_16, %c0_17], %23 {strides = array<i32>} : memref<1x16xf32, #tpu.memory_space<vmem>>, vector<1x16xf32>,
    } else {
    }
    %c1_i32 = arith.constant 1 : i32
    %11 = arith.cmpi eq, %arg0, %c1_i32 : i32
    %12 = arith.extui %11 : i1 to i32
    %c0_i32_7 = arith.constant 0 : i32
    %13 = arith.cmpi ne, %12, %c0_i32_7 : i32
    scf.if %13 {
      %c0_8 = arith.constant 0 : index
      %c0_9 = arith.constant 0 : index
      %14 = vector.load %arg7[%c0_8, %c0_9] : memref<1x16xf32, #tpu.memory_space<vmem>>, vector<1x16xf32>
      %cst_10 = arith.constant 0.001953125 : f32
      %15 = vector.broadcast %cst_10 : f32 to vector<1x16xf32>
      %16 = arith.mulf %14, %15 : vector<1x16xf32>
      %c0_11 = arith.constant 0 : index
      %c0_12 = arith.constant 0 : index
      %17 = vector.load %arg8[%c0_11, %c0_12] : memref<1x16xf32, #tpu.memory_space<vmem>>, vector<1x16xf32>
      %cst_13 = arith.constant 0.001953125 : f32
      %18 = vector.broadcast %cst_13 : f32 to vector<1x16xf32>
      %19 = arith.mulf %17, %18 : vector<1x16xf32>
      %20 = arith.mulf %16, %16 : vector<1x16xf32>
      %21 = arith.subf %19, %20 : vector<1x16xf32>
      %cst_14 = arith.constant 0.000000e+00 : f32
      %22 = vector.broadcast %cst_14 : f32 to vector<1x16xf32>
      %23 = arith.maximumf %21, %22 : vector<1x16xf32>
      %c0_15 = arith.constant 0 : index
      %c0_16 = arith.constant 0 : index
      %24 = vector.load %arg4[%c0_15, %c0_16] : memref<1x16xf32, #tpu.memory_space<vmem>>, vector<1x16xf32>
      %cst_17 = arith.constant 9.99999974E-6 : f32
      %25 = vector.broadcast %cst_17 : f32 to vector<1x16xf32>
      %26 = arith.addf %23, %25 : vector<1x16xf32>
      %27 = math.rsqrt %26 : vector<1x16xf32>
      %28 = arith.mulf %24, %27 : vector<1x16xf32>
      %c0_18 = arith.constant 0 : index
      %c0_19 = arith.constant 0 : index
      %29 = vector.load %arg5[%c0_18, %c0_19] : memref<1x16xf32, #tpu.memory_space<vmem>>, vector<1x16xf32>
      %30 = arith.mulf %16, %28 : vector<1x16xf32>
      %31 = arith.subf %29, %30 : vector<1x16xf32>
      %32 = vector.broadcast %28 : vector<1x16xf32> to vector<512x16xf32>
      %33 = arith.mulf %2, %32 : vector<512x16xf32>
      %34 = vector.broadcast %31 : vector<1x16xf32> to vector<512x16xf32>
      %35 = arith.addf %33, %34 : vector<512x16xf32>
      %cst_20 = arith.constant 0.000000e+00 : f32
      %36 = vector.broadcast %cst_20 : f32 to vector<512x16xf32>
      %37 = arith.cmpf ogt, %35, %36 : vector<512x16xf32>
      %cst_21 = arith.constant 2.000000e-01 : f32
      %38 = vector.broadcast %cst_21 : f32 to vector<512x16xf32>
      %39 = arith.mulf %38, %35 : vector<512x16xf32>
      %40 = arith.select %37, %35, %39 : vector<512x16xi1>, vector<512x16xf32>
      %41 = arith.truncf %40 : vector<512x16xf32> to vector<512x16xbf16>
      %c0_22 = arith.constant 0 : index
      %c0_23 = arith.constant 0 : index
      %42 = vector.load %arg6[%c0_22, %c0_23] : memref<512x16xbf16, #tpu.memory_space<vmem>>, vector<512x16xbf16>
      tpu.vector_store %arg6[%c0_22, %c0_23], %41 {strides = array<i32>} : memref<512x16xbf16, #tpu.memory_space<vmem>>, vector<512x16xbf16>,
    } else {
    }
    return
  }
  func.func @transform_0(%arg0: i32, %arg1: i32) -> (i32, i32) {
    %c0_i32 = arith.constant 0 : i32
    %c0_i32_0 = arith.constant 0 : i32
    return %arg1, %c0_i32 : i32, i32
  }
  func.func @transform_1(%arg0: i32, %arg1: i32) -> (i32, i32) {
    %c0_i32 = arith.constant 0 : i32
    %c0_i32_0 = arith.constant 0 : i32
    %c0_i32_1 = arith.constant 0 : i32
    return %c0_i32, %c0_i32_0 : i32, i32
  }
  func.func @transform_2(%arg0: i32, %arg1: i32) -> (i32, i32) {
    %c0_i32 = arith.constant 0 : i32
    %c0_i32_0 = arith.constant 0 : i32
    %c0_i32_1 = arith.constant 0 : i32
    return %c0_i32, %c0_i32_0 : i32, i32
  }
  func.func @transform_3(%arg0: i32, %arg1: i32) -> (i32, i32) {
    %c0_i32 = arith.constant 0 : i32
    %c0_i32_0 = arith.constant 0 : i32
    %c0_i32_1 = arith.constant 0 : i32
    return %c0_i32, %c0_i32_0 : i32, i32
  }
  func.func @transform_4(%arg0: i32, %arg1: i32) -> (i32, i32) {
    %c0_i32 = arith.constant 0 : i32
    %c0_i32_0 = arith.constant 0 : i32
    return %arg1, %c0_i32 : i32, i32
  }
}

module attributes {stable_mosaic.version = 11 : i64} {
  func.func @_fused_conv_bn_lrelu_kernel(%arg0: i32, %arg1: i32, %arg2: memref<128x256xbf16, #tpu.memory_space<vmem>>, %arg3: memref<256x32xbf16, #tpu.memory_space<vmem>>, %arg4: memref<1x32xf32, #tpu.memory_space<vmem>>, %arg5: memref<1x32xf32, #tpu.memory_space<vmem>>, %arg6: memref<128x32xbf16, #tpu.memory_space<vmem>>, %arg7: memref<1x32xf32, #tpu.memory_space<vmem>>, %arg8: memref<1x32xf32, #tpu.memory_space<vmem>>) attributes {dimension_semantics = [#tpu.dimension_semantics<arbitrary>, #tpu.dimension_semantics<arbitrary>], iteration_bounds = array<i64: 2, 1>, scalar_prefetch = 0 : i64, scratch_operands = 2 : i64, tpu.core_type = #tpu.core_type<tc>, window_params = [{transform_indices = @transform_0, window_bounds = array<i64: 128, 256>}, {pipeline_mode = #tpu.pipeline_mode<synchronous>, transform_indices = @transform_1, window_bounds = array<i64: 256, 32>}, {pipeline_mode = #tpu.pipeline_mode<synchronous>, transform_indices = @transform_2, window_bounds = array<i64: 1, 32>}, {pipeline_mode = #tpu.pipeline_mode<synchronous>, transform_indices = @transform_3, window_bounds = array<i64: 1, 32>}, {transform_indices = @transform_4, window_bounds = array<i64: 128, 32>}]} {
    %c0 = arith.constant 0 : index
    %c0_0 = arith.constant 0 : index
    %0 = vector.load %arg2[%c0, %c0_0] : memref<128x256xbf16, #tpu.memory_space<vmem>>, vector<128x256xbf16>
    %c0_1 = arith.constant 0 : index
    %c0_2 = arith.constant 0 : index
    %1 = vector.load %arg3[%c0_1, %c0_2] : memref<256x32xbf16, #tpu.memory_space<vmem>>, vector<256x32xbf16>
    %cst = arith.constant dense<0.000000e+00> : vector<128x32xf32>
    %2 = tpu.matmul %0, %1, %cst {dimension_numbers = #tpu.dot_dimension_numbers<[1], [0], [0], [1], [0, 0, 1, 1], [], []>} : vector<128x256xbf16>, vector<256x32xbf16>, vector<128x32xf32> -> vector<128x32xf32>
    %c0_i32 = arith.constant 0 : i32
    %3 = arith.cmpi eq, %arg0, %c0_i32 : i32
    %c0_i32_3 = arith.constant 0 : i32
    %4 = arith.cmpi eq, %arg1, %c0_i32_3 : i32
    %5 = arith.andi %3, %4 : i1
    %6 = arith.extui %5 : i1 to i32
    %c0_i32_4 = arith.constant 0 : i32
    %7 = arith.cmpi ne, %6, %c0_i32_4 : i32
    scf.if %7 {
      %cst_8 = arith.constant 0.000000e+00 : f32
      %14 = vector.broadcast %cst_8 : f32 to vector<1x32xf32>
      %c0_9 = arith.constant 0 : index
      %c0_10 = arith.constant 0 : index
      %15 = vector.load %arg7[%c0_9, %c0_10] : memref<1x32xf32, #tpu.memory_space<vmem>>, vector<1x32xf32>
      tpu.vector_store %arg7[%c0_9, %c0_10], %14 {strides = array<i32>} : memref<1x32xf32, #tpu.memory_space<vmem>>, vector<1x32xf32>,
      %cst_11 = arith.constant 0.000000e+00 : f32
      %16 = vector.broadcast %cst_11 : f32 to vector<1x32xf32>
      %c0_12 = arith.constant 0 : index
      %c0_13 = arith.constant 0 : index
      %17 = vector.load %arg8[%c0_12, %c0_13] : memref<1x32xf32, #tpu.memory_space<vmem>>, vector<1x32xf32>
      tpu.vector_store %arg8[%c0_12, %c0_13], %16 {strides = array<i32>} : memref<1x32xf32, #tpu.memory_space<vmem>>, vector<1x32xf32>,
    } else {
    }
    %c0_i32_5 = arith.constant 0 : i32
    %8 = arith.cmpi eq, %arg0, %c0_i32_5 : i32
    %9 = arith.extui %8 : i1 to i32
    %c0_i32_6 = arith.constant 0 : i32
    %10 = arith.cmpi ne, %9, %c0_i32_6 : i32
    scf.if %10 {
      %c0_8 = arith.constant 0 : index
      %c0_9 = arith.constant 0 : index
      %14 = vector.load %arg7[%c0_8, %c0_9] : memref<1x32xf32, #tpu.memory_space<vmem>>, vector<1x32xf32>
      %cst_10 = arith.constant dense<0.000000e+00> : vector<32xf32>
      %15 = vector.multi_reduction <add>, %2, %cst_10 [0] : vector<128x32xf32> to vector<32xf32>
      %16 = vector.shape_cast %15 : vector<32xf32> to vector<1x32xf32>
      %17 = arith.addf %14, %16 : vector<1x32xf32>
      %c0_11 = arith.constant 0 : index
      %c0_12 = arith.constant 0 : index
      %18 = vector.load %arg7[%c0_11, %c0_12] : memref<1x32xf32, #tpu.memory_space<vmem>>, vector<1x32xf32>
      tpu.vector_store %arg7[%c0_11, %c0_12], %17 {strides = array<i32>} : memref<1x32xf32, #tpu.memory_space<vmem>>, vector<1x32xf32>,
      %c0_13 = arith.constant 0 : index
      %c0_14 = arith.constant 0 : index
      %19 = vector.load %arg8[%c0_13, %c0_14] : memref<1x32xf32, #tpu.memory_space<vmem>>, vector<1x32xf32>
      %20 = arith.mulf %2, %2 : vector<128x32xf32>
      %cst_15 = arith.constant dense<0.000000e+00> : vector<32xf32>
      %21 = vector.multi_reduction <add>, %20, %cst_15 [0] : vector<128x32xf32> to vector<32xf32>
      %22 = vector.shape_cast %21 : vector<32xf32> to vector<1x32xf32>
      %23 = arith.addf %19, %22 : vector<1x32xf32>
      %c0_16 = arith.constant 0 : index
      %c0_17 = arith.constant 0 : index
      %24 = vector.load %arg8[%c0_16, %c0_17] : memref<1x32xf32, #tpu.memory_space<vmem>>, vector<1x32xf32>
      tpu.vector_store %arg8[%c0_16, %c0_17], %23 {strides = array<i32>} : memref<1x32xf32, #tpu.memory_space<vmem>>, vector<1x32xf32>,
    } else {
    }
    %c1_i32 = arith.constant 1 : i32
    %11 = arith.cmpi eq, %arg0, %c1_i32 : i32
    %12 = arith.extui %11 : i1 to i32
    %c0_i32_7 = arith.constant 0 : i32
    %13 = arith.cmpi ne, %12, %c0_i32_7 : i32
    scf.if %13 {
      %c0_8 = arith.constant 0 : index
      %c0_9 = arith.constant 0 : index
      %14 = vector.load %arg7[%c0_8, %c0_9] : memref<1x32xf32, #tpu.memory_space<vmem>>, vector<1x32xf32>
      %cst_10 = arith.constant 7.812500e-03 : f32
      %15 = vector.broadcast %cst_10 : f32 to vector<1x32xf32>
      %16 = arith.mulf %14, %15 : vector<1x32xf32>
      %c0_11 = arith.constant 0 : index
      %c0_12 = arith.constant 0 : index
      %17 = vector.load %arg8[%c0_11, %c0_12] : memref<1x32xf32, #tpu.memory_space<vmem>>, vector<1x32xf32>
      %cst_13 = arith.constant 7.812500e-03 : f32
      %18 = vector.broadcast %cst_13 : f32 to vector<1x32xf32>
      %19 = arith.mulf %17, %18 : vector<1x32xf32>
      %20 = arith.mulf %16, %16 : vector<1x32xf32>
      %21 = arith.subf %19, %20 : vector<1x32xf32>
      %cst_14 = arith.constant 0.000000e+00 : f32
      %22 = vector.broadcast %cst_14 : f32 to vector<1x32xf32>
      %23 = arith.maximumf %21, %22 : vector<1x32xf32>
      %c0_15 = arith.constant 0 : index
      %c0_16 = arith.constant 0 : index
      %24 = vector.load %arg4[%c0_15, %c0_16] : memref<1x32xf32, #tpu.memory_space<vmem>>, vector<1x32xf32>
      %cst_17 = arith.constant 9.99999974E-6 : f32
      %25 = vector.broadcast %cst_17 : f32 to vector<1x32xf32>
      %26 = arith.addf %23, %25 : vector<1x32xf32>
      %27 = math.rsqrt %26 : vector<1x32xf32>
      %28 = arith.mulf %24, %27 : vector<1x32xf32>
      %c0_18 = arith.constant 0 : index
      %c0_19 = arith.constant 0 : index
      %29 = vector.load %arg5[%c0_18, %c0_19] : memref<1x32xf32, #tpu.memory_space<vmem>>, vector<1x32xf32>
      %30 = arith.mulf %16, %28 : vector<1x32xf32>
      %31 = arith.subf %29, %30 : vector<1x32xf32>
      %32 = vector.broadcast %28 : vector<1x32xf32> to vector<128x32xf32>
      %33 = arith.mulf %2, %32 : vector<128x32xf32>
      %34 = vector.broadcast %31 : vector<1x32xf32> to vector<128x32xf32>
      %35 = arith.addf %33, %34 : vector<128x32xf32>
      %cst_20 = arith.constant 0.000000e+00 : f32
      %36 = vector.broadcast %cst_20 : f32 to vector<128x32xf32>
      %37 = arith.cmpf ogt, %35, %36 : vector<128x32xf32>
      %cst_21 = arith.constant 2.000000e-01 : f32
      %38 = vector.broadcast %cst_21 : f32 to vector<128x32xf32>
      %39 = arith.mulf %38, %35 : vector<128x32xf32>
      %40 = arith.select %37, %35, %39 : vector<128x32xi1>, vector<128x32xf32>
      %41 = arith.truncf %40 : vector<128x32xf32> to vector<128x32xbf16>
      %c0_22 = arith.constant 0 : index
      %c0_23 = arith.constant 0 : index
      %42 = vector.load %arg6[%c0_22, %c0_23] : memref<128x32xbf16, #tpu.memory_space<vmem>>, vector<128x32xbf16>
      tpu.vector_store %arg6[%c0_22, %c0_23], %41 {strides = array<i32>} : memref<128x32xbf16, #tpu.memory_space<vmem>>, vector<128x32xbf16>,
    } else {
    }
    return
  }
  func.func @transform_0(%arg0: i32, %arg1: i32) -> (i32, i32) {
    %c0_i32 = arith.constant 0 : i32
    %c0_i32_0 = arith.constant 0 : i32
    return %arg1, %c0_i32 : i32, i32
  }
  func.func @transform_1(%arg0: i32, %arg1: i32) -> (i32, i32) {
    %c0_i32 = arith.constant 0 : i32
    %c0_i32_0 = arith.constant 0 : i32
    %c0_i32_1 = arith.constant 0 : i32
    return %c0_i32, %c0_i32_0 : i32, i32
  }
  func.func @transform_2(%arg0: i32, %arg1: i32) -> (i32, i32) {
    %c0_i32 = arith.constant 0 : i32
    %c0_i32_0 = arith.constant 0 : i32
    %c0_i32_1 = arith.constant 0 : i32
    return %c0_i32, %c0_i32_0 : i32, i32
  }
  func.func @transform_3(%arg0: i32, %arg1: i32) -> (i32, i32) {
    %c0_i32 = arith.constant 0 : i32
    %c0_i32_0 = arith.constant 0 : i32
    %c0_i32_1 = arith.constant 0 : i32
    return %c0_i32, %c0_i32_0 : i32, i32
  }
  func.func @transform_4(%arg0: i32, %arg1: i32) -> (i32, i32) {
    %c0_i32 = arith.constant 0 : i32
    %c0_i32_0 = arith.constant 0 : i32
    return %arg1, %c0_i32 : i32, i32
  }
}

module attributes {stable_mosaic.version = 11 : i64} {
  func.func @_fused_conv_bn_lrelu_final_kernel(%arg0: i32, %arg1: i32, %arg2: memref<32x512xbf16, #tpu.memory_space<vmem>>, %arg3: memref<512x64xbf16, #tpu.memory_space<vmem>>, %arg4: memref<1x64xf32, #tpu.memory_space<vmem>>, %arg5: memref<1x64xf32, #tpu.memory_space<vmem>>, %arg6: memref<32x64xf32, #tpu.memory_space<vmem>>, %arg7: memref<2x32xf32, #tpu.memory_space<vmem>>, %arg8: memref<1x1xf32, #tpu.memory_space<vmem>>, %arg9: memref<2x1xf32, #tpu.memory_space<vmem>>, %arg10: memref<1x64xf32, #tpu.memory_space<vmem>>, %arg11: memref<1x64xf32, #tpu.memory_space<vmem>>) attributes {dimension_semantics = [#tpu.dimension_semantics<arbitrary>, #tpu.dimension_semantics<arbitrary>], iteration_bounds = array<i64: 2, 1>, scalar_prefetch = 0 : i64, scratch_operands = 2 : i64, tpu.core_type = #tpu.core_type<tc>, window_params = [{transform_indices = @transform_0, window_bounds = array<i64: 32, 512>}, {pipeline_mode = #tpu.pipeline_mode<synchronous>, transform_indices = @transform_1, window_bounds = array<i64: 512, 64>}, {pipeline_mode = #tpu.pipeline_mode<synchronous>, transform_indices = @transform_2, window_bounds = array<i64: 1, 64>}, {pipeline_mode = #tpu.pipeline_mode<synchronous>, transform_indices = @transform_3, window_bounds = array<i64: 1, 64>}, {transform_indices = @transform_4, window_bounds = array<i64: 32, 64>}, {transform_indices = @transform_5, window_bounds = array<i64: 2, 32>}, {pipeline_mode = #tpu.pipeline_mode<synchronous>, transform_indices = @transform_6, window_bounds = array<i64: 1, 1>}, {pipeline_mode = #tpu.pipeline_mode<synchronous>, transform_indices = @transform_7, window_bounds = array<i64: 2, 1>}]} {
    %c0 = arith.constant 0 : index
    %c0_0 = arith.constant 0 : index
    %0 = vector.load %arg2[%c0, %c0_0] : memref<32x512xbf16, #tpu.memory_space<vmem>>, vector<32x512xbf16>
    %c0_1 = arith.constant 0 : index
    %c0_2 = arith.constant 0 : index
    %1 = vector.load %arg3[%c0_1, %c0_2] : memref<512x64xbf16, #tpu.memory_space<vmem>>, vector<512x64xbf16>
    %cst = arith.constant dense<0.000000e+00> : vector<32x64xf32>
    %2 = tpu.matmul %0, %1, %cst {dimension_numbers = #tpu.dot_dimension_numbers<[1], [0], [0], [1], [0, 0, 1, 1], [], []>} : vector<32x512xbf16>, vector<512x64xbf16>, vector<32x64xf32> -> vector<32x64xf32>
    %c0_i32 = arith.constant 0 : i32
    %3 = arith.cmpi eq, %arg0, %c0_i32 : i32
    %c0_i32_3 = arith.constant 0 : i32
    %4 = arith.cmpi eq, %arg1, %c0_i32_3 : i32
    %5 = arith.andi %3, %4 : i1
    %6 = arith.extui %5 : i1 to i32
    %c0_i32_4 = arith.constant 0 : i32
    %7 = arith.cmpi ne, %6, %c0_i32_4 : i32
    scf.if %7 {
      %cst_8 = arith.constant 0.000000e+00 : f32
      %14 = vector.broadcast %cst_8 : f32 to vector<1x64xf32>
      %c0_9 = arith.constant 0 : index
      %c0_10 = arith.constant 0 : index
      %15 = vector.load %arg10[%c0_9, %c0_10] : memref<1x64xf32, #tpu.memory_space<vmem>>, vector<1x64xf32>
      tpu.vector_store %arg10[%c0_9, %c0_10], %14 {strides = array<i32>} : memref<1x64xf32, #tpu.memory_space<vmem>>, vector<1x64xf32>,
      %cst_11 = arith.constant 0.000000e+00 : f32
      %16 = vector.broadcast %cst_11 : f32 to vector<1x64xf32>
      %c0_12 = arith.constant 0 : index
      %c0_13 = arith.constant 0 : index
      %17 = vector.load %arg11[%c0_12, %c0_13] : memref<1x64xf32, #tpu.memory_space<vmem>>, vector<1x64xf32>
      tpu.vector_store %arg11[%c0_12, %c0_13], %16 {strides = array<i32>} : memref<1x64xf32, #tpu.memory_space<vmem>>, vector<1x64xf32>,
    } else {
    }
    %c0_i32_5 = arith.constant 0 : i32
    %8 = arith.cmpi eq, %arg0, %c0_i32_5 : i32
    %9 = arith.extui %8 : i1 to i32
    %c0_i32_6 = arith.constant 0 : i32
    %10 = arith.cmpi ne, %9, %c0_i32_6 : i32
    scf.if %10 {
      %c0_8 = arith.constant 0 : index
      %c0_9 = arith.constant 0 : index
      %14 = vector.load %arg10[%c0_8, %c0_9] : memref<1x64xf32, #tpu.memory_space<vmem>>, vector<1x64xf32>
      %cst_10 = arith.constant dense<0.000000e+00> : vector<64xf32>
      %15 = vector.multi_reduction <add>, %2, %cst_10 [0] : vector<32x64xf32> to vector<64xf32>
      %16 = vector.shape_cast %15 : vector<64xf32> to vector<1x64xf32>
      %17 = arith.addf %14, %16 : vector<1x64xf32>
      %c0_11 = arith.constant 0 : index
      %c0_12 = arith.constant 0 : index
      %18 = vector.load %arg10[%c0_11, %c0_12] : memref<1x64xf32, #tpu.memory_space<vmem>>, vector<1x64xf32>
      tpu.vector_store %arg10[%c0_11, %c0_12], %17 {strides = array<i32>} : memref<1x64xf32, #tpu.memory_space<vmem>>, vector<1x64xf32>,
      %c0_13 = arith.constant 0 : index
      %c0_14 = arith.constant 0 : index
      %19 = vector.load %arg11[%c0_13, %c0_14] : memref<1x64xf32, #tpu.memory_space<vmem>>, vector<1x64xf32>
      %20 = arith.mulf %2, %2 : vector<32x64xf32>
      %cst_15 = arith.constant dense<0.000000e+00> : vector<64xf32>
      %21 = vector.multi_reduction <add>, %20, %cst_15 [0] : vector<32x64xf32> to vector<64xf32>
      %22 = vector.shape_cast %21 : vector<64xf32> to vector<1x64xf32>
      %23 = arith.addf %19, %22 : vector<1x64xf32>
      %c0_16 = arith.constant 0 : index
      %c0_17 = arith.constant 0 : index
      %24 = vector.load %arg11[%c0_16, %c0_17] : memref<1x64xf32, #tpu.memory_space<vmem>>, vector<1x64xf32>
      tpu.vector_store %arg11[%c0_16, %c0_17], %23 {strides = array<i32>} : memref<1x64xf32, #tpu.memory_space<vmem>>, vector<1x64xf32>,
    } else {
    }
    %c1_i32 = arith.constant 1 : i32
    %11 = arith.cmpi eq, %arg0, %c1_i32 : i32
    %12 = arith.extui %11 : i1 to i32
    %c0_i32_7 = arith.constant 0 : i32
    %13 = arith.cmpi ne, %12, %c0_i32_7 : i32
    scf.if %13 {
      %c0_8 = arith.constant 0 : index
      %c0_9 = arith.constant 0 : index
      %14 = vector.load %arg10[%c0_8, %c0_9] : memref<1x64xf32, #tpu.memory_space<vmem>>, vector<1x64xf32>
      %cst_10 = arith.constant 3.125000e-02 : f32
      %15 = vector.broadcast %cst_10 : f32 to vector<1x64xf32>
      %16 = arith.mulf %14, %15 : vector<1x64xf32>
      %c0_11 = arith.constant 0 : index
      %c0_12 = arith.constant 0 : index
      %17 = vector.load %arg11[%c0_11, %c0_12] : memref<1x64xf32, #tpu.memory_space<vmem>>, vector<1x64xf32>
      %cst_13 = arith.constant 3.125000e-02 : f32
      %18 = vector.broadcast %cst_13 : f32 to vector<1x64xf32>
      %19 = arith.mulf %17, %18 : vector<1x64xf32>
      %20 = arith.mulf %16, %16 : vector<1x64xf32>
      %21 = arith.subf %19, %20 : vector<1x64xf32>
      %cst_14 = arith.constant 0.000000e+00 : f32
      %22 = vector.broadcast %cst_14 : f32 to vector<1x64xf32>
      %23 = arith.maximumf %21, %22 : vector<1x64xf32>
      %c0_15 = arith.constant 0 : index
      %c0_16 = arith.constant 0 : index
      %24 = vector.load %arg4[%c0_15, %c0_16] : memref<1x64xf32, #tpu.memory_space<vmem>>, vector<1x64xf32>
      %cst_17 = arith.constant 9.99999974E-6 : f32
      %25 = vector.broadcast %cst_17 : f32 to vector<1x64xf32>
      %26 = arith.addf %23, %25 : vector<1x64xf32>
      %27 = math.rsqrt %26 : vector<1x64xf32>
      %28 = arith.mulf %24, %27 : vector<1x64xf32>
      %c0_18 = arith.constant 0 : index
      %c0_19 = arith.constant 0 : index
      %29 = vector.load %arg5[%c0_18, %c0_19] : memref<1x64xf32, #tpu.memory_space<vmem>>, vector<1x64xf32>
      %30 = arith.mulf %16, %28 : vector<1x64xf32>
      %31 = arith.subf %29, %30 : vector<1x64xf32>
      %32 = vector.broadcast %28 : vector<1x64xf32> to vector<32x64xf32>
      %33 = arith.mulf %2, %32 : vector<32x64xf32>
      %34 = vector.broadcast %31 : vector<1x64xf32> to vector<32x64xf32>
      %35 = arith.addf %33, %34 : vector<32x64xf32>
      %cst_20 = arith.constant 0.000000e+00 : f32
      %36 = vector.broadcast %cst_20 : f32 to vector<32x64xf32>
      %37 = arith.cmpf ogt, %35, %36 : vector<32x64xf32>
      %cst_21 = arith.constant 2.000000e-01 : f32
      %38 = vector.broadcast %cst_21 : f32 to vector<32x64xf32>
      %39 = arith.mulf %38, %35 : vector<32x64xf32>
      %40 = arith.select %37, %35, %39 : vector<32x64xi1>, vector<32x64xf32>
      %c0_22 = arith.constant 0 : index
      %c0_23 = arith.constant 0 : index
      %41 = vector.load %arg6[%c0_22, %c0_23] : memref<32x64xf32, #tpu.memory_space<vmem>>, vector<32x64xf32>
      %42 = arith.mulf %40, %41 : vector<32x64xf32>
      %cst_24 = arith.constant dense<0.000000e+00> : vector<32xf32>
      %43 = vector.multi_reduction <add>, %42, %cst_24 [1] : vector<32x64xf32> to vector<32xf32>
      %44 = vector.shape_cast %43 : vector<32xf32> to vector<32x1xf32>
      %c0_25 = arith.constant 0 : index
      %c0_26 = arith.constant 0 : index
      %45 = vector.load %arg7[%c0_25, %c0_26] : memref<2x32xf32, #tpu.memory_space<vmem>>, vector<2x32xf32>
      %cst_27 = arith.constant dense<0.000000e+00> : vector<2x1xf32>
      %46 = tpu.matmul %45, %44, %cst_27 {dimension_numbers = #tpu.dot_dimension_numbers<[1], [0], [0], [1], [0, 0, 1, 1], [], []>} : vector<2x32xf32>, vector<32x1xf32>, vector<2x1xf32> -> vector<2x1xf32>
      %c0_i32_28 = arith.constant 0 : i32
      %47 = arith.cmpi eq, %arg1, %c0_i32_28 : i32
      %48 = arith.extui %47 : i1 to i32
      %c0_i32_29 = arith.constant 0 : i32
      %49 = arith.cmpi ne, %48, %c0_i32_29 : i32
      scf.if %49 {
        %cst_36 = arith.constant 0.000000e+00 : f32
        %56 = vector.broadcast %cst_36 : f32 to vector<2x1xf32>
        %c0_37 = arith.constant 0 : index
        %c0_38 = arith.constant 0 : index
        %57 = vector.load %arg9[%c0_37, %c0_38] : memref<2x1xf32, #tpu.memory_space<vmem>>, vector<2x1xf32>
        tpu.vector_store %arg9[%c0_37, %c0_38], %56 {strides = array<i32>} : memref<2x1xf32, #tpu.memory_space<vmem>>, vector<2x1xf32>,
      } else {
      }
      %c0_30 = arith.constant 0 : index
      %c0_31 = arith.constant 0 : index
      %50 = vector.load %arg9[%c0_30, %c0_31] : memref<2x1xf32, #tpu.memory_space<vmem>>, vector<2x1xf32>
      %51 = arith.addf %50, %46 : vector<2x1xf32>
      %c0_32 = arith.constant 0 : index
      %c0_33 = arith.constant 0 : index
      %52 = vector.load %arg9[%c0_32, %c0_33] : memref<2x1xf32, #tpu.memory_space<vmem>>, vector<2x1xf32>
      tpu.vector_store %arg9[%c0_32, %c0_33], %51 {strides = array<i32>} : memref<2x1xf32, #tpu.memory_space<vmem>>, vector<2x1xf32>,
      %c0_i32_34 = arith.constant 0 : i32
      %53 = arith.cmpi eq, %arg1, %c0_i32_34 : i32
      %54 = arith.extui %53 : i1 to i32
      %c0_i32_35 = arith.constant 0 : i32
      %55 = arith.cmpi ne, %54, %c0_i32_35 : i32
      scf.if %55 {
        %c0_36 = arith.constant 0 : index
        %c0_37 = arith.constant 0 : index
        %56 = vector.load %arg9[%c0_36, %c0_37] : memref<2x1xf32, #tpu.memory_space<vmem>>, vector<2x1xf32>
        %c0_38 = arith.constant 0 : index
        %c0_39 = arith.constant 0 : index
        %57 = vector.load %arg8[%c0_38, %c0_39] : memref<1x1xf32, #tpu.memory_space<vmem>>, vector<1x1xf32>
        %58 = vector.broadcast %57 : vector<1x1xf32> to vector<2x1xf32>
        %59 = arith.addf %56, %58 : vector<2x1xf32>
        %60 = arith.negf %59 : vector<2x1xf32>
        %61 = math.exp %60 : vector<2x1xf32>
        %cst_40 = arith.constant 1.000000e+00 : f32
        %62 = vector.broadcast %cst_40 : f32 to vector<2x1xf32>
        %63 = arith.addf %62, %61 : vector<2x1xf32>
        %64 = arith.divf %62, %63 : vector<2x1xf32>
        %c0_41 = arith.constant 0 : index
        %c0_42 = arith.constant 0 : index
        %65 = vector.load %arg9[%c0_41, %c0_42] : memref<2x1xf32, #tpu.memory_space<vmem>>, vector<2x1xf32>
        tpu.vector_store %arg9[%c0_41, %c0_42], %64 {strides = array<i32>} : memref<2x1xf32, #tpu.memory_space<vmem>>, vector<2x1xf32>,
      } else {
      }
    } else {
    }
    return
  }
  func.func @transform_0(%arg0: i32, %arg1: i32) -> (i32, i32) {
    %c0_i32 = arith.constant 0 : i32
    %c0_i32_0 = arith.constant 0 : i32
    return %arg1, %c0_i32 : i32, i32
  }
  func.func @transform_1(%arg0: i32, %arg1: i32) -> (i32, i32) {
    %c0_i32 = arith.constant 0 : i32
    %c0_i32_0 = arith.constant 0 : i32
    %c0_i32_1 = arith.constant 0 : i32
    return %c0_i32, %c0_i32_0 : i32, i32
  }
  func.func @transform_2(%arg0: i32, %arg1: i32) -> (i32, i32) {
    %c0_i32 = arith.constant 0 : i32
    %c0_i32_0 = arith.constant 0 : i32
    %c0_i32_1 = arith.constant 0 : i32
    return %c0_i32, %c0_i32_0 : i32, i32
  }
  func.func @transform_3(%arg0: i32, %arg1: i32) -> (i32, i32) {
    %c0_i32 = arith.constant 0 : i32
    %c0_i32_0 = arith.constant 0 : i32
    %c0_i32_1 = arith.constant 0 : i32
    return %c0_i32, %c0_i32_0 : i32, i32
  }
  func.func @transform_4(%arg0: i32, %arg1: i32) -> (i32, i32) {
    %c0_i32 = arith.constant 0 : i32
    %c0_i32_0 = arith.constant 0 : i32
    return %arg1, %c0_i32 : i32, i32
  }
  func.func @transform_5(%arg0: i32, %arg1: i32) -> (i32, i32) {
    %c0_i32 = arith.constant 0 : i32
    %c0_i32_0 = arith.constant 0 : i32
    return %c0_i32, %arg1 : i32, i32
  }
  func.func @transform_6(%arg0: i32, %arg1: i32) -> (i32, i32) {
    %c0_i32 = arith.constant 0 : i32
    %c0_i32_0 = arith.constant 0 : i32
    %c0_i32_1 = arith.constant 0 : i32
    return %c0_i32, %c0_i32_0 : i32, i32
  }
  func.func @transform_7(%arg0: i32, %arg1: i32) -> (i32, i32) {
    %c0_i32 = arith.constant 0 : i32
    %c0_i32_0 = arith.constant 0 : i32
    %c0_i32_1 = arith.constant 0 : i32
    return %c0_i32, %c0_i32_0 : i32, i32
  }
}

</mosaic_0001>

<llo_original>
// kernel: discriminator_forward.4
$region0: #{discriminator_forward.4}
  #allocation0 [shape = 'u32[]', space=smem, size = 0x4, offset = 0x4, fixed_abs, tag = 'smem constant byte address 0x4 - core index']
  #allocation1 [shape = 'u32[144,128]{1,0:T(1,128)}', space=vmem, size = 0x12000, scoped, tag = 'internal scratch']
  %s0 = inlined_call_operand.vmem [shape: bf16[2048,128], index: 0, kind: input, shape index: {}]
  %s1 = inlined_call_operand.vmem [shape: bf16[128,8], index: 1, kind: input, shape index: {}]
  %s2 = inlined_call_operand.vmem [shape: f32[1,8], index: 2, kind: input, shape index: {}]
  %s3 = inlined_call_operand.vmem [shape: bf16[2048,8], index: 3, kind: output, shape index: {}]
  %s4 = sld [smem:[#allocation0]]
  $region45: #{discriminator_forward.4} parent=0
    _
  %s6 = ssub.s32 1, %s4
  %s7 = scalar_select 0, %s6, %s4
  loop: start=0, step=1, limit=4
  $region2: #{discriminator_forward.4} parent=0 // loop_pre_header
    _
  $region3: #{discriminator_forward.4} parent=0 // loop_header
    %s9 = sphi 0, %s13
    %p10 = scmp.ge.s32.totalorder %s9, 4
    %s19 = sphi 0, %s21
    %s22 = sphi 0, %s19
    %s23 = sphi 0, %s22
    %s39 = sphi 0, %s23
    %s43 = sphi 0, %s43
    %s45 = sphi 0, %s43
    %s46 = sphi 0, %s45
    %s60 = sphi 0, %s46
    %s64 = sphi 0, %s64
    %s66 = sphi 0, %s64
    %s67 = sphi 0, %s66
    %s81 = sphi 0, %s67
    %s87 = sphi 0, %s89
    %s90 = sphi 0, %s87
    %s91 = sphi 0, %s90
    %s107 = sphi 0, %s91
  $region4: #{discriminator_forward.4} parent=0 // loop_header_branch
    %12 = sbr.rel (%p10) target = $region8
  $region5: #{discriminator_forward.4} parent=0 // loop_body
    %s14 = ssub.s32 %s9, 1
    %s15 = ssub.s32 %s9, 2
    %s16 = sadd.s32 %s9, 1
    %s17 = ssub.s32 %s9, %s16
    %p18 = scmp.eq.s32.totalorder %s17, 0
    %s20 = sadd.s32 %s19, 1
    %s21 = scalar_select %p18, %s19, %s20
    %p24 = pneg %p18
    %p25 = scmp.eq.s32.totalorder %s9, 1
    %p26 = por %p24, %p25
    %p27 = scmp.ne.s32.totalorder %s19, %s22
    %p28 = scmp.eq.s32.totalorder %s9, 0
    %p29 = por %p27, %p28
    %p30 = scmp.ne.s32.totalorder %s19, %s22
    %p31 = scmp.eq.s32.totalorder %s14, 1
    %p32 = por %p30, %p31
    %p33 = scmp.ne.s32.totalorder %s22, %s23
    %p34 = scmp.eq.s32.totalorder %s14, 0
    %p35 = por %p33, %p34
    %p36 = scmp.ne.s32.totalorder %s22, %s23
    %p37 = scmp.eq.s32.totalorder %s15, 1
    %p38 = por %p36, %p37
    %p40 = scmp.ne.s32.totalorder %s23, %s39
    %p41 = scmp.eq.s32.totalorder %s15, 0
    %p42 = por %p40, %p41
    %s44 = sadd.s32 %s43, 1
    %p47 = scmp.eq.s32.totalorder %s9, 1
    %p48 = scmp.ne.s32.totalorder %s43, %s45
    %p49 = scmp.eq.s32.totalorder %s9, 0
    %p50 = por %p48, %p49
    %p51 = scmp.ne.s32.totalorder %s43, %s45
    %p52 = scmp.eq.s32.totalorder %s14, 1
    %p53 = por %p51, %p52
    %p54 = scmp.ne.s32.totalorder %s45, %s46
    %p55 = scmp.eq.s32.totalorder %s14, 0
    %p56 = por %p54, %p55
    %p57 = scmp.ne.s32.totalorder %s45, %s46
    %p58 = scmp.eq.s32.totalorder %s15, 1
    %p59 = por %p57, %p58
    %p61 = scmp.ne.s32.totalorder %s46, %s60
    %p62 = scmp.eq.s32.totalorder %s15, 0
    %p63 = por %p61, %p62
    %s65 = sadd.s32 %s64, 1
    %p68 = scmp.eq.s32.totalorder %s9, 1
    %p69 = scmp.ne.s32.totalorder %s64, %s66
    %p70 = scmp.eq.s32.totalorder %s9, 0
    %p71 = por %p69, %p70
    %p72 = scmp.ne.s32.totalorder %s64, %s66
    %p73 = scmp.eq.s32.totalorder %s14, 1
    %p74 = por %p72, %p73
    %p75 = scmp.ne.s32.totalorder %s66, %s67
    %p76 = scmp.eq.s32.totalorder %s14, 0
    %p77 = por %p75, %p76
    %p78 = scmp.ne.s32.totalorder %s66, %s67
    %p79 = scmp.eq.s32.totalorder %s15, 1
    %p80 = por %p78, %p79
    %p82 = scmp.ne.s32.totalorder %s67, %s81
    %p83 = scmp.eq.s32.totalorder %s15, 0
    %p84 = por %p82, %p83
    %s85 = ssub.s32 %s9, %s16
    %p86 = scmp.eq.s32.totalorder %s85, 0
    %s88 = sadd.s32 %s87, 1
    %s89 = scalar_select %p86, %s87, %s88
    %p92 = pneg %p86
    %p93 = scmp.eq.s32.totalorder %s9, 1
    %p94 = por %p92, %p93
    %p95 = scmp.ne.s32.totalorder %s87, %s90
    %p96 = scmp.eq.s32.totalorder %s9, 0
    %p97 = por %p95, %p96
    %p98 = scmp.ne.s32.totalorder %s87, %s90
    %p99 = scmp.eq.s32.totalorder %s14, 1
    %p100 = por %p98, %p99
    %p101 = scmp.ne.s32.totalorder %s90, %s91
    %p102 = scmp.eq.s32.totalorder %s14, 0
    %p103 = por %p101, %p102
    %p104 = scmp.ne.s32.totalorder %s90, %s91
    %p105 = scmp.eq.s32.totalorder %s15, 1
    %p106 = por %p104, %p105
    %p108 = scmp.ne.s32.totalorder %s91, %s107
    %p109 = scmp.eq.s32.totalorder %s15, 0
    %p110 = por %p108, %p109
    %p111 = scmp.le.s32.totalorder 1, %s9
    %p112 = scmp.lt.s32.totalorder %s9, 3
    %p113 = pnand %p111, %p112
    %p114 = pneg %p113
    // Predicated region
    $region9: #{discriminator_forward.4} parent=5 // pred_check
      _
    $region10: #{discriminator_forward.4} parent=5 // pred_check_branch
      %116 = sbr.rel (%p113) target = $region12
    $region11: #{discriminator_forward.4} parent=5 // pred_region
      %s117 = ssub.s32 %s9, 1
      // Predicated region
      $region13: #{discriminator_forward.4} parent=11 // pred_check
        %p118 = pneg %p56
      $region14: #{discriminator_forward.4} parent=11 // pred_check_branch
        %120 = sbr.rel (%p118) target = $region16
      $region15: #{discriminator_forward.4} parent=11 // pred_region
        _
      $region16: #{discriminator_forward.4} parent=11 // pred_fallthru
        _
      // Predicated region
      $region17: #{discriminator_forward.4} parent=11 // pred_check
        %p121 = pneg %p77
      $region18: #{discriminator_forward.4} parent=11 // pred_check_branch
        %123 = sbr.rel (%p121) target = $region20
      $region19: #{discriminator_forward.4} parent=11 // pred_region
        _
      $region20: #{discriminator_forward.4} parent=11 // pred_fallthru
        _
    $region12: #{discriminator_forward.4} parent=5 // pred_fallthru
      _
    %p124 = scmp.lt.s32.totalorder %s9, 2
    // Predicated region
    $region21: #{discriminator_forward.4} parent=5 // pred_check
      %p125 = pneg %p124
    $region22: #{discriminator_forward.4} parent=5 // pred_check_branch
      %127 = sbr.rel (%p125) target = $region24
    $region23: #{discriminator_forward.4} parent=5 // pred_region
      // Predicated region
      $region25: #{discriminator_forward.4} parent=23 // pred_check
        %p128 = pneg %p29
      $region26: #{discriminator_forward.4} parent=23 // pred_check_branch
        %130 = sbr.rel (%p128) target = $region28
      $region27: #{discriminator_forward.4} parent=23 // pred_region
        %s131 = smul.u32 128, %s9
        %p132 = scmp.lt.s32.totalorder %s131, 255
        %s133 = scalar_select %p132, %s131, 255
        %s134 = smul.addr %s133, 4
        %s135 = scalar_lea.vmem %s0, %s134
        %s136 = smul.u32 128, %s9
      $region28: #{discriminator_forward.4} parent=23 // pred_fallthru
        _
    $region24: #{discriminator_forward.4} parent=5 // pred_fallthru
      _
    %p137 = scmp.le.s32.totalorder 1, %s9
    %p138 = scmp.lt.s32.totalorder %s9, 3
    %p139 = pnand %p137, %p138
    %p140 = pneg %p139
    // Predicated region
    $region29: #{discriminator_forward.4} parent=5 // pred_check
      _
    $region30: #{discriminator_forward.4} parent=5 // pred_check_branch
      %142 = sbr.rel (%p139) target = $region32
    $region31: #{discriminator_forward.4} parent=5 // pred_region
      %s143 = ssub.s32 %s9, 1
      %s144 = smul.u32 128, %s14
      %p145 = scmp.lt.s32.totalorder %s144, 255
      %s146 = scalar_select %p145, %s144, 255
      %s147 = smul.addr %s146, 4
      %s148 = scalar_lea.vmem %s0, %s147
      %p149 = pneg %p35
      %p150 = pneg %p32
      %p151 = pneg %p56
      %p152 = pneg %p53
      %p153 = pneg %p77
      %p154 = pneg %p74
      %p155 = pneg %p103
      %p156 = pneg %p100
      %s157 = smul.u32 128, %s14
      %p158 = scmp.lt.s32.totalorder %s157, 255
      %s159 = scalar_select %p158, %s157, 255
      %s160 = smul.addr %s159, 4
      %s161 = scalar_lea.vmem %s3, %s160
      %s162 = smul.u32 128, %s14
      %p163 = scmp.lt.s32.totalorder %s162, 255
      %s164 = scalar_select %p163, %s162, 255
      %s165 = smul.addr %s164, 4
      %s166 = scalar_lea.vmem %s0, %s165
      %s167 = smul.u32 128, %s14
      %s168 = smul.u32 128, %s14
      %p169 = scmp.lt.s32.totalorder %s168, 255
      %s170 = scalar_select %p169, %s168, 255
      %s171 = smul.addr %s170, 4
      %s172 = scalar_lea.vmem %s3, %s171
      %s173 = smul.u32 128, %s14
      %v175 = vld [vmem:[%s166] sm:$0xf]
      %v176 = vld [vmem:[%s166 + $0x4] sm:$0xf]
      %v177 = vld [vmem:[%s166 + $0x8] sm:$0xf]
      %v178 = vld [vmem:[%s166 + $0xc] sm:$0xf]
      %v179 = vld [vmem:[%s166 + $0x10] sm:$0xf]
      %v180 = vld [vmem:[%s166 + $0x14] sm:$0xf]
      %v181 = vld [vmem:[%s166 + $0x18] sm:$0xf]
      %v182 = vld [vmem:[%s166 + $0x1c] sm:$0xf]
      %v183 = vld [vmem:[%s166 + $0x20] sm:$0xf]
      %v184 = vld [vmem:[%s166 + $0x24] sm:$0xf]
      %v185 = vld [vmem:[%s166 + $0x28] sm:$0xf]
      %v186 = vld [vmem:[%s166 + $0x2c] sm:$0xf]
      %v187 = vld [vmem:[%s166 + $0x30] sm:$0xf]
      %v188 = vld [vmem:[%s166 + $0x34] sm:$0xf]
      %v189 = vld [vmem:[%s166 + $0x38] sm:$0xf]
      %v190 = vld [vmem:[%s166 + $0x3c] sm:$0xf]
      %v191 = vld [vmem:[%s166 + $0x40] sm:$0xf]
      %v192 = vld [vmem:[%s166 + $0x44] sm:$0xf]
      %v193 = vld [vmem:[%s166 + $0x48] sm:$0xf]
      %v194 = vld [vmem:[%s166 + $0x4c] sm:$0xf]
      %v195 = vld [vmem:[%s166 + $0x50] sm:$0xf]
      %v196 = vld [vmem:[%s166 + $0x54] sm:$0xf]
      %v197 = vld [vmem:[%s166 + $0x58] sm:$0xf]
      %v198 = vld [vmem:[%s166 + $0x5c] sm:$0xf]
      %v199 = vld [vmem:[%s166 + $0x60] sm:$0xf]
      %v200 = vld [vmem:[%s166 + $0x64] sm:$0xf]
      %v201 = vld [vmem:[%s166 + $0x68] sm:$0xf]
      %v202 = vld [vmem:[%s166 + $0x6c] sm:$0xf]
      %v203 = vld [vmem:[%s166 + $0x70] sm:$0xf]
      %v204 = vld [vmem:[%s166 + $0x74] sm:$0xf]
      %v205 = vld [vmem:[%s166 + $0x78] sm:$0xf]
      %v206 = vld [vmem:[%s166 + $0x7c] sm:$0xf]
      %v207 = vld [vmem:[%s166 + $0x80] sm:$0xf]
      %v208 = vld [vmem:[%s166 + $0x84] sm:$0xf]
      %v209 = vld [vmem:[%s166 + $0x88] sm:$0xf]
      %v210 = vld [vmem:[%s166 + $0x8c] sm:$0xf]
      %v211 = vld [vmem:[%s166 + $0x90] sm:$0xf]
      %v212 = vld [vmem:[%s166 + $0x94] sm:$0xf]
      %v213 = vld [vmem:[%s166 + $0x98] sm:$0xf]
      %v214 = vld [vmem:[%s166 + $0x9c] sm:$0xf]
      %v215 = vld [vmem:[%s166 + $0xa0] sm:$0xf]
      %v216 = vld [vmem:[%s166 + $0xa4] sm:$0xf]
      %v217 = vld [vmem:[%s166 + $0xa8] sm:$0xf]
      %v218 = vld [vmem:[%s166 + $0xac] sm:$0xf]
      %v219 = vld [vmem:[%s166 + $0xb0] sm:$0xf]
      %v220 = vld [vmem:[%s166 + $0xb4] sm:$0xf]
      %v221 = vld [vmem:[%s166 + $0xb8] sm:$0xf]
      %v222 = vld [vmem:[%s166 + $0xbc] sm:$0xf]
      %v223 = vld [vmem:[%s166 + $0xc0] sm:$0xf]
      %v224 = vld [vmem:[%s166 + $0xc4] sm:$0xf]
      %v225 = vld [vmem:[%s166 + $0xc8] sm:$0xf]
      %v226 = vld [vmem:[%s166 + $0xcc] sm:$0xf]
      %v227 = vld [vmem:[%s166 + $0xd0] sm:$0xf]
      %v228 = vld [vmem:[%s166 + $0xd4] sm:$0xf]
      %v229 = vld [vmem:[%s166 + $0xd8] sm:$0xf]
      %v230 = vld [vmem:[%s166 + $0xdc] sm:$0xf]
      %v231 = vld [vmem:[%s166 + $0xe0] sm:$0xf]
      %v232 = vld [vmem:[%s166 + $0xe4] sm:$0xf]
      %v233 = vld [vmem:[%s166 + $0xe8] sm:$0xf]
      %v234 = vld [vmem:[%s166 + $0xec] sm:$0xf]
      %v235 = vld [vmem:[%s166 + $0xf0] sm:$0xf]
      %v236 = vld [vmem:[%s166 + $0xf4] sm:$0xf]
      %v237 = vld [vmem:[%s166 + $0xf8] sm:$0xf]
      %v238 = vld [vmem:[%s166 + $0xfc] sm:$0xf]
      %v239 = vld [vmem:[%s166 + $0x100] sm:$0xf]
      %v240 = vld [vmem:[%s166 + $0x104] sm:$0xf]
      %v241 = vld [vmem:[%s166 + $0x108] sm:$0xf]
      %v242 = vld [vmem:[%s166 + $0x10c] sm:$0xf]
      %v243 = vld [vmem:[%s166 + $0x110] sm:$0xf]
      %v244 = vld [vmem:[%s166 + $0x114] sm:$0xf]
      %v245 = vld [vmem:[%s166 + $0x118] sm:$0xf]
      %v246 = vld [vmem:[%s166 + $0x11c] sm:$0xf]
      %v247 = vld [vmem:[%s166 + $0x120] sm:$0xf]
      %v248 = vld [vmem:[%s166 + $0x124] sm:$0xf]
      %v249 = vld [vmem:[%s166 + $0x128] sm:$0xf]
      %v250 = vld [vmem:[%s166 + $0x12c] sm:$0xf]
      %v251 = vld [vmem:[%s166 + $0x130] sm:$0xf]
      %v252 = vld [vmem:[%s166 + $0x134] sm:$0xf]
      %v253 = vld [vmem:[%s166 + $0x138] sm:$0xf]
      %v254 = vld [vmem:[%s166 + $0x13c] sm:$0xf]
      %v255 = vld [vmem:[%s166 + $0x140] sm:$0xf]
      %v256 = vld [vmem:[%s166 + $0x144] sm:$0xf]
      %v257 = vld [vmem:[%s166 + $0x148] sm:$0xf]
      %v258 = vld [vmem:[%s166 + $0x14c] sm:$0xf]
      %v259 = vld [vmem:[%s166 + $0x150] sm:$0xf]
      %v260 = vld [vmem:[%s166 + $0x154] sm:$0xf]
      %v261 = vld [vmem:[%s166 + $0x158] sm:$0xf]
      %v262 = vld [vmem:[%s166 + $0x15c] sm:$0xf]
      %v263 = vld [vmem:[%s166 + $0x160] sm:$0xf]
      %v264 = vld [vmem:[%s166 + $0x164] sm:$0xf]
      %v265 = vld [vmem:[%s166 + $0x168] sm:$0xf]
      %v266 = vld [vmem:[%s166 + $0x16c] sm:$0xf]
      %v267 = vld [vmem:[%s166 + $0x170] sm:$0xf]
      %v268 = vld [vmem:[%s166 + $0x174] sm:$0xf]
      %v269 = vld [vmem:[%s166 + $0x178] sm:$0xf]
      %v270 = vld [vmem:[%s166 + $0x17c] sm:$0xf]
      %v271 = vld [vmem:[%s166 + $0x180] sm:$0xf]
      %v272 = vld [vmem:[%s166 + $0x184] sm:$0xf]
      %v273 = vld [vmem:[%s166 + $0x188] sm:$0xf]
      %v274 = vld [vmem:[%s166 + $0x18c] sm:$0xf]
      %v275 = vld [vmem:[%s166 + $0x190] sm:$0xf]
      %v276 = vld [vmem:[%s166 + $0x194] sm:$0xf]
      %v277 = vld [vmem:[%s166 + $0x198] sm:$0xf]
      %v278 = vld [vmem:[%s166 + $0x19c] sm:$0xf]
      %v279 = vld [vmem:[%s166 + $0x1a0] sm:$0xf]
      %v280 = vld [vmem:[%s166 + $0x1a4] sm:$0xf]
      %v281 = vld [vmem:[%s166 + $0x1a8] sm:$0xf]
      %v282 = vld [vmem:[%s166 + $0x1ac] sm:$0xf]
      %v283 = vld [vmem:[%s166 + $0x1b0] sm:$0xf]
      %v284 = vld [vmem:[%s166 + $0x1b4] sm:$0xf]
      %v285 = vld [vmem:[%s166 + $0x1b8] sm:$0xf]
      %v286 = vld [vmem:[%s166 + $0x1bc] sm:$0xf]
      %v287 = vld [vmem:[%s166 + $0x1c0] sm:$0xf]
      %v288 = vld [vmem:[%s166 + $0x1c4] sm:$0xf]
      %v289 = vld [vmem:[%s166 + $0x1c8] sm:$0xf]
      %v290 = vld [vmem:[%s166 + $0x1cc] sm:$0xf]
      %v291 = vld [vmem:[%s166 + $0x1d0] sm:$0xf]
      %v292 = vld [vmem:[%s166 + $0x1d4] sm:$0xf]
      %v293 = vld [vmem:[%s166 + $0x1d8] sm:$0xf]
      %v294 = vld [vmem:[%s166 + $0x1dc] sm:$0xf]
      %v295 = vld [vmem:[%s166 + $0x1e0] sm:$0xf]
      %v296 = vld [vmem:[%s166 + $0x1e4] sm:$0xf]
      %v297 = vld [vmem:[%s166 + $0x1e8] sm:$0xf]
      %v298 = vld [vmem:[%s166 + $0x1ec] sm:$0xf]
      %v299 = vld [vmem:[%s166 + $0x1f0] sm:$0xf]
      %v300 = vld [vmem:[%s166 + $0x1f4] sm:$0xf]
      %v301 = vld [vmem:[%s166 + $0x1f8] sm:$0xf]
      %v302 = vld [vmem:[%s166 + $0x1fc] sm:$0xf]
      %v303 = vld [vmem:[%s1] sm:$0xf]
      %v304 = vld [vmem:[%s1 + $0x4] sm:$0xf]
      %v305 = vld [vmem:[%s1 + $0x8] sm:$0xf]
      %v306 = vld [vmem:[%s1 + $0xc] sm:$0xf]
      %v307 = vld [vmem:[%s1 + $0x10] sm:$0xf]
      %v308 = vld [vmem:[%s1 + $0x14] sm:$0xf]
      %v309 = vld [vmem:[%s1 + $0x18] sm:$0xf]
      %v310 = vld [vmem:[%s1 + $0x1c] sm:$0xf]
      %v311 = vld [vmem:[%s1 + $0x20] sm:$0xf]
      %v312 = vld [vmem:[%s1 + $0x24] sm:$0xf]
      %v313 = vld [vmem:[%s1 + $0x28] sm:$0xf]
      %v314 = vld [vmem:[%s1 + $0x2c] sm:$0xf]
      %v315 = vld [vmem:[%s1 + $0x30] sm:$0xf]
      %v316 = vld [vmem:[%s1 + $0x34] sm:$0xf]
      %v317 = vld [vmem:[%s1 + $0x38] sm:$0xf]
      %v318 = vld [vmem:[%s1 + $0x3c] sm:$0xf]
      %v319 = vld [vmem:[%s2] sm:$0x1]
      %v321 = vlaneseq
      %v322 = vshrl.u32 %v321, 7
      %v323 = vsub.s32 0, %v322
      %v324 = vrot.slane %v319, %v323
      %v454 = vunpack.c.l.b16 %v175
      %v455 = vunpack.c.l.b16 %v176
      %v456 = vunpack.c.l.b16 %v177
      %v457 = vunpack.c.l.b16 %v178
      %v458 = vunpack.c.l.b16 %v179
      %v459 = vunpack.c.l.b16 %v180
      %v460 = vunpack.c.l.b16 %v181
      %v461 = vunpack.c.l.b16 %v182
      %v462 = vunpack.c.l.b16 %v183
      %v463 = vunpack.c.l.b16 %v184
      %v464 = vunpack.c.l.b16 %v185
      %v465 = vunpack.c.l.b16 %v186
      %v466 = vunpack.c.l.b16 %v187
      %v467 = vunpack.c.l.b16 %v188
      %v468 = vunpack.c.l.b16 %v189
      %v469 = vunpack.c.l.b16 %v190
      %v470 = vunpack.c.l.b16 %v191
      %v471 = vunpack.c.l.b16 %v192
      %v472 = vunpack.c.l.b16 %v193
      %v473 = vunpack.c.l.b16 %v194
      %v474 = vunpack.c.l.b16 %v195
      %v475 = vunpack.c.l.b16 %v196
      %v476 = vunpack.c.l.b16 %v197
      %v477 = vunpack.c.l.b16 %v198
      %v478 = vunpack.c.l.b16 %v199
      %v479 = vunpack.c.l.b16 %v200
      %v480 = vunpack.c.l.b16 %v201
      %v481 = vunpack.c.l.b16 %v202
      %v482 = vunpack.c.l.b16 %v203
      %v483 = vunpack.c.l.b16 %v204
      %v484 = vunpack.c.l.b16 %v205
      %v485 = vunpack.c.l.b16 %v206
      %v486 = vunpack.c.l.b16 %v207
      %v487 = vunpack.c.l.b16 %v208
      %v488 = vunpack.c.l.b16 %v209
      %v489 = vunpack.c.l.b16 %v210
      %v490 = vunpack.c.l.b16 %v211
      %v491 = vunpack.c.l.b16 %v212
      %v492 = vunpack.c.l.b16 %v213
      %v493 = vunpack.c.l.b16 %v214
      %v494 = vunpack.c.l.b16 %v215
      %v495 = vunpack.c.l.b16 %v216
      %v496 = vunpack.c.l.b16 %v217
      %v497 = vunpack.c.l.b16 %v218
      %v498 = vunpack.c.l.b16 %v219
      %v499 = vunpack.c.l.b16 %v220
      %v500 = vunpack.c.l.b16 %v221
      %v501 = vunpack.c.l.b16 %v222
      %v502 = vunpack.c.l.b16 %v223
      %v503 = vunpack.c.l.b16 %v224
      %v504 = vunpack.c.l.b16 %v225
      %v505 = vunpack.c.l.b16 %v226
      %v506 = vunpack.c.l.b16 %v227
      %v507 = vunpack.c.l.b16 %v228
      %v508 = vunpack.c.l.b16 %v229
      %v509 = vunpack.c.l.b16 %v230
      %v510 = vunpack.c.l.b16 %v231
      %v511 = vunpack.c.l.b16 %v232
      %v512 = vunpack.c.l.b16 %v233
      %v513 = vunpack.c.l.b16 %v234
      %v514 = vunpack.c.l.b16 %v235
      %v515 = vunpack.c.l.b16 %v236
      %v516 = vunpack.c.l.b16 %v237
      %v517 = vunpack.c.l.b16 %v238
      %v518 = vunpack.c.l.b16 %v239
      %v519 = vunpack.c.l.b16 %v240
      %v520 = vunpack.c.l.b16 %v241
      %v521 = vunpack.c.l.b16 %v242
      %v522 = vunpack.c.l.b16 %v243
      %v523 = vunpack.c.l.b16 %v244
      %v524 = vunpack.c.l.b16 %v245
      %v525 = vunpack.c.l.b16 %v246
      %v526 = vunpack.c.l.b16 %v247
      %v527 = vunpack.c.l.b16 %v248
      %v528 = vunpack.c.l.b16 %v249
      %v529 = vunpack.c.l.b16 %v250
      %v530 = vunpack.c.l.b16 %v251
      %v531 = vunpack.c.l.b16 %v252
      %v532 = vunpack.c.l.b16 %v253
      %v533 = vunpack.c.l.b16 %v254
      %v534 = vunpack.c.l.b16 %v255
      %v535 = vunpack.c.l.b16 %v256
      %v536 = vunpack.c.l.b16 %v257
      %v537 = vunpack.c.l.b16 %v258
      %v538 = vunpack.c.l.b16 %v259
      %v539 = vunpack.c.l.b16 %v260
      %v540 = vunpack.c.l.b16 %v261
      %v541 = vunpack.c.l.b16 %v262
      %v542 = vunpack.c.l.b16 %v263
      %v543 = vunpack.c.l.b16 %v264
      %v544 = vunpack.c.l.b16 %v265
      %v545 = vunpack.c.l.b16 %v266
      %v546 = vunpack.c.l.b16 %v267
      %v547 = vunpack.c.l.b16 %v268
      %v548 = vunpack.c.l.b16 %v269
      %v549 = vunpack.c.l.b16 %v270
      %v550 = vunpack.c.l.b16 %v271
      %v551 = vunpack.c.l.b16 %v272
      %v552 = vunpack.c.l.b16 %v273
      %v553 = vunpack.c.l.b16 %v274
      %v554 = vunpack.c.l.b16 %v275
      %v555 = vunpack.c.l.b16 %v276
      %v556 = vunpack.c.l.b16 %v277
      %v557 = vunpack.c.l.b16 %v278
      %v558 = vunpack.c.l.b16 %v279
      %v559 = vunpack.c.l.b16 %v280
      %v560 = vunpack.c.l.b16 %v281
      %v561 = vunpack.c.l.b16 %v282
      %v562 = vunpack.c.l.b16 %v283
      %v563 = vunpack.c.l.b16 %v284
      %v564 = vunpack.c.l.b16 %v285
      %v565 = vunpack.c.l.b16 %v286
      %v566 = vunpack.c.l.b16 %v287
      %v567 = vunpack.c.l.b16 %v288
      %v568 = vunpack.c.l.b16 %v289
      %v569 = vunpack.c.l.b16 %v290
      %v570 = vunpack.c.l.b16 %v291
      %v571 = vunpack.c.l.b16 %v292
      %v572 = vunpack.c.l.b16 %v293
      %v573 = vunpack.c.l.b16 %v294
      %v574 = vunpack.c.l.b16 %v295
      %v575 = vunpack.c.l.b16 %v296
      %v576 = vunpack.c.l.b16 %v297
      %v577 = vunpack.c.l.b16 %v298
      %v578 = vunpack.c.l.b16 %v299
      %v579 = vunpack.c.l.b16 %v300
      %v580 = vunpack.c.l.b16 %v301
      %v581 = vunpack.c.l.b16 %v302
      %v582 = vpack.c.b16 %v455, %v454
      %v583 = vpack.c.b16 %v457, %v456
      %v584 = vpack.c.b16 %v459, %v458
      %v585 = vpack.c.b16 %v461, %v460
      %v586 = vpack.c.b16 %v463, %v462
      %v587 = vpack.c.b16 %v465, %v464
      %v588 = vpack.c.b16 %v467, %v466
      %v589 = vpack.c.b16 %v469, %v468
      %v590 = vpack.c.b16 %v471, %v470
      %v591 = vpack.c.b16 %v473, %v472
      %v592 = vpack.c.b16 %v475, %v474
      %v593 = vpack.c.b16 %v477, %v476
      %v594 = vpack.c.b16 %v479, %v478
      %v595 = vpack.c.b16 %v481, %v480
      %v596 = vpack.c.b16 %v483, %v482
      %v597 = vpack.c.b16 %v485, %v484
      %v598 = vpack.c.b16 %v487, %v486
      %v599 = vpack.c.b16 %v489, %v488
      %v600 = vpack.c.b16 %v491, %v490
      %v601 = vpack.c.b16 %v493, %v492
      %v602 = vpack.c.b16 %v495, %v494
      %v603 = vpack.c.b16 %v497, %v496
      %v604 = vpack.c.b16 %v499, %v498
      %v605 = vpack.c.b16 %v501, %v500
      %v606 = vpack.c.b16 %v503, %v502
      %v607 = vpack.c.b16 %v505, %v504
      %v608 = vpack.c.b16 %v507, %v506
      %v609 = vpack.c.b16 %v509, %v508
      %v610 = vpack.c.b16 %v511, %v510
      %v611 = vpack.c.b16 %v513, %v512
      %v612 = vpack.c.b16 %v515, %v514
      %v613 = vpack.c.b16 %v517, %v516
      %v614 = vpack.c.b16 %v519, %v518
      %v615 = vpack.c.b16 %v521, %v520
      %v616 = vpack.c.b16 %v523, %v522
      %v617 = vpack.c.b16 %v525, %v524
      %v618 = vpack.c.b16 %v527, %v526
      %v619 = vpack.c.b16 %v529, %v528
      %v620 = vpack.c.b16 %v531, %v530
      %v621 = vpack.c.b16 %v533, %v532
      %v622 = vpack.c.b16 %v535, %v534
      %v623 = vpack.c.b16 %v537, %v536
      %v624 = vpack.c.b16 %v539, %v538
      %v625 = vpack.c.b16 %v541, %v540
      %v626 = vpack.c.b16 %v543, %v542
      %v627 = vpack.c.b16 %v545, %v544
      %v628 = vpack.c.b16 %v547, %v546
      %v629 = vpack.c.b16 %v549, %v548
      %v630 = vpack.c.b16 %v551, %v550
      %v631 = vpack.c.b16 %v553, %v552
      %v632 = vpack.c.b16 %v555, %v554
      %v633 = vpack.c.b16 %v557, %v556
      %v634 = vpack.c.b16 %v559, %v558
      %v635 = vpack.c.b16 %v561, %v560
      %v636 = vpack.c.b16 %v563, %v562
      %v637 = vpack.c.b16 %v565, %v564
      %v638 = vpack.c.b16 %v567, %v566
      %v639 = vpack.c.b16 %v569, %v568
      %v640 = vpack.c.b16 %v571, %v570
      %v641 = vpack.c.b16 %v573, %v572
      %v642 = vpack.c.b16 %v575, %v574
      %v643 = vpack.c.b16 %v577, %v576
      %v644 = vpack.c.b16 %v579, %v578
      %v645 = vpack.c.b16 %v581, %v580
      %v726 = vunpack.c.l.b16 %v303
      %v727 = vunpack.c.l.b16 %v304
      %v728 = vunpack.c.l.b16 %v305
      %v729 = vunpack.c.l.b16 %v306
      %v730 = vunpack.c.l.b16 %v307
      %v731 = vunpack.c.l.b16 %v308
      %v732 = vunpack.c.l.b16 %v309
      %v733 = vunpack.c.l.b16 %v310
      %v734 = vunpack.c.l.b16 %v311
      %v735 = vunpack.c.l.b16 %v312
      %v736 = vunpack.c.l.b16 %v313
      %v737 = vunpack.c.l.b16 %v314
      %v738 = vunpack.c.l.b16 %v315
      %v739 = vunpack.c.l.b16 %v316
      %v740 = vunpack.c.l.b16 %v317
      %v741 = vunpack.c.l.b16 %v318
      %v742 = vpack.c.b16 %v727, %v726
      %v743 = vpack.c.b16 %v729, %v728
      %v744 = vpack.c.b16 %v731, %v730
      %v745 = vpack.c.b16 %v733, %v732
      %v746 = vpack.c.b16 %v735, %v734
      %v747 = vpack.c.b16 %v737, %v736
      %v748 = vpack.c.b16 %v739, %v738
      %v749 = vpack.c.b16 %v741, %v740
      %758 = vmatprep.subr.bf16.mxu0 0
      %759 = vmatpush1.bf16.msra.mxu0 %v742
      %760 = vmatprep.subr.bf16.mxu0 0
      %761 = vmatpush1.bf16.msra.mxu0 %v743
      %762 = vmatprep.subr.bf16.mxu0 0
      %763 = vmatpush1.bf16.msra.mxu0 %v744
      %764 = vmatprep.subr.bf16.mxu0 0
      %765 = vmatpush1.bf16.msra.mxu0 %v745
      %766 = vmatprep.subr.bf16.mxu0 0
      %767 = vmatpush1.bf16.msra.mxu0 %v746
      %768 = vmatprep.subr.bf16.mxu0 0
      %769 = vmatpush1.bf16.msra.mxu0 %v747
      %770 = vmatprep.subr.bf16.mxu0 0
      %771 = vmatpush1.bf16.msra.mxu0 %v748
      %772 = vmatprep.subr.bf16.mxu0 0
      %773 = vmatpush1.bf16.msra.mxu0 %v749
      %774 = vmatprep.subr.bf16.mxu0 0
      %775 = vmatpush1.bf16.msra.mxu0 0
      %776 = vmatprep.subr.bf16.mxu0 0
      %777 = vmatpush1.bf16.msra.mxu0 0
      %778 = vmatprep.subr.bf16.mxu0 0
      %779 = vmatpush1.bf16.msra.mxu0 0
      %780 = vmatprep.subr.bf16.mxu0 0
      %781 = vmatpush1.bf16.msra.mxu0 0
      %782 = vmatprep.subr.bf16.mxu0 0
      %783 = vmatpush1.bf16.msra.mxu0 0
      %784 = vmatprep.subr.bf16.mxu0 0
      %785 = vmatpush1.bf16.msra.mxu0 0
      %786 = vmatprep.subr.bf16.mxu0 0
      %787 = vmatpush1.bf16.msra.mxu0 0
      %788 = vmatprep.subr.bf16.mxu0 0
      %789 = vmatpush1.bf16.msra.mxu0 0
      %790 = vmatprep.mubr.bf16.mxu0 0
      %791 = vmatmul.mubr.bf16.gmra.mrb[0].mxu0 %v582
      %v792 = vpop.f32.mrb[0].mxu0
      %v793 = vadd.f32 %v324, %v792
      %v794 = vpop.f32.mrb[0].mxu0
      %v795 = vpop.f32.mrb[0].mxu0
      %v796 = vadd.f32 %v324, %v795
      %v797 = vpop.f32.mrb[0].mxu0
      %798 = vmatprep.mubr.bf16.mxu0 0
      %799 = vmatmul.mubr.bf16.gmra.mrb[0].mxu0 %v583
      %v800 = vpop.f32.mrb[0].mxu0
      %v801 = vadd.f32 %v324, %v800
      %v802 = vpop.f32.mrb[0].mxu0
      %v803 = vpop.f32.mrb[0].mxu0
      %v804 = vadd.f32 %v324, %v803
      %v805 = vpop.f32.mrb[0].mxu0
      %806 = vmatprep.mubr.bf16.mxu0 0
      %807 = vmatmul.mubr.bf16.gmra.mrb[0].mxu0 %v584
      %v808 = vpop.f32.mrb[0].mxu0
      %v809 = vadd.f32 %v324, %v808
      %v810 = vpop.f32.mrb[0].mxu0
      %v811 = vpop.f32.mrb[0].mxu0
      %v812 = vadd.f32 %v324, %v811
      %v813 = vpop.f32.mrb[0].mxu0
      %814 = vmatprep.mubr.bf16.mxu0 0
      %815 = vmatmul.mubr.bf16.gmra.mrb[0].mxu0 %v585
      %v816 = vpop.f32.mrb[0].mxu0
      %v817 = vadd.f32 %v324, %v816
      %v818 = vpop.f32.mrb[0].mxu0
      %v819 = vpop.f32.mrb[0].mxu0
      %v820 = vadd.f32 %v324, %v819
      %v821 = vpop.f32.mrb[0].mxu0
      %822 = vmatprep.mubr.bf16.mxu0 0
      %823 = vmatmul.mubr.bf16.gmra.mrb[0].mxu0 %v586
      %v824 = vpop.f32.mrb[0].mxu0
      %v825 = vadd.f32 %v324, %v824
      %v826 = vpop.f32.mrb[0].mxu0
      %v827 = vpop.f32.mrb[0].mxu0
      %v828 = vadd.f32 %v324, %v827
      %v829 = vpop.f32.mrb[0].mxu0
      %830 = vmatprep.mubr.bf16.mxu0 0
      %831 = vmatmul.mubr.bf16.gmra.mrb[0].mxu0 %v587
      %v832 = vpop.f32.mrb[0].mxu0
      %v833 = vadd.f32 %v324, %v832
      %v834 = vpop.f32.mrb[0].mxu0
      %v835 = vpop.f32.mrb[0].mxu0
      %v836 = vadd.f32 %v324, %v835
      %v837 = vpop.f32.mrb[0].mxu0
      %838 = vmatprep.mubr.bf16.mxu0 0
      %839 = vmatmul.mubr.bf16.gmra.mrb[0].mxu0 %v588
      %v840 = vpop.f32.mrb[0].mxu0
      %v841 = vadd.f32 %v324, %v840
      %v842 = vpop.f32.mrb[0].mxu0
      %v843 = vpop.f32.mrb[0].mxu0
      %v844 = vadd.f32 %v324, %v843
      %v845 = vpop.f32.mrb[0].mxu0
      %846 = vmatprep.mubr.bf16.mxu0 0
      %847 = vmatmul.mubr.bf16.gmra.mrb[0].mxu0 %v589
      %v848 = vpop.f32.mrb[0].mxu0
      %v849 = vadd.f32 %v324, %v848
      %v850 = vpop.f32.mrb[0].mxu0
      %v851 = vpop.f32.mrb[0].mxu0
      %v852 = vadd.f32 %v324, %v851
      %v853 = vpop.f32.mrb[0].mxu0
      %854 = vmatprep.mubr.bf16.mxu0 0
      %855 = vmatmul.mubr.bf16.gmra.mrb[0].mxu0 %v590
      %v856 = vpop.f32.mrb[0].mxu0
      %v857 = vadd.f32 %v324, %v856
      %v858 = vpop.f32.mrb[0].mxu0
      %v859 = vpop.f32.mrb[0].mxu0
      %v860 = vadd.f32 %v324, %v859
      %v861 = vpop.f32.mrb[0].mxu0
      %862 = vmatprep.mubr.bf16.mxu0 0
      %863 = vmatmul.mubr.bf16.gmra.mrb[0].mxu0 %v591
      %v864 = vpop.f32.mrb[0].mxu0
      %v865 = vadd.f32 %v324, %v864
      %v866 = vpop.f32.mrb[0].mxu0
      %v867 = vpop.f32.mrb[0].mxu0
      %v868 = vadd.f32 %v324, %v867
      %v869 = vpop.f32.mrb[0].mxu0
      %870 = vmatprep.mubr.bf16.mxu0 0
      %871 = vmatmul.mubr.bf16.gmra.mrb[0].mxu0 %v592
      %v872 = vpop.f32.mrb[0].mxu0
      %v873 = vadd.f32 %v324, %v872
      %v874 = vpop.f32.mrb[0].mxu0
      %v875 = vpop.f32.mrb[0].mxu0
      %v876 = vadd.f32 %v324, %v875
      %v877 = vpop.f32.mrb[0].mxu0
      %878 = vmatprep.mubr.bf16.mxu0 0
      %879 = vmatmul.mubr.bf16.gmra.mrb[0].mxu0 %v593
      %v880 = vpop.f32.mrb[0].mxu0
      %v881 = vadd.f32 %v324, %v880
      %v882 = vpop.f32.mrb[0].mxu0
      %v883 = vpop.f32.mrb[0].mxu0
      %v884 = vadd.f32 %v324, %v883
      %v885 = vpop.f32.mrb[0].mxu0
      %886 = vmatprep.mubr.bf16.mxu0 0
      %887 = vmatmul.mubr.bf16.gmra.mrb[0].mxu0 %v594
      %v888 = vpop.f32.mrb[0].mxu0
      %v889 = vadd.f32 %v324, %v888
      %v890 = vpop.f32.mrb[0].mxu0
      %v891 = vpop.f32.mrb[0].mxu0
      %v892 = vadd.f32 %v324, %v891
      %v893 = vpop.f32.mrb[0].mxu0
      %894 = vmatprep.mubr.bf16.mxu0 0
      %895 = vmatmul.mubr.bf16.gmra.mrb[0].mxu0 %v595
      %v896 = vpop.f32.mrb[0].mxu0
      %v897 = vadd.f32 %v324, %v896
      %v898 = vpop.f32.mrb[0].mxu0
      %v899 = vpop.f32.mrb[0].mxu0
      %v900 = vadd.f32 %v324, %v899
      %v901 = vpop.f32.mrb[0].mxu0
      %902 = vmatprep.mubr.bf16.mxu0 0
      %903 = vmatmul.mubr.bf16.gmra.mrb[0].mxu0 %v596
      %v904 = vpop.f32.mrb[0].mxu0
      %v905 = vadd.f32 %v324, %v904
      %v906 = vpop.f32.mrb[0].mxu0
      %v907 = vpop.f32.mrb[0].mxu0
      %v908 = vadd.f32 %v324, %v907
      %v909 = vpop.f32.mrb[0].mxu0
      %910 = vmatprep.mubr.bf16.mxu0 0
      %911 = vmatmul.mubr.bf16.gmra.mrb[0].mxu0 %v597
      %v912 = vpop.f32.mrb[0].mxu0
      %v913 = vadd.f32 %v324, %v912
      %v914 = vpop.f32.mrb[0].mxu0
      %v915 = vpop.f32.mrb[0].mxu0
      %v916 = vadd.f32 %v324, %v915
      %v917 = vpop.f32.mrb[0].mxu0
      %918 = vmatprep.mubr.bf16.mxu0 0
      %919 = vmatmul.mubr.bf16.gmra.mrb[0].mxu0 %v598
      %v920 = vpop.f32.mrb[0].mxu0
      %v921 = vadd.f32 %v324, %v920
      %v922 = vpop.f32.mrb[0].mxu0
      %v923 = vpop.f32.mrb[0].mxu0
      %v924 = vadd.f32 %v324, %v923
      %v925 = vpop.f32.mrb[0].mxu0
      %926 = vmatprep.mubr.bf16.mxu0 0
      %927 = vmatmul.mubr.bf16.gmra.mrb[0].mxu0 %v599
      %v928 = vpop.f32.mrb[0].mxu0
      %v929 = vadd.f32 %v324, %v928
      %v930 = vpop.f32.mrb[0].mxu0
      %v931 = vpop.f32.mrb[0].mxu0
      %v932 = vadd.f32 %v324, %v931
      %v933 = vpop.f32.mrb[0].mxu0
      %934 = vmatprep.mubr.bf16.mxu0 0
      %935 = vmatmul.mubr.bf16.gmra.mrb[0].mxu0 %v600
      %v936 = vpop.f32.mrb[0].mxu0
      %v937 = vadd.f32 %v324, %v936
      %v938 = vpop.f32.mrb[0].mxu0
      %v939 = vpop.f32.mrb[0].mxu0
      %v940 = vadd.f32 %v324, %v939
      %v941 = vpop.f32.mrb[0].mxu0
      %942 = vmatprep.mubr.bf16.mxu0 0
      %943 = vmatmul.mubr.bf16.gmra.mrb[0].mxu0 %v601
      %v944 = vpop.f32.mrb[0].mxu0
      %v945 = vadd.f32 %v324, %v944
      %v946 = vpop.f32.mrb[0].mxu0
      %v947 = vpop.f32.mrb[0].mxu0
      %v948 = vadd.f32 %v324, %v947
      %v949 = vpop.f32.mrb[0].mxu0
      %950 = vmatprep.mubr.bf16.mxu0 0
      %951 = vmatmul.mubr.bf16.gmra.mrb[0].mxu0 %v602
      %v952 = vpop.f32.mrb[0].mxu0
      %v953 = vadd.f32 %v324, %v952
      %v954 = vpop.f32.mrb[0].mxu0
      %v955 = vpop.f32.mrb[0].mxu0
      %v956 = vadd.f32 %v324, %v955
      %v957 = vpop.f32.mrb[0].mxu0
      %958 = vmatprep.mubr.bf16.mxu0 0
      %959 = vmatmul.mubr.bf16.gmra.mrb[0].mxu0 %v603
      %v960 = vpop.f32.mrb[0].mxu0
      %v961 = vadd.f32 %v324, %v960
      %v962 = vpop.f32.mrb[0].mxu0
      %v963 = vpop.f32.mrb[0].mxu0
      %v964 = vadd.f32 %v324, %v963
      %v965 = vpop.f32.mrb[0].mxu0
      %966 = vmatprep.mubr.bf16.mxu0 0
      %967 = vmatmul.mubr.bf16.gmra.mrb[0].mxu0 %v604
      %v968 = vpop.f32.mrb[0].mxu0
      %v969 = vadd.f32 %v324, %v968
      %v970 = vpop.f32.mrb[0].mxu0
      %v971 = vpop.f32.mrb[0].mxu0
      %v972 = vadd.f32 %v324, %v971
      %v973 = vpop.f32.mrb[0].mxu0
      %974 = vmatprep.mubr.bf16.mxu0 0
      %975 = vmatmul.mubr.bf16.gmra.mrb[0].mxu0 %v605
      %v976 = vpop.f32.mrb[0].mxu0
      %v977 = vadd.f32 %v324, %v976
      %v978 = vpop.f32.mrb[0].mxu0
      %v979 = vpop.f32.mrb[0].mxu0
      %v980 = vadd.f32 %v324, %v979
      %v981 = vpop.f32.mrb[0].mxu0
      %982 = vmatprep.mubr.bf16.mxu0 0
      %983 = vmatmul.mubr.bf16.gmra.mrb[0].mxu0 %v606
      %v984 = vpop.f32.mrb[0].mxu0
      %v985 = vadd.f32 %v324, %v984
      %v986 = vpop.f32.mrb[0].mxu0
      %v987 = vpop.f32.mrb[0].mxu0
      %v988 = vadd.f32 %v324, %v987
      %v989 = vpop.f32.mrb[0].mxu0
      %990 = vmatprep.mubr.bf16.mxu0 0
      %991 = vmatmul.mubr.bf16.gmra.mrb[0].mxu0 %v607
      %v992 = vpop.f32.mrb[0].mxu0
      %v993 = vadd.f32 %v324, %v992
      %v994 = vpop.f32.mrb[0].mxu0
      %v995 = vpop.f32.mrb[0].mxu0
      %v996 = vadd.f32 %v324, %v995
      %v997 = vpop.f32.mrb[0].mxu0
      %998 = vmatprep.mubr.bf16.mxu0 0
      %999 = vmatmul.mubr.bf16.gmra.mrb[0].mxu0 %v608
      %v1000 = vpop.f32.mrb[0].mxu0
      %v1001 = vadd.f32 %v324, %v1000
      %v1002 = vpop.f32.mrb[0].mxu0
      %v1003 = vpop.f32.mrb[0].mxu0
      %v1004 = vadd.f32 %v324, %v1003
      %v1005 = vpop.f32.mrb[0].mxu0
      %1006 = vmatprep.mubr.bf16.mxu0 0
      %1007 = vmatmul.mubr.bf16.gmra.mrb[0].mxu0 %v609
      %v1008 = vpop.f32.mrb[0].mxu0
      %v1009 = vadd.f32 %v324, %v1008
      %v1010 = vpop.f32.mrb[0].mxu0
      %v1011 = vpop.f32.mrb[0].mxu0
      %v1012 = vadd.f32 %v324, %v1011
      %v1013 = vpop.f32.mrb[0].mxu0
      %1014 = vmatprep.mubr.bf16.mxu0 0
      %1015 = vmatmul.mubr.bf16.gmra.mrb[0].mxu0 %v610
      %v1016 = vpop.f32.mrb[0].mxu0
      %v1017 = vadd.f32 %v324, %v1016
      %v1018 = vpop.f32.mrb[0].mxu0
      %v1019 = vpop.f32.mrb[0].mxu0
      %v1020 = vadd.f32 %v324, %v1019
      %v1021 = vpop.f32.mrb[0].mxu0
      %1022 = vmatprep.mubr.bf16.mxu0 0
      %1023 = vmatmul.mubr.bf16.gmra.mrb[0].mxu0 %v611
      %v1024 = vpop.f32.mrb[0].mxu0
      %v1025 = vadd.f32 %v324, %v1024
      %v1026 = vpop.f32.mrb[0].mxu0
      %v1027 = vpop.f32.mrb[0].mxu0
      %v1028 = vadd.f32 %v324, %v1027
      %v1029 = vpop.f32.mrb[0].mxu0
      %1030 = vmatprep.mubr.bf16.mxu0 0
      %1031 = vmatmul.mubr.bf16.gmra.mrb[0].mxu0 %v612
      %v1032 = vpop.f32.mrb[0].mxu0
      %v1033 = vadd.f32 %v324, %v1032
      %v1034 = vpop.f32.mrb[0].mxu0
      %v1035 = vpop.f32.mrb[0].mxu0
      %v1036 = vadd.f32 %v324, %v1035
      %v1037 = vpop.f32.mrb[0].mxu0
      %1038 = vmatprep.mubr.bf16.mxu0 0
      %1039 = vmatmul.mubr.bf16.gmra.mrb[0].mxu0 %v613
      %v1040 = vpop.f32.mrb[0].mxu0
      %v1041 = vadd.f32 %v324, %v1040
      %v1042 = vpop.f32.mrb[0].mxu0
      %v1043 = vpop.f32.mrb[0].mxu0
      %v1044 = vadd.f32 %v324, %v1043
      %v1045 = vpop.f32.mrb[0].mxu0
      %1046 = vmatprep.mubr.bf16.mxu0 0
      %1047 = vmatmul.mubr.bf16.gmra.mrb[0].mxu0 %v614
      %v1048 = vpop.f32.mrb[0].mxu0
      %v1049 = vadd.f32 %v324, %v1048
      %v1050 = vpop.f32.mrb[0].mxu0
      %v1051 = vpop.f32.mrb[0].mxu0
      %v1052 = vadd.f32 %v324, %v1051
      %v1053 = vpop.f32.mrb[0].mxu0
      %1054 = vmatprep.mubr.bf16.mxu0 0
      %1055 = vmatmul.mubr.bf16.gmra.mrb[0].mxu0 %v615
      %v1056 = vpop.f32.mrb[0].mxu0
      %v1057 = vadd.f32 %v324, %v1056
      %v1058 = vpop.f32.mrb[0].mxu0
      %v1059 = vpop.f32.mrb[0].mxu0
      %v1060 = vadd.f32 %v324, %v1059
      %v1061 = vpop.f32.mrb[0].mxu0
      %1062 = vmatprep.mubr.bf16.mxu0 0
      %1063 = vmatmul.mubr.bf16.gmra.mrb[0].mxu0 %v616
      %v1064 = vpop.f32.mrb[0].mxu0
      %v1065 = vadd.f32 %v324, %v1064
      %v1066 = vpop.f32.mrb[0].mxu0
      %v1067 = vpop.f32.mrb[0].mxu0
      %v1068 = vadd.f32 %v324, %v1067
      %v1069 = vpop.f32.mrb[0].mxu0
      %1070 = vmatprep.mubr.bf16.mxu0 0
      %1071 = vmatmul.mubr.bf16.gmra.mrb[0].mxu0 %v617
      %v1072 = vpop.f32.mrb[0].mxu0
      %v1073 = vadd.f32 %v324, %v1072
      %v1074 = vpop.f32.mrb[0].mxu0
      %v1075 = vpop.f32.mrb[0].mxu0
      %v1076 = vadd.f32 %v324, %v1075
      %v1077 = vpop.f32.mrb[0].mxu0
      %1078 = vmatprep.mubr.bf16.mxu0 0
      %1079 = vmatmul.mubr.bf16.gmra.mrb[0].mxu0 %v618
      %v1080 = vpop.f32.mrb[0].mxu0
      %v1081 = vadd.f32 %v324, %v1080
      %v1082 = vpop.f32.mrb[0].mxu0
      %v1083 = vpop.f32.mrb[0].mxu0
      %v1084 = vadd.f32 %v324, %v1083
      %v1085 = vpop.f32.mrb[0].mxu0
      %1086 = vmatprep.mubr.bf16.mxu0 0
      %1087 = vmatmul.mubr.bf16.gmra.mrb[0].mxu0 %v619
      %v1088 = vpop.f32.mrb[0].mxu0
      %v1089 = vadd.f32 %v324, %v1088
      %v1090 = vpop.f32.mrb[0].mxu0
      %v1091 = vpop.f32.mrb[0].mxu0
      %v1092 = vadd.f32 %v324, %v1091
      %v1093 = vpop.f32.mrb[0].mxu0
      %1094 = vmatprep.mubr.bf16.mxu0 0
      %1095 = vmatmul.mubr.bf16.gmra.mrb[0].mxu0 %v620
      %v1096 = vpop.f32.mrb[0].mxu0
      %v1097 = vadd.f32 %v324, %v1096
      %v1098 = vpop.f32.mrb[0].mxu0
      %v1099 = vpop.f32.mrb[0].mxu0
      %v1100 = vadd.f32 %v324, %v1099
      %v1101 = vpop.f32.mrb[0].mxu0
      %1102 = vmatprep.mubr.bf16.mxu0 0
      %1103 = vmatmul.mubr.bf16.gmra.mrb[0].mxu0 %v621
      %v1104 = vpop.f32.mrb[0].mxu0
      %v1105 = vadd.f32 %v324, %v1104
      %v1106 = vpop.f32.mrb[0].mxu0
      %v1107 = vpop.f32.mrb[0].mxu0
      %v1108 = vadd.f32 %v324, %v1107
      %v1109 = vpop.f32.mrb[0].mxu0
      %1110 = vmatprep.mubr.bf16.mxu0 0
      %1111 = vmatmul.mubr.bf16.gmra.mrb[0].mxu0 %v622
      %v1112 = vpop.f32.mrb[0].mxu0
      %v1113 = vadd.f32 %v324, %v1112
      %v1114 = vpop.f32.mrb[0].mxu0
      %v1115 = vpop.f32.mrb[0].mxu0
      %v1116 = vadd.f32 %v324, %v1115
      %v1117 = vpop.f32.mrb[0].mxu0
      %1118 = vmatprep.mubr.bf16.mxu0 0
      %1119 = vmatmul.mubr.bf16.gmra.mrb[0].mxu0 %v623
      %v1120 = vpop.f32.mrb[0].mxu0
      %v1121 = vadd.f32 %v324, %v1120
      %v1122 = vpop.f32.mrb[0].mxu0
      %v1123 = vpop.f32.mrb[0].mxu0
      %v1124 = vadd.f32 %v324, %v1123
      %v1125 = vpop.f32.mrb[0].mxu0
      %1126 = vmatprep.mubr.bf16.mxu0 0
      %1127 = vmatmul.mubr.bf16.gmra.mrb[0].mxu0 %v624
      %v1128 = vpop.f32.mrb[0].mxu0
      %v1129 = vadd.f32 %v324, %v1128
      %v1130 = vpop.f32.mrb[0].mxu0
      %v1131 = vpop.f32.mrb[0].mxu0
      %v1132 = vadd.f32 %v324, %v1131
      %v1133 = vpop.f32.mrb[0].mxu0
      %1134 = vmatprep.mubr.bf16.mxu0 0
      %1135 = vmatmul.mubr.bf16.gmra.mrb[0].mxu0 %v625
      %v1136 = vpop.f32.mrb[0].mxu0
      %v1137 = vadd.f32 %v324, %v1136
      %v1138 = vpop.f32.mrb[0].mxu0
      %v1139 = vpop.f32.mrb[0].mxu0
      %v1140 = vadd.f32 %v324, %v1139
      %v1141 = vpop.f32.mrb[0].mxu0
      %1142 = vmatprep.mubr.bf16.mxu0 0
      %1143 = vmatmul.mubr.bf16.gmra.mrb[0].mxu0 %v626
      %v1144 = vpop.f32.mrb[0].mxu0
      %v1145 = vadd.f32 %v324, %v1144
      %v1146 = vpop.f32.mrb[0].mxu0
      %v1147 = vpop.f32.mrb[0].mxu0
      %v1148 = vadd.f32 %v324, %v1147
      %v1149 = vpop.f32.mrb[0].mxu0
      %1150 = vmatprep.mubr.bf16.mxu0 0
      %1151 = vmatmul.mubr.bf16.gmra.mrb[0].mxu0 %v627
      %v1152 = vpop.f32.mrb[0].mxu0
      %v1153 = vadd.f32 %v324, %v1152
      %v1154 = vpop.f32.mrb[0].mxu0
      %v1155 = vpop.f32.mrb[0].mxu0
      %v1156 = vadd.f32 %v324, %v1155
      %v1157 = vpop.f32.mrb[0].mxu0
      %1158 = vmatprep.mubr.bf16.mxu0 0
      %1159 = vmatmul.mubr.bf16.gmra.mrb[0].mxu0 %v628
      %v1160 = vpop.f32.mrb[0].mxu0
      %v1161 = vadd.f32 %v324, %v1160
      %v1162 = vpop.f32.mrb[0].mxu0
      %v1163 = vpop.f32.mrb[0].mxu0
      %v1164 = vadd.f32 %v324, %v1163
      %v1165 = vpop.f32.mrb[0].mxu0
      %1166 = vmatprep.mubr.bf16.mxu0 0
      %1167 = vmatmul.mubr.bf16.gmra.mrb[0].mxu0 %v629
      %v1168 = vpop.f32.mrb[0].mxu0
      %v1169 = vadd.f32 %v324, %v1168
      %v1170 = vpop.f32.mrb[0].mxu0
      %v1171 = vpop.f32.mrb[0].mxu0
      %v1172 = vadd.f32 %v324, %v1171
      %v1173 = vpop.f32.mrb[0].mxu0
      %1174 = vmatprep.mubr.bf16.mxu0 0
      %1175 = vmatmul.mubr.bf16.gmra.mrb[0].mxu0 %v630
      %v1176 = vpop.f32.mrb[0].mxu0
      %v1177 = vadd.f32 %v324, %v1176
      %v1178 = vpop.f32.mrb[0].mxu0
      %v1179 = vpop.f32.mrb[0].mxu0
      %v1180 = vadd.f32 %v324, %v1179
      %v1181 = vpop.f32.mrb[0].mxu0
      %1182 = vmatprep.mubr.bf16.mxu0 0
      %1183 = vmatmul.mubr.bf16.gmra.mrb[0].mxu0 %v631
      %v1184 = vpop.f32.mrb[0].mxu0
      %v1185 = vadd.f32 %v324, %v1184
      %v1186 = vpop.f32.mrb[0].mxu0
      %v1187 = vpop.f32.mrb[0].mxu0
      %v1188 = vadd.f32 %v324, %v1187
      %v1189 = vpop.f32.mrb[0].mxu0
      %1190 = vmatprep.mubr.bf16.mxu0 0
      %1191 = vmatmul.mubr.bf16.gmra.mrb[0].mxu0 %v632
      %v1192 = vpop.f32.mrb[0].mxu0
      %v1193 = vadd.f32 %v324, %v1192
      %v1194 = vpop.f32.mrb[0].mxu0
      %v1195 = vpop.f32.mrb[0].mxu0
      %v1196 = vadd.f32 %v324, %v1195
      %v1197 = vpop.f32.mrb[0].mxu0
      %1198 = vmatprep.mubr.bf16.mxu0 0
      %1199 = vmatmul.mubr.bf16.gmra.mrb[0].mxu0 %v633
      %v1200 = vpop.f32.mrb[0].mxu0
      %v1201 = vadd.f32 %v324, %v1200
      %v1202 = vpop.f32.mrb[0].mxu0
      %v1203 = vpop.f32.mrb[0].mxu0
      %v1204 = vadd.f32 %v324, %v1203
      %v1205 = vpop.f32.mrb[0].mxu0
      %1206 = vmatprep.mubr.bf16.mxu0 0
      %1207 = vmatmul.mubr.bf16.gmra.mrb[0].mxu0 %v634
      %v1208 = vpop.f32.mrb[0].mxu0
      %v1209 = vadd.f32 %v324, %v1208
      %v1210 = vpop.f32.mrb[0].mxu0
      %v1211 = vpop.f32.mrb[0].mxu0
      %v1212 = vadd.f32 %v324, %v1211
      %v1213 = vpop.f32.mrb[0].mxu0
      %1214 = vmatprep.mubr.bf16.mxu0 0
      %1215 = vmatmul.mubr.bf16.gmra.mrb[0].mxu0 %v635
      %v1216 = vpop.f32.mrb[0].mxu0
      %v1217 = vadd.f32 %v324, %v1216
      %v1218 = vpop.f32.mrb[0].mxu0
      %v1219 = vpop.f32.mrb[0].mxu0
      %v1220 = vadd.f32 %v324, %v1219
      %v1221 = vpop.f32.mrb[0].mxu0
      %1222 = vmatprep.mubr.bf16.mxu0 0
      %1223 = vmatmul.mubr.bf16.gmra.mrb[0].mxu0 %v636
      %v1224 = vpop.f32.mrb[0].mxu0
      %v1225 = vadd.f32 %v324, %v1224
      %v1226 = vpop.f32.mrb[0].mxu0
      %v1227 = vpop.f32.mrb[0].mxu0
      %v1228 = vadd.f32 %v324, %v1227
      %v1229 = vpop.f32.mrb[0].mxu0
      %1230 = vmatprep.mubr.bf16.mxu0 0
      %1231 = vmatmul.mubr.bf16.gmra.mrb[0].mxu0 %v637
      %v1232 = vpop.f32.mrb[0].mxu0
      %v1233 = vadd.f32 %v324, %v1232
      %v1234 = vpop.f32.mrb[0].mxu0
      %v1235 = vpop.f32.mrb[0].mxu0
      %v1236 = vadd.f32 %v324, %v1235
      %v1237 = vpop.f32.mrb[0].mxu0
      %1238 = vmatprep.mubr.bf16.mxu0 0
      %1239 = vmatmul.mubr.bf16.gmra.mrb[0].mxu0 %v638
      %v1240 = vpop.f32.mrb[0].mxu0
      %v1241 = vadd.f32 %v324, %v1240
      %v1242 = vpop.f32.mrb[0].mxu0
      %v1243 = vpop.f32.mrb[0].mxu0
      %v1244 = vadd.f32 %v324, %v1243
      %v1245 = vpop.f32.mrb[0].mxu0
      %1246 = vmatprep.mubr.bf16.mxu0 0
      %1247 = vmatmul.mubr.bf16.gmra.mrb[0].mxu0 %v639
      %v1248 = vpop.f32.mrb[0].mxu0
      %v1249 = vadd.f32 %v324, %v1248
      %v1250 = vpop.f32.mrb[0].mxu0
      %v1251 = vpop.f32.mrb[0].mxu0
      %v1252 = vadd.f32 %v324, %v1251
      %v1253 = vpop.f32.mrb[0].mxu0
      %1254 = vmatprep.mubr.bf16.mxu0 0
      %1255 = vmatmul.mubr.bf16.gmra.mrb[0].mxu0 %v640
      %v1256 = vpop.f32.mrb[0].mxu0
      %v1257 = vadd.f32 %v324, %v1256
      %v1258 = vpop.f32.mrb[0].mxu0
      %v1259 = vpop.f32.mrb[0].mxu0
      %v1260 = vadd.f32 %v324, %v1259
      %v1261 = vpop.f32.mrb[0].mxu0
      %1262 = vmatprep.mubr.bf16.mxu0 0
      %1263 = vmatmul.mubr.bf16.gmra.mrb[0].mxu0 %v641
      %v1264 = vpop.f32.mrb[0].mxu0
      %v1265 = vadd.f32 %v324, %v1264
      %v1266 = vpop.f32.mrb[0].mxu0
      %v1267 = vpop.f32.mrb[0].mxu0
      %v1268 = vadd.f32 %v324, %v1267
      %v1269 = vpop.f32.mrb[0].mxu0
      %1270 = vmatprep.mubr.bf16.mxu0 0
      %1271 = vmatmul.mubr.bf16.gmra.mrb[0].mxu0 %v642
      %v1272 = vpop.f32.mrb[0].mxu0
      %v1273 = vadd.f32 %v324, %v1272
      %v1274 = vpop.f32.mrb[0].mxu0
      %v1275 = vpop.f32.mrb[0].mxu0
      %v1276 = vadd.f32 %v324, %v1275
      %v1277 = vpop.f32.mrb[0].mxu0
      %1278 = vmatprep.mubr.bf16.mxu0 0
      %1279 = vmatmul.mubr.bf16.gmra.mrb[0].mxu0 %v643
      %v1280 = vpop.f32.mrb[0].mxu0
      %v1281 = vadd.f32 %v324, %v1280
      %v1282 = vpop.f32.mrb[0].mxu0
      %v1283 = vpop.f32.mrb[0].mxu0
      %v1284 = vadd.f32 %v324, %v1283
      %v1285 = vpop.f32.mrb[0].mxu0
      %1286 = vmatprep.mubr.bf16.mxu0 0
      %1287 = vmatmul.mubr.bf16.gmra.mrb[0].mxu0 %v644
      %v1288 = vpop.f32.mrb[0].mxu0
      %v1289 = vadd.f32 %v324, %v1288
      %v1290 = vpop.f32.mrb[0].mxu0
      %v1291 = vpop.f32.mrb[0].mxu0
      %v1292 = vadd.f32 %v324, %v1291
      %v1293 = vpop.f32.mrb[0].mxu0
      %1294 = vmatprep.mubr.bf16.mxu0 0
      %1295 = vmatmul.mubr.bf16.gmra.mrb[0].mxu0 %v645
      %v1296 = vpop.f32.mrb[0].mxu0
      %v1297 = vadd.f32 %v324, %v1296
      %v1298 = vpop.f32.mrb[0].mxu0
      %v1299 = vpop.f32.mrb[0].mxu0
      %v1300 = vadd.f32 %v324, %v1299
      %v1301 = vpop.f32.mrb[0].mxu0
      %1302 = vdwg.mxu0
      %vm1303 = vcmp.gt.f32.partialorder %v793, 0.0
      %vm1304 = vcmp.gt.f32.partialorder %v796, 0.0
      %vm1305 = vcmp.gt.f32.partialorder %v801, 0.0
      %vm1306 = vcmp.gt.f32.partialorder %v804, 0.0
      %vm1307 = vcmp.gt.f32.partialorder %v809, 0.0
      %vm1308 = vcmp.gt.f32.partialorder %v812, 0.0
      %vm1309 = vcmp.gt.f32.partialorder %v817, 0.0
      %vm1310 = vcmp.gt.f32.partialorder %v820, 0.0
      %vm1311 = vcmp.gt.f32.partialorder %v825, 0.0
      %vm1312 = vcmp.gt.f32.partialorder %v828, 0.0
      %vm1313 = vcmp.gt.f32.partialorder %v833, 0.0
      %vm1314 = vcmp.gt.f32.partialorder %v836, 0.0
      %vm1315 = vcmp.gt.f32.partialorder %v841, 0.0
      %vm1316 = vcmp.gt.f32.partialorder %v844, 0.0
      %vm1317 = vcmp.gt.f32.partialorder %v849, 0.0
      %vm1318 = vcmp.gt.f32.partialorder %v852, 0.0
      %vm1319 = vcmp.gt.f32.partialorder %v857, 0.0
      %vm1320 = vcmp.gt.f32.partialorder %v860, 0.0
      %vm1321 = vcmp.gt.f32.partialorder %v865, 0.0
      %vm1322 = vcmp.gt.f32.partialorder %v868, 0.0
      %vm1323 = vcmp.gt.f32.partialorder %v873, 0.0
      %vm1324 = vcmp.gt.f32.partialorder %v876, 0.0
      %vm1325 = vcmp.gt.f32.partialorder %v881, 0.0
      %vm1326 = vcmp.gt.f32.partialorder %v884, 0.0
      %vm1327 = vcmp.gt.f32.partialorder %v889, 0.0
      %vm1328 = vcmp.gt.f32.partialorder %v892, 0.0
      %vm1329 = vcmp.gt.f32.partialorder %v897, 0.0
      %vm1330 = vcmp.gt.f32.partialorder %v900, 0.0
      %vm1331 = vcmp.gt.f32.partialorder %v905, 0.0
      %vm1332 = vcmp.gt.f32.partialorder %v908, 0.0
      %vm1333 = vcmp.gt.f32.partialorder %v913, 0.0
      %vm1334 = vcmp.gt.f32.partialorder %v916, 0.0
      %vm1335 = vcmp.gt.f32.partialorder %v921, 0.0
      %vm1336 = vcmp.gt.f32.partialorder %v924, 0.0
      %vm1337 = vcmp.gt.f32.partialorder %v929, 0.0
      %vm1338 = vcmp.gt.f32.partialorder %v932, 0.0
      %vm1339 = vcmp.gt.f32.partialorder %v937, 0.0
      %vm1340 = vcmp.gt.f32.partialorder %v940, 0.0
      %vm1341 = vcmp.gt.f32.partialorder %v945, 0.0
      %vm1342 = vcmp.gt.f32.partialorder %v948, 0.0
      %vm1343 = vcmp.gt.f32.partialorder %v953, 0.0
      %vm1344 = vcmp.gt.f32.partialorder %v956, 0.0
      %vm1345 = vcmp.gt.f32.partialorder %v961, 0.0
      %vm1346 = vcmp.gt.f32.partialorder %v964, 0.0
      %vm1347 = vcmp.gt.f32.partialorder %v969, 0.0
      %vm1348 = vcmp.gt.f32.partialorder %v972, 0.0
      %vm1349 = vcmp.gt.f32.partialorder %v977, 0.0
      %vm1350 = vcmp.gt.f32.partialorder %v980, 0.0
      %vm1351 = vcmp.gt.f32.partialorder %v985, 0.0
      %vm1352 = vcmp.gt.f32.partialorder %v988, 0.0
      %vm1353 = vcmp.gt.f32.partialorder %v993, 0.0
      %vm1354 = vcmp.gt.f32.partialorder %v996, 0.0
      %vm1355 = vcmp.gt.f32.partialorder %v1001, 0.0
      %vm1356 = vcmp.gt.f32.partialorder %v1004, 0.0
      %vm1357 = vcmp.gt.f32.partialorder %v1009, 0.0
      %vm1358 = vcmp.gt.f32.partialorder %v1012, 0.0
      %vm1359 = vcmp.gt.f32.partialorder %v1017, 0.0
      %vm1360 = vcmp.gt.f32.partialorder %v1020, 0.0
      %vm1361 = vcmp.gt.f32.partialorder %v1025, 0.0
      %vm1362 = vcmp.gt.f32.partialorder %v1028, 0.0
      %vm1363 = vcmp.gt.f32.partialorder %v1033, 0.0
      %vm1364 = vcmp.gt.f32.partialorder %v1036, 0.0
      %vm1365 = vcmp.gt.f32.partialorder %v1041, 0.0
      %vm1366 = vcmp.gt.f32.partialorder %v1044, 0.0
      %vm1367 = vcmp.gt.f32.partialorder %v1049, 0.0
      %vm1368 = vcmp.gt.f32.partialorder %v1052, 0.0
      %vm1369 = vcmp.gt.f32.partialorder %v1057, 0.0
      %vm1370 = vcmp.gt.f32.partialorder %v1060, 0.0
      %vm1371 = vcmp.gt.f32.partialorder %v1065, 0.0
      %vm1372 = vcmp.gt.f32.partialorder %v1068, 0.0
      %vm1373 = vcmp.gt.f32.partialorder %v1073, 0.0
      %vm1374 = vcmp.gt.f32.partialorder %v1076, 0.0
      %vm1375 = vcmp.gt.f32.partialorder %v1081, 0.0
      %vm1376 = vcmp.gt.f32.partialorder %v1084, 0.0
      %vm1377 = vcmp.gt.f32.partialorder %v1089, 0.0
      %vm1378 = vcmp.gt.f32.partialorder %v1092, 0.0
      %vm1379 = vcmp.gt.f32.partialorder %v1097, 0.0
      %vm1380 = vcmp.gt.f32.partialorder %v1100, 0.0
      %vm1381 = vcmp.gt.f32.partialorder %v1105, 0.0
      %vm1382 = vcmp.gt.f32.partialorder %v1108, 0.0
      %vm1383 = vcmp.gt.f32.partialorder %v1113, 0.0
      %vm1384 = vcmp.gt.f32.partialorder %v1116, 0.0
      %vm1385 = vcmp.gt.f32.partialorder %v1121, 0.0
      %vm1386 = vcmp.gt.f32.partialorder %v1124, 0.0
      %vm1387 = vcmp.gt.f32.partialorder %v1129, 0.0
      %vm1388 = vcmp.gt.f32.partialorder %v1132, 0.0
      %vm1389 = vcmp.gt.f32.partialorder %v1137, 0.0
      %vm1390 = vcmp.gt.f32.partialorder %v1140, 0.0
      %vm1391 = vcmp.gt.f32.partialorder %v1145, 0.0
      %vm1392 = vcmp.gt.f32.partialorder %v1148, 0.0
      %vm1393 = vcmp.gt.f32.partialorder %v1153, 0.0
      %vm1394 = vcmp.gt.f32.partialorder %v1156, 0.0
      %vm1395 = vcmp.gt.f32.partialorder %v1161, 0.0
      %vm1396 = vcmp.gt.f32.partialorder %v1164, 0.0
      %vm1397 = vcmp.gt.f32.partialorder %v1169, 0.0
      %vm1398 = vcmp.gt.f32.partialorder %v1172, 0.0
      %vm1399 = vcmp.gt.f32.partialorder %v1177, 0.0
      %vm1400 = vcmp.gt.f32.partialorder %v1180, 0.0
      %vm1401 = vcmp.gt.f32.partialorder %v1185, 0.0
      %vm1402 = vcmp.gt.f32.partialorder %v1188, 0.0
      %vm1403 = vcmp.gt.f32.partialorder %v1193, 0.0
      %vm1404 = vcmp.gt.f32.partialorder %v1196, 0.0
      %vm1405 = vcmp.gt.f32.partialorder %v1201, 0.0
      %vm1406 = vcmp.gt.f32.partialorder %v1204, 0.0
      %vm1407 = vcmp.gt.f32.partialorder %v1209, 0.0
      %vm1408 = vcmp.gt.f32.partialorder %v1212, 0.0
      %vm1409 = vcmp.gt.f32.partialorder %v1217, 0.0
      %vm1410 = vcmp.gt.f32.partialorder %v1220, 0.0
      %vm1411 = vcmp.gt.f32.partialorder %v1225, 0.0
      %vm1412 = vcmp.gt.f32.partialorder %v1228, 0.0
      %vm1413 = vcmp.gt.f32.partialorder %v1233, 0.0
      %vm1414 = vcmp.gt.f32.partialorder %v1236, 0.0
      %vm1415 = vcmp.gt.f32.partialorder %v1241, 0.0
      %vm1416 = vcmp.gt.f32.partialorder %v1244, 0.0
      %vm1417 = vcmp.gt.f32.partialorder %v1249, 0.0
      %vm1418 = vcmp.gt.f32.partialorder %v1252, 0.0
      %vm1419 = vcmp.gt.f32.partialorder %v1257, 0.0
      %vm1420 = vcmp.gt.f32.partialorder %v1260, 0.0
      %vm1421 = vcmp.gt.f32.partialorder %v1265, 0.0
      %vm1422 = vcmp.gt.f32.partialorder %v1268, 0.0
      %vm1423 = vcmp.gt.f32.partialorder %v1273, 0.0
      %vm1424 = vcmp.gt.f32.partialorder %v1276, 0.0
      %vm1425 = vcmp.gt.f32.partialorder %v1281, 0.0
      %vm1426 = vcmp.gt.f32.partialorder %v1284, 0.0
      %vm1427 = vcmp.gt.f32.partialorder %v1289, 0.0
      %vm1428 = vcmp.gt.f32.partialorder %v1292, 0.0
      %vm1429 = vcmp.gt.f32.partialorder %v1297, 0.0
      %vm1430 = vcmp.gt.f32.partialorder %v1300, 0.0
      %v1431 = vmul.f32 %v793, 0.2
      %v1432 = vmul.f32 %v796, 0.2
      %v1433 = vmul.f32 %v801, 0.2
      %v1434 = vmul.f32 %v804, 0.2
      %v1435 = vmul.f32 %v809, 0.2
      %v1436 = vmul.f32 %v812, 0.2
      %v1437 = vmul.f32 %v817, 0.2
      %v1438 = vmul.f32 %v820, 0.2
      %v1439 = vmul.f32 %v825, 0.2
      %v1440 = vmul.f32 %v828, 0.2
      %v1441 = vmul.f32 %v833, 0.2
      %v1442 = vmul.f32 %v836, 0.2
      %v1443 = vmul.f32 %v841, 0.2
      %v1444 = vmul.f32 %v844, 0.2
      %v1445 = vmul.f32 %v849, 0.2
      %v1446 = vmul.f32 %v852, 0.2
      %v1447 = vmul.f32 %v857, 0.2
      %v1448 = vmul.f32 %v860, 0.2
      %v1449 = vmul.f32 %v865, 0.2
      %v1450 = vmul.f32 %v868, 0.2
      %v1451 = vmul.f32 %v873, 0.2
      %v1452 = vmul.f32 %v876, 0.2
      %v1453 = vmul.f32 %v881, 0.2
      %v1454 = vmul.f32 %v884, 0.2
      %v1455 = vmul.f32 %v889, 0.2
      %v1456 = vmul.f32 %v892, 0.2
      %v1457 = vmul.f32 %v897, 0.2
      %v1458 = vmul.f32 %v900, 0.2
      %v1459 = vmul.f32 %v905, 0.2
      %v1460 = vmul.f32 %v908, 0.2
      %v1461 = vmul.f32 %v913, 0.2
      %v1462 = vmul.f32 %v916, 0.2
      %v1463 = vmul.f32 %v921, 0.2
      %v1464 = vmul.f32 %v924, 0.2
      %v1465 = vmul.f32 %v929, 0.2
      %v1466 = vmul.f32 %v932, 0.2
      %v1467 = vmul.f32 %v937, 0.2
      %v1468 = vmul.f32 %v940, 0.2
      %v1469 = vmul.f32 %v945, 0.2
      %v1470 = vmul.f32 %v948, 0.2
      %v1471 = vmul.f32 %v953, 0.2
      %v1472 = vmul.f32 %v956, 0.2
      %v1473 = vmul.f32 %v961, 0.2
      %v1474 = vmul.f32 %v964, 0.2
      %v1475 = vmul.f32 %v969, 0.2
      %v1476 = vmul.f32 %v972, 0.2
      %v1477 = vmul.f32 %v977, 0.2
      %v1478 = vmul.f32 %v980, 0.2
      %v1479 = vmul.f32 %v985, 0.2
      %v1480 = vmul.f32 %v988, 0.2
      %v1481 = vmul.f32 %v993, 0.2
      %v1482 = vmul.f32 %v996, 0.2
      %v1483 = vmul.f32 %v1001, 0.2
      %v1484 = vmul.f32 %v1004, 0.2
      %v1485 = vmul.f32 %v1009, 0.2
      %v1486 = vmul.f32 %v1012, 0.2
      %v1487 = vmul.f32 %v1017, 0.2
      %v1488 = vmul.f32 %v1020, 0.2
      %v1489 = vmul.f32 %v1025, 0.2
      %v1490 = vmul.f32 %v1028, 0.2
      %v1491 = vmul.f32 %v1033, 0.2
      %v1492 = vmul.f32 %v1036, 0.2
      %v1493 = vmul.f32 %v1041, 0.2
      %v1494 = vmul.f32 %v1044, 0.2
      %v1495 = vmul.f32 %v1049, 0.2
      %v1496 = vmul.f32 %v1052, 0.2
      %v1497 = vmul.f32 %v1057, 0.2
      %v1498 = vmul.f32 %v1060, 0.2
      %v1499 = vmul.f32 %v1065, 0.2
      %v1500 = vmul.f32 %v1068, 0.2
      %v1501 = vmul.f32 %v1073, 0.2
      %v1502 = vmul.f32 %v1076, 0.2
      %v1503 = vmul.f32 %v1081, 0.2
      %v1504 = vmul.f32 %v1084, 0.2
      %v1505 = vmul.f32 %v1089, 0.2
      %v1506 = vmul.f32 %v1092, 0.2
      %v1507 = vmul.f32 %v1097, 0.2
      %v1508 = vmul.f32 %v1100, 0.2
      %v1509 = vmul.f32 %v1105, 0.2
      %v1510 = vmul.f32 %v1108, 0.2
      %v1511 = vmul.f32 %v1113, 0.2
      %v1512 = vmul.f32 %v1116, 0.2
      %v1513 = vmul.f32 %v1121, 0.2
      %v1514 = vmul.f32 %v1124, 0.2
      %v1515 = vmul.f32 %v1129, 0.2
      %v1516 = vmul.f32 %v1132, 0.2
      %v1517 = vmul.f32 %v1137, 0.2
      %v1518 = vmul.f32 %v1140, 0.2
      %v1519 = vmul.f32 %v1145, 0.2
      %v1520 = vmul.f32 %v1148, 0.2
      %v1521 = vmul.f32 %v1153, 0.2
      %v1522 = vmul.f32 %v1156, 0.2
      %v1523 = vmul.f32 %v1161, 0.2
      %v1524 = vmul.f32 %v1164, 0.2
      %v1525 = vmul.f32 %v1169, 0.2
      %v1526 = vmul.f32 %v1172, 0.2
      %v1527 = vmul.f32 %v1177, 0.2
      %v1528 = vmul.f32 %v1180, 0.2
      %v1529 = vmul.f32 %v1185, 0.2
      %v1530 = vmul.f32 %v1188, 0.2
      %v1531 = vmul.f32 %v1193, 0.2
      %v1532 = vmul.f32 %v1196, 0.2
      %v1533 = vmul.f32 %v1201, 0.2
      %v1534 = vmul.f32 %v1204, 0.2
      %v1535 = vmul.f32 %v1209, 0.2
      %v1536 = vmul.f32 %v1212, 0.2
      %v1537 = vmul.f32 %v1217, 0.2
      %v1538 = vmul.f32 %v1220, 0.2
      %v1539 = vmul.f32 %v1225, 0.2
      %v1540 = vmul.f32 %v1228, 0.2
      %v1541 = vmul.f32 %v1233, 0.2
      %v1542 = vmul.f32 %v1236, 0.2
      %v1543 = vmul.f32 %v1241, 0.2
      %v1544 = vmul.f32 %v1244, 0.2
      %v1545 = vmul.f32 %v1249, 0.2
      %v1546 = vmul.f32 %v1252, 0.2
      %v1547 = vmul.f32 %v1257, 0.2
      %v1548 = vmul.f32 %v1260, 0.2
      %v1549 = vmul.f32 %v1265, 0.2
      %v1550 = vmul.f32 %v1268, 0.2
      %v1551 = vmul.f32 %v1273, 0.2
      %v1552 = vmul.f32 %v1276, 0.2
      %v1553 = vmul.f32 %v1281, 0.2
      %v1554 = vmul.f32 %v1284, 0.2
      %v1555 = vmul.f32 %v1289, 0.2
      %v1556 = vmul.f32 %v1292, 0.2
      %v1557 = vmul.f32 %v1297, 0.2
      %v1558 = vmul.f32 %v1300, 0.2
      %v1559 = vsel %vm1303, %v793, %v1431
      %v1560 = vsel %vm1304, %v796, %v1432
      %v1561 = vsel %vm1305, %v801, %v1433
      %v1562 = vsel %vm1306, %v804, %v1434
      %v1563 = vsel %vm1307, %v809, %v1435
      %v1564 = vsel %vm1308, %v812, %v1436
      %v1565 = vsel %vm1309, %v817, %v1437
      %v1566 = vsel %vm1310, %v820, %v1438
      %v1567 = vsel %vm1311, %v825, %v1439
      %v1568 = vsel %vm1312, %v828, %v1440
      %v1569 = vsel %vm1313, %v833, %v1441
      %v1570 = vsel %vm1314, %v836, %v1442
      %v1571 = vsel %vm1315, %v841, %v1443
      %v1572 = vsel %vm1316, %v844, %v1444
      %v1573 = vsel %vm1317, %v849, %v1445
      %v1574 = vsel %vm1318, %v852, %v1446
      %v1575 = vsel %vm1319, %v857, %v1447
      %v1576 = vsel %vm1320, %v860, %v1448
      %v1577 = vsel %vm1321, %v865, %v1449
      %v1578 = vsel %vm1322, %v868, %v1450
      %v1579 = vsel %vm1323, %v873, %v1451
      %v1580 = vsel %vm1324, %v876, %v1452
      %v1581 = vsel %vm1325, %v881, %v1453
      %v1582 = vsel %vm1326, %v884, %v1454
      %v1583 = vsel %vm1327, %v889, %v1455
      %v1584 = vsel %vm1328, %v892, %v1456
      %v1585 = vsel %vm1329, %v897, %v1457
      %v1586 = vsel %vm1330, %v900, %v1458
      %v1587 = vsel %vm1331, %v905, %v1459
      %v1588 = vsel %vm1332, %v908, %v1460
      %v1589 = vsel %vm1333, %v913, %v1461
      %v1590 = vsel %vm1334, %v916, %v1462
      %v1591 = vsel %vm1335, %v921, %v1463
      %v1592 = vsel %vm1336, %v924, %v1464
      %v1593 = vsel %vm1337, %v929, %v1465
      %v1594 = vsel %vm1338, %v932, %v1466
      %v1595 = vsel %vm1339, %v937, %v1467
      %v1596 = vsel %vm1340, %v940, %v1468
      %v1597 = vsel %vm1341, %v945, %v1469
      %v1598 = vsel %vm1342, %v948, %v1470
      %v1599 = vsel %vm1343, %v953, %v1471
      %v1600 = vsel %vm1344, %v956, %v1472
      %v1601 = vsel %vm1345, %v961, %v1473
      %v1602 = vsel %vm1346, %v964, %v1474
      %v1603 = vsel %vm1347, %v969, %v1475
      %v1604 = vsel %vm1348, %v972, %v1476
      %v1605 = vsel %vm1349, %v977, %v1477
      %v1606 = vsel %vm1350, %v980, %v1478
      %v1607 = vsel %vm1351, %v985, %v1479
      %v1608 = vsel %vm1352, %v988, %v1480
      %v1609 = vsel %vm1353, %v993, %v1481
      %v1610 = vsel %vm1354, %v996, %v1482
      %v1611 = vsel %vm1355, %v1001, %v1483
      %v1612 = vsel %vm1356, %v1004, %v1484
      %v1613 = vsel %vm1357, %v1009, %v1485
      %v1614 = vsel %vm1358, %v1012, %v1486
      %v1615 = vsel %vm1359, %v1017, %v1487
      %v1616 = vsel %vm1360, %v1020, %v1488
      %v1617 = vsel %vm1361, %v1025, %v1489
      %v1618 = vsel %vm1362, %v1028, %v1490
      %v1619 = vsel %vm1363, %v1033, %v1491
      %v1620 = vsel %vm1364, %v1036, %v1492
      %v1621 = vsel %vm1365, %v1041, %v1493
      %v1622 = vsel %vm1366, %v1044, %v1494
      %v1623 = vsel %vm1367, %v1049, %v1495
      %v1624 = vsel %vm1368, %v1052, %v1496
      %v1625 = vsel %vm1369, %v1057, %v1497
      %v1626 = vsel %vm1370, %v1060, %v1498
      %v1627 = vsel %vm1371, %v1065, %v1499
      %v1628 = vsel %vm1372, %v1068, %v1500
      %v1629 = vsel %vm1373, %v1073, %v1501
      %v1630 = vsel %vm1374, %v1076, %v1502
      %v1631 = vsel %vm1375, %v1081, %v1503
      %v1632 = vsel %vm1376, %v1084, %v1504
      %v1633 = vsel %vm1377, %v1089, %v1505
      %v1634 = vsel %vm1378, %v1092, %v1506
      %v1635 = vsel %vm1379, %v1097, %v1507
      %v1636 = vsel %vm1380, %v1100, %v1508
      %v1637 = vsel %vm1381, %v1105, %v1509
      %v1638 = vsel %vm1382, %v1108, %v1510
      %v1639 = vsel %vm1383, %v1113, %v1511
      %v1640 = vsel %vm1384, %v1116, %v1512
      %v1641 = vsel %vm1385, %v1121, %v1513
      %v1642 = vsel %vm1386, %v1124, %v1514
      %v1643 = vsel %vm1387, %v1129, %v1515
      %v1644 = vsel %vm1388, %v1132, %v1516
      %v1645 = vsel %vm1389, %v1137, %v1517
      %v1646 = vsel %vm1390, %v1140, %v1518
      %v1647 = vsel %vm1391, %v1145, %v1519
      %v1648 = vsel %vm1392, %v1148, %v1520
      %v1649 = vsel %vm1393, %v1153, %v1521
      %v1650 = vsel %vm1394, %v1156, %v1522
      %v1651 = vsel %vm1395, %v1161, %v1523
      %v1652 = vsel %vm1396, %v1164, %v1524
      %v1653 = vsel %vm1397, %v1169, %v1525
      %v1654 = vsel %vm1398, %v1172, %v1526
      %v1655 = vsel %vm1399, %v1177, %v1527
      %v1656 = vsel %vm1400, %v1180, %v1528
      %v1657 = vsel %vm1401, %v1185, %v1529
      %v1658 = vsel %vm1402, %v1188, %v1530
      %v1659 = vsel %vm1403, %v1193, %v1531
      %v1660 = vsel %vm1404, %v1196, %v1532
      %v1661 = vsel %vm1405, %v1201, %v1533
      %v1662 = vsel %vm1406, %v1204, %v1534
      %v1663 = vsel %vm1407, %v1209, %v1535
      %v1664 = vsel %vm1408, %v1212, %v1536
      %v1665 = vsel %vm1409, %v1217, %v1537
      %v1666 = vsel %vm1410, %v1220, %v1538
      %v1667 = vsel %vm1411, %v1225, %v1539
      %v1668 = vsel %vm1412, %v1228, %v1540
      %v1669 = vsel %vm1413, %v1233, %v1541
      %v1670 = vsel %vm1414, %v1236, %v1542
      %v1671 = vsel %vm1415, %v1241, %v1543
      %v1672 = vsel %vm1416, %v1244, %v1544
      %v1673 = vsel %vm1417, %v1249, %v1545
      %v1674 = vsel %vm1418, %v1252, %v1546
      %v1675 = vsel %vm1419, %v1257, %v1547
      %v1676 = vsel %vm1420, %v1260, %v1548
      %v1677 = vsel %vm1421, %v1265, %v1549
      %v1678 = vsel %vm1422, %v1268, %v1550
      %v1679 = vsel %vm1423, %v1273, %v1551
      %v1680 = vsel %vm1424, %v1276, %v1552
      %v1681 = vsel %vm1425, %v1281, %v1553
      %v1682 = vsel %vm1426, %v1284, %v1554
      %v1683 = vsel %vm1427, %v1289, %v1555
      %v1684 = vsel %vm1428, %v1292, %v1556
      %v1685 = vsel %vm1429, %v1297, %v1557
      %v1686 = vsel %vm1430, %v1300, %v1558
      %v1687 = vpack.c.bf16 %v1560, %v1559
      %v1688 = vpack.c.bf16 %v1562, %v1561
      %v1689 = vpack.c.bf16 %v1564, %v1563
      %v1690 = vpack.c.bf16 %v1566, %v1565
      %v1691 = vpack.c.bf16 %v1568, %v1567
      %v1692 = vpack.c.bf16 %v1570, %v1569
      %v1693 = vpack.c.bf16 %v1572, %v1571
      %v1694 = vpack.c.bf16 %v1574, %v1573
      %v1695 = vpack.c.bf16 %v1576, %v1575
      %v1696 = vpack.c.bf16 %v1578, %v1577
      %v1697 = vpack.c.bf16 %v1580, %v1579
      %v1698 = vpack.c.bf16 %v1582, %v1581
      %v1699 = vpack.c.bf16 %v1584, %v1583
      %v1700 = vpack.c.bf16 %v1586, %v1585
      %v1701 = vpack.c.bf16 %v1588, %v1587
      %v1702 = vpack.c.bf16 %v1590, %v1589
      %v1703 = vpack.c.bf16 %v1592, %v1591
      %v1704 = vpack.c.bf16 %v1594, %v1593
      %v1705 = vpack.c.bf16 %v1596, %v1595
      %v1706 = vpack.c.bf16 %v1598, %v1597
      %v1707 = vpack.c.bf16 %v1600, %v1599
      %v1708 = vpack.c.bf16 %v1602, %v1601
      %v1709 = vpack.c.bf16 %v1604, %v1603
      %v1710 = vpack.c.bf16 %v1606, %v1605
      %v1711 = vpack.c.bf16 %v1608, %v1607
      %v1712 = vpack.c.bf16 %v1610, %v1609
      %v1713 = vpack.c.bf16 %v1612, %v1611
      %v1714 = vpack.c.bf16 %v1614, %v1613
      %v1715 = vpack.c.bf16 %v1616, %v1615
      %v1716 = vpack.c.bf16 %v1618, %v1617
      %v1717 = vpack.c.bf16 %v1620, %v1619
      %v1718 = vpack.c.bf16 %v1622, %v1621
      %v1719 = vpack.c.bf16 %v1624, %v1623
      %v1720 = vpack.c.bf16 %v1626, %v1625
      %v1721 = vpack.c.bf16 %v1628, %v1627
      %v1722 = vpack.c.bf16 %v1630, %v1629
      %v1723 = vpack.c.bf16 %v1632, %v1631
      %v1724 = vpack.c.bf16 %v1634, %v1633
      %v1725 = vpack.c.bf16 %v1636, %v1635
      %v1726 = vpack.c.bf16 %v1638, %v1637
      %v1727 = vpack.c.bf16 %v1640, %v1639
      %v1728 = vpack.c.bf16 %v1642, %v1641
      %v1729 = vpack.c.bf16 %v1644, %v1643
      %v1730 = vpack.c.bf16 %v1646, %v1645
      %v1731 = vpack.c.bf16 %v1648, %v1647
      %v1732 = vpack.c.bf16 %v1650, %v1649
      %v1733 = vpack.c.bf16 %v1652, %v1651
      %v1734 = vpack.c.bf16 %v1654, %v1653
      %v1735 = vpack.c.bf16 %v1656, %v1655
      %v1736 = vpack.c.bf16 %v1658, %v1657
      %v1737 = vpack.c.bf16 %v1660, %v1659
      %v1738 = vpack.c.bf16 %v1662, %v1661
      %v1739 = vpack.c.bf16 %v1664, %v1663
      %v1740 = vpack.c.bf16 %v1666, %v1665
      %v1741 = vpack.c.bf16 %v1668, %v1667
      %v1742 = vpack.c.bf16 %v1670, %v1669
      %v1743 = vpack.c.bf16 %v1672, %v1671
      %v1744 = vpack.c.bf16 %v1674, %v1673
      %v1745 = vpack.c.bf16 %v1676, %v1675
      %v1746 = vpack.c.bf16 %v1678, %v1677
      %v1747 = vpack.c.bf16 %v1680, %v1679
      %v1748 = vpack.c.bf16 %v1682, %v1681
      %v1749 = vpack.c.bf16 %v1684, %v1683
      %v1750 = vpack.c.bf16 %v1686, %v1685
      %v1815 = vunpack.c.l.b16 %v1687
      %v1816 = vunpack.c.h.b16 %v1687
      %v1817 = vunpack.c.l.b16 %v1688
      %v1818 = vunpack.c.h.b16 %v1688
      %v1819 = vunpack.c.l.b16 %v1689
      %v1820 = vunpack.c.h.b16 %v1689
      %v1821 = vunpack.c.l.b16 %v1690
      %v1822 = vunpack.c.h.b16 %v1690
      %v1823 = vunpack.c.l.b16 %v1691
      %v1824 = vunpack.c.h.b16 %v1691
      %v1825 = vunpack.c.l.b16 %v1692
      %v1826 = vunpack.c.h.b16 %v1692
      %v1827 = vunpack.c.l.b16 %v1693
      %v1828 = vunpack.c.h.b16 %v1693
      %v1829 = vunpack.c.l.b16 %v1694
      %v1830 = vunpack.c.h.b16 %v1694
      %v1831 = vunpack.c.l.b16 %v1695
      %v1832 = vunpack.c.h.b16 %v1695
      %v1833 = vunpack.c.l.b16 %v1696
      %v1834 = vunpack.c.h.b16 %v1696
      %v1835 = vunpack.c.l.b16 %v1697
      %v1836 = vunpack.c.h.b16 %v1697
      %v1837 = vunpack.c.l.b16 %v1698
      %v1838 = vunpack.c.h.b16 %v1698
      %v1839 = vunpack.c.l.b16 %v1699
      %v1840 = vunpack.c.h.b16 %v1699
      %v1841 = vunpack.c.l.b16 %v1700
      %v1842 = vunpack.c.h.b16 %v1700
      %v1843 = vunpack.c.l.b16 %v1701
      %v1844 = vunpack.c.h.b16 %v1701
      %v1845 = vunpack.c.l.b16 %v1702
      %v1846 = vunpack.c.h.b16 %v1702
      %v1847 = vunpack.c.l.b16 %v1703
      %v1848 = vunpack.c.h.b16 %v1703
      %v1849 = vunpack.c.l.b16 %v1704
      %v1850 = vunpack.c.h.b16 %v1704
      %v1851 = vunpack.c.l.b16 %v1705
      %v1852 = vunpack.c.h.b16 %v1705
      %v1853 = vunpack.c.l.b16 %v1706
      %v1854 = vunpack.c.h.b16 %v1706
      %v1855 = vunpack.c.l.b16 %v1707
      %v1856 = vunpack.c.h.b16 %v1707
      %v1857 = vunpack.c.l.b16 %v1708
      %v1858 = vunpack.c.h.b16 %v1708
      %v1859 = vunpack.c.l.b16 %v1709
      %v1860 = vunpack.c.h.b16 %v1709
      %v1861 = vunpack.c.l.b16 %v1710
      %v1862 = vunpack.c.h.b16 %v1710
      %v1863 = vunpack.c.l.b16 %v1711
      %v1864 = vunpack.c.h.b16 %v1711
      %v1865 = vunpack.c.l.b16 %v1712
      %v1866 = vunpack.c.h.b16 %v1712
      %v1867 = vunpack.c.l.b16 %v1713
      %v1868 = vunpack.c.h.b16 %v1713
      %v1869 = vunpack.c.l.b16 %v1714
      %v1870 = vunpack.c.h.b16 %v1714
      %v1871 = vunpack.c.l.b16 %v1715
      %v1872 = vunpack.c.h.b16 %v1715
      %v1873 = vunpack.c.l.b16 %v1716
      %v1874 = vunpack.c.h.b16 %v1716
      %v1875 = vunpack.c.l.b16 %v1717
      %v1876 = vunpack.c.h.b16 %v1717
      %v1877 = vunpack.c.l.b16 %v1718
      %v1878 = vunpack.c.h.b16 %v1718
      %v1879 = vunpack.c.l.b16 %v1719
      %v1880 = vunpack.c.h.b16 %v1719
      %v1881 = vunpack.c.l.b16 %v1720
      %v1882 = vunpack.c.h.b16 %v1720
      %v1883 = vunpack.c.l.b16 %v1721
      %v1884 = vunpack.c.h.b16 %v1721
      %v1885 = vunpack.c.l.b16 %v1722
      %v1886 = vunpack.c.h.b16 %v1722
      %v1887 = vunpack.c.l.b16 %v1723
      %v1888 = vunpack.c.h.b16 %v1723
      %v1889 = vunpack.c.l.b16 %v1724
      %v1890 = vunpack.c.h.b16 %v1724
      %v1891 = vunpack.c.l.b16 %v1725
      %v1892 = vunpack.c.h.b16 %v1725
      %v1893 = vunpack.c.l.b16 %v1726
      %v1894 = vunpack.c.h.b16 %v1726
      %v1895 = vunpack.c.l.b16 %v1727
      %v1896 = vunpack.c.h.b16 %v1727
      %v1897 = vunpack.c.l.b16 %v1728
      %v1898 = vunpack.c.h.b16 %v1728
      %v1899 = vunpack.c.l.b16 %v1729
      %v1900 = vunpack.c.h.b16 %v1729
      %v1901 = vunpack.c.l.b16 %v1730
      %v1902 = vunpack.c.h.b16 %v1730
      %v1903 = vunpack.c.l.b16 %v1731
      %v1904 = vunpack.c.h.b16 %v1731
      %v1905 = vunpack.c.l.b16 %v1732
      %v1906 = vunpack.c.h.b16 %v1732
      %v1907 = vunpack.c.l.b16 %v1733
      %v1908 = vunpack.c.h.b16 %v1733
      %v1909 = vunpack.c.l.b16 %v1734
      %v1910 = vunpack.c.h.b16 %v1734
      %v1911 = vunpack.c.l.b16 %v1735
      %v1912 = vunpack.c.h.b16 %v1735
      %v1913 = vunpack.c.l.b16 %v1736
      %v1914 = vunpack.c.h.b16 %v1736
      %v1915 = vunpack.c.l.b16 %v1737
      %v1916 = vunpack.c.h.b16 %v1737
      %v1917 = vunpack.c.l.b16 %v1738
      %v1918 = vunpack.c.h.b16 %v1738
      %v1919 = vunpack.c.l.b16 %v1739
      %v1920 = vunpack.c.h.b16 %v1739
      %v1921 = vunpack.c.l.b16 %v1740
      %v1922 = vunpack.c.h.b16 %v1740
      %v1923 = vunpack.c.l.b16 %v1741
      %v1924 = vunpack.c.h.b16 %v1741
      %v1925 = vunpack.c.l.b16 %v1742
      %v1926 = vunpack.c.h.b16 %v1742
      %v1927 = vunpack.c.l.b16 %v1743
      %v1928 = vunpack.c.h.b16 %v1743
      %v1929 = vunpack.c.l.b16 %v1744
      %v1930 = vunpack.c.h.b16 %v1744
      %v1931 = vunpack.c.l.b16 %v1745
      %v1932 = vunpack.c.h.b16 %v1745
      %v1933 = vunpack.c.l.b16 %v1746
      %v1934 = vunpack.c.h.b16 %v1746
      %v1935 = vunpack.c.l.b16 %v1747
      %v1936 = vunpack.c.h.b16 %v1747
      %v1937 = vunpack.c.l.b16 %v1748
      %v1938 = vunpack.c.h.b16 %v1748
      %v1939 = vunpack.c.l.b16 %v1749
      %v1940 = vunpack.c.h.b16 %v1749
      %v1941 = vunpack.c.l.b16 %v1750
      %v1942 = vunpack.c.h.b16 %v1750
      %v1943 = vpack.c.b16 %v1815, %v1815
      %v1944 = vpack.c.b16 %v1816, %v1816
      %v1945 = vpack.c.b16 %v1817, %v1817
      %v1946 = vpack.c.b16 %v1818, %v1818
      %v1947 = vpack.c.b16 %v1819, %v1819
      %v1948 = vpack.c.b16 %v1820, %v1820
      %v1949 = vpack.c.b16 %v1821, %v1821
      %v1950 = vpack.c.b16 %v1822, %v1822
      %v1951 = vpack.c.b16 %v1823, %v1823
      %v1952 = vpack.c.b16 %v1824, %v1824
      %v1953 = vpack.c.b16 %v1825, %v1825
      %v1954 = vpack.c.b16 %v1826, %v1826
      %v1955 = vpack.c.b16 %v1827, %v1827
      %v1956 = vpack.c.b16 %v1828, %v1828
      %v1957 = vpack.c.b16 %v1829, %v1829
      %v1958 = vpack.c.b16 %v1830, %v1830
      %v1959 = vpack.c.b16 %v1831, %v1831
      %v1960 = vpack.c.b16 %v1832, %v1832
      %v1961 = vpack.c.b16 %v1833, %v1833
      %v1962 = vpack.c.b16 %v1834, %v1834
      %v1963 = vpack.c.b16 %v1835, %v1835
      %v1964 = vpack.c.b16 %v1836, %v1836
      %v1965 = vpack.c.b16 %v1837, %v1837
      %v1966 = vpack.c.b16 %v1838, %v1838
      %v1967 = vpack.c.b16 %v1839, %v1839
      %v1968 = vpack.c.b16 %v1840, %v1840
      %v1969 = vpack.c.b16 %v1841, %v1841
      %v1970 = vpack.c.b16 %v1842, %v1842
      %v1971 = vpack.c.b16 %v1843, %v1843
      %v1972 = vpack.c.b16 %v1844, %v1844
      %v1973 = vpack.c.b16 %v1845, %v1845
      %v1974 = vpack.c.b16 %v1846, %v1846
      %v1975 = vpack.c.b16 %v1847, %v1847
      %v1976 = vpack.c.b16 %v1848, %v1848
      %v1977 = vpack.c.b16 %v1849, %v1849
      %v1978 = vpack.c.b16 %v1850, %v1850
      %v1979 = vpack.c.b16 %v1851, %v1851
      %v1980 = vpack.c.b16 %v1852, %v1852
      %v1981 = vpack.c.b16 %v1853, %v1853
      %v1982 = vpack.c.b16 %v1854, %v1854
      %v1983 = vpack.c.b16 %v1855, %v1855
      %v1984 = vpack.c.b16 %v1856, %v1856
      %v1985 = vpack.c.b16 %v1857, %v1857
      %v1986 = vpack.c.b16 %v1858, %v1858
      %v1987 = vpack.c.b16 %v1859, %v1859
      %v1988 = vpack.c.b16 %v1860, %v1860
      %v1989 = vpack.c.b16 %v1861, %v1861
      %v1990 = vpack.c.b16 %v1862, %v1862
      %v1991 = vpack.c.b16 %v1863, %v1863
      %v1992 = vpack.c.b16 %v1864, %v1864
      %v1993 = vpack.c.b16 %v1865, %v1865
      %v1994 = vpack.c.b16 %v1866, %v1866
      %v1995 = vpack.c.b16 %v1867, %v1867
      %v1996 = vpack.c.b16 %v1868, %v1868
      %v1997 = vpack.c.b16 %v1869, %v1869
      %v1998 = vpack.c.b16 %v1870, %v1870
      %v1999 = vpack.c.b16 %v1871, %v1871
      %v2000 = vpack.c.b16 %v1872, %v1872
      %v2001 = vpack.c.b16 %v1873, %v1873
      %v2002 = vpack.c.b16 %v1874, %v1874
      %v2003 = vpack.c.b16 %v1875, %v1875
      %v2004 = vpack.c.b16 %v1876, %v1876
      %v2005 = vpack.c.b16 %v1877, %v1877
      %v2006 = vpack.c.b16 %v1878, %v1878
      %v2007 = vpack.c.b16 %v1879, %v1879
      %v2008 = vpack.c.b16 %v1880, %v1880
      %v2009 = vpack.c.b16 %v1881, %v1881
      %v2010 = vpack.c.b16 %v1882, %v1882
      %v2011 = vpack.c.b16 %v1883, %v1883
      %v2012 = vpack.c.b16 %v1884, %v1884
      %v2013 = vpack.c.b16 %v1885, %v1885
      %v2014 = vpack.c.b16 %v1886, %v1886
      %v2015 = vpack.c.b16 %v1887, %v1887
      %v2016 = vpack.c.b16 %v1888, %v1888
      %v2017 = vpack.c.b16 %v1889, %v1889
      %v2018 = vpack.c.b16 %v1890, %v1890
      %v2019 = vpack.c.b16 %v1891, %v1891
      %v2020 = vpack.c.b16 %v1892, %v1892
      %v2021 = vpack.c.b16 %v1893, %v1893
      %v2022 = vpack.c.b16 %v1894, %v1894
      %v2023 = vpack.c.b16 %v1895, %v1895
      %v2024 = vpack.c.b16 %v1896, %v1896
      %v2025 = vpack.c.b16 %v1897, %v1897
      %v2026 = vpack.c.b16 %v1898, %v1898
      %v2027 = vpack.c.b16 %v1899, %v1899
      %v2028 = vpack.c.b16 %v1900, %v1900
      %v2029 = vpack.c.b16 %v1901, %v1901
      %v2030 = vpack.c.b16 %v1902, %v1902
      %v2031 = vpack.c.b16 %v1903, %v1903
      %v2032 = vpack.c.b16 %v1904, %v1904
      %v2033 = vpack.c.b16 %v1905, %v1905
      %v2034 = vpack.c.b16 %v1906, %v1906
      %v2035 = vpack.c.b16 %v1907, %v1907
      %v2036 = vpack.c.b16 %v1908, %v1908
      %v2037 = vpack.c.b16 %v1909, %v1909
      %v2038 = vpack.c.b16 %v1910, %v1910
      %v2039 = vpack.c.b16 %v1911, %v1911
      %v2040 = vpack.c.b16 %v1912, %v1912
      %v2041 = vpack.c.b16 %v1913, %v1913
      %v2042 = vpack.c.b16 %v1914, %v1914
      %v2043 = vpack.c.b16 %v1915, %v1915
      %v2044 = vpack.c.b16 %v1916, %v1916
      %v2045 = vpack.c.b16 %v1917, %v1917
      %v2046 = vpack.c.b16 %v1918, %v1918
      %v2047 = vpack.c.b16 %v1919, %v1919
      %v2048 = vpack.c.b16 %v1920, %v1920
      %v2049 = vpack.c.b16 %v1921, %v1921
      %v2050 = vpack.c.b16 %v1922, %v1922
      %v2051 = vpack.c.b16 %v1923, %v1923
      %v2052 = vpack.c.b16 %v1924, %v1924
      %v2053 = vpack.c.b16 %v1925, %v1925
      %v2054 = vpack.c.b16 %v1926, %v1926
      %v2055 = vpack.c.b16 %v1927, %v1927
      %v2056 = vpack.c.b16 %v1928, %v1928
      %v2057 = vpack.c.b16 %v1929, %v1929
      %v2058 = vpack.c.b16 %v1930, %v1930
      %v2059 = vpack.c.b16 %v1931, %v1931
      %v2060 = vpack.c.b16 %v1932, %v1932
      %v2061 = vpack.c.b16 %v1933, %v1933
      %v2062 = vpack.c.b16 %v1934, %v1934
      %v2063 = vpack.c.b16 %v1935, %v1935
      %v2064 = vpack.c.b16 %v1936, %v1936
      %v2065 = vpack.c.b16 %v1937, %v1937
      %v2066 = vpack.c.b16 %v1938, %v1938
      %v2067 = vpack.c.b16 %v1939, %v1939
      %v2068 = vpack.c.b16 %v1940, %v1940
      %v2069 = vpack.c.b16 %v1941, %v1941
      %v2070 = vpack.c.b16 %v1942, %v1942
      %vm2199 = vcmask 60416
      %2200 = vst.msk [vmem:[%s172] sm:$0xf] %vm2199, %v1943
      %2201 = vst.msk [vmem:[%s172 + $0x4] sm:$0xf] %vm2199, %v1944
      %2202 = vst.msk [vmem:[%s172 + $0x8] sm:$0xf] %vm2199, %v1945
      %2203 = vst.msk [vmem:[%s172 + $0xc] sm:$0xf] %vm2199, %v1946
      %2204 = vst.msk [vmem:[%s172 + $0x10] sm:$0xf] %vm2199, %v1947
      %2205 = vst.msk [vmem:[%s172 + $0x14] sm:$0xf] %vm2199, %v1948
      %2206 = vst.msk [vmem:[%s172 + $0x18] sm:$0xf] %vm2199, %v1949
      %2207 = vst.msk [vmem:[%s172 + $0x1c] sm:$0xf] %vm2199, %v1950
      %2208 = vst.msk [vmem:[%s172 + $0x20] sm:$0xf] %vm2199, %v1951
      %2209 = vst.msk [vmem:[%s172 + $0x24] sm:$0xf] %vm2199, %v1952
      %2210 = vst.msk [vmem:[%s172 + $0x28] sm:$0xf] %vm2199, %v1953
      %2211 = vst.msk [vmem:[%s172 + $0x2c] sm:$0xf] %vm2199, %v1954
      %2212 = vst.msk [vmem:[%s172 + $0x30] sm:$0xf] %vm2199, %v1955
      %2213 = vst.msk [vmem:[%s172 + $0x34] sm:$0xf] %vm2199, %v1956
      %2214 = vst.msk [vmem:[%s172 + $0x38] sm:$0xf] %vm2199, %v1957
      %2215 = vst.msk [vmem:[%s172 + $0x3c] sm:$0xf] %vm2199, %v1958
      %2216 = vst.msk [vmem:[%s172 + $0x40] sm:$0xf] %vm2199, %v1959
      %2217 = vst.msk [vmem:[%s172 + $0x44] sm:$0xf] %vm2199, %v1960
      %2218 = vst.msk [vmem:[%s172 + $0x48] sm:$0xf] %vm2199, %v1961
      %2219 = vst.msk [vmem:[%s172 + $0x4c] sm:$0xf] %vm2199, %v1962
      %2220 = vst.msk [vmem:[%s172 + $0x50] sm:$0xf] %vm2199, %v1963
      %2221 = vst.msk [vmem:[%s172 + $0x54] sm:$0xf] %vm2199, %v1964
      %2222 = vst.msk [vmem:[%s172 + $0x58] sm:$0xf] %vm2199, %v1965
      %2223 = vst.msk [vmem:[%s172 + $0x5c] sm:$0xf] %vm2199, %v1966
      %2224 = vst.msk [vmem:[%s172 + $0x60] sm:$0xf] %vm2199, %v1967
      %2225 = vst.msk [vmem:[%s172 + $0x64] sm:$0xf] %vm2199, %v1968
      %2226 = vst.msk [vmem:[%s172 + $0x68] sm:$0xf] %vm2199, %v1969
      %2227 = vst.msk [vmem:[%s172 + $0x6c] sm:$0xf] %vm2199, %v1970
      %2228 = vst.msk [vmem:[%s172 + $0x70] sm:$0xf] %vm2199, %v1971
      %2229 = vst.msk [vmem:[%s172 + $0x74] sm:$0xf] %vm2199, %v1972
      %2230 = vst.msk [vmem:[%s172 + $0x78] sm:$0xf] %vm2199, %v1973
      %2231 = vst.msk [vmem:[%s172 + $0x7c] sm:$0xf] %vm2199, %v1974
      %2232 = vst.msk [vmem:[%s172 + $0x80] sm:$0xf] %vm2199, %v1975
      %2233 = vst.msk [vmem:[%s172 + $0x84] sm:$0xf] %vm2199, %v1976
      %2234 = vst.msk [vmem:[%s172 + $0x88] sm:$0xf] %vm2199, %v1977
      %2235 = vst.msk [vmem:[%s172 + $0x8c] sm:$0xf] %vm2199, %v1978
      %2236 = vst.msk [vmem:[%s172 + $0x90] sm:$0xf] %vm2199, %v1979
      %2237 = vst.msk [vmem:[%s172 + $0x94] sm:$0xf] %vm2199, %v1980
      %2238 = vst.msk [vmem:[%s172 + $0x98] sm:$0xf] %vm2199, %v1981
      %2239 = vst.msk [vmem:[%s172 + $0x9c] sm:$0xf] %vm2199, %v1982
      %2240 = vst.msk [vmem:[%s172 + $0xa0] sm:$0xf] %vm2199, %v1983
      %2241 = vst.msk [vmem:[%s172 + $0xa4] sm:$0xf] %vm2199, %v1984
      %2242 = vst.msk [vmem:[%s172 + $0xa8] sm:$0xf] %vm2199, %v1985
      %2243 = vst.msk [vmem:[%s172 + $0xac] sm:$0xf] %vm2199, %v1986
      %2244 = vst.msk [vmem:[%s172 + $0xb0] sm:$0xf] %vm2199, %v1987
      %2245 = vst.msk [vmem:[%s172 + $0xb4] sm:$0xf] %vm2199, %v1988
      %2246 = vst.msk [vmem:[%s172 + $0xb8] sm:$0xf] %vm2199, %v1989
      %2247 = vst.msk [vmem:[%s172 + $0xbc] sm:$0xf] %vm2199, %v1990
      %2248 = vst.msk [vmem:[%s172 + $0xc0] sm:$0xf] %vm2199, %v1991
      %2249 = vst.msk [vmem:[%s172 + $0xc4] sm:$0xf] %vm2199, %v1992
      %2250 = vst.msk [vmem:[%s172 + $0xc8] sm:$0xf] %vm2199, %v1993
      %2251 = vst.msk [vmem:[%s172 + $0xcc] sm:$0xf] %vm2199, %v1994
      %2252 = vst.msk [vmem:[%s172 + $0xd0] sm:$0xf] %vm2199, %v1995
      %2253 = vst.msk [vmem:[%s172 + $0xd4] sm:$0xf] %vm2199, %v1996
      %2254 = vst.msk [vmem:[%s172 + $0xd8] sm:$0xf] %vm2199, %v1997
      %2255 = vst.msk [vmem:[%s172 + $0xdc] sm:$0xf] %vm2199, %v1998
      %2256 = vst.msk [vmem:[%s172 + $0xe0] sm:$0xf] %vm2199, %v1999
      %2257 = vst.msk [vmem:[%s172 + $0xe4] sm:$0xf] %vm2199, %v2000
      %2258 = vst.msk [vmem:[%s172 + $0xe8] sm:$0xf] %vm2199, %v2001
      %2259 = vst.msk [vmem:[%s172 + $0xec] sm:$0xf] %vm2199, %v2002
      %2260 = vst.msk [vmem:[%s172 + $0xf0] sm:$0xf] %vm2199, %v2003
      %2261 = vst.msk [vmem:[%s172 + $0xf4] sm:$0xf] %vm2199, %v2004
      %2262 = vst.msk [vmem:[%s172 + $0xf8] sm:$0xf] %vm2199, %v2005
      %2263 = vst.msk [vmem:[%s172 + $0xfc] sm:$0xf] %vm2199, %v2006
      %2264 = vst.msk [vmem:[%s172 + $0x100] sm:$0xf] %vm2199, %v2007
      %2265 = vst.msk [vmem:[%s172 + $0x104] sm:$0xf] %vm2199, %v2008
      %2266 = vst.msk [vmem:[%s172 + $0x108] sm:$0xf] %vm2199, %v2009
      %2267 = vst.msk [vmem:[%s172 + $0x10c] sm:$0xf] %vm2199, %v2010
      %2268 = vst.msk [vmem:[%s172 + $0x110] sm:$0xf] %vm2199, %v2011
      %2269 = vst.msk [vmem:[%s172 + $0x114] sm:$0xf] %vm2199, %v2012
      %2270 = vst.msk [vmem:[%s172 + $0x118] sm:$0xf] %vm2199, %v2013
      %2271 = vst.msk [vmem:[%s172 + $0x11c] sm:$0xf] %vm2199, %v2014
      %2272 = vst.msk [vmem:[%s172 + $0x120] sm:$0xf] %vm2199, %v2015
      %2273 = vst.msk [vmem:[%s172 + $0x124] sm:$0xf] %vm2199, %v2016
      %2274 = vst.msk [vmem:[%s172 + $0x128] sm:$0xf] %vm2199, %v2017
      %2275 = vst.msk [vmem:[%s172 + $0x12c] sm:$0xf] %vm2199, %v2018
      %2276 = vst.msk [vmem:[%s172 + $0x130] sm:$0xf] %vm2199, %v2019
      %2277 = vst.msk [vmem:[%s172 + $0x134] sm:$0xf] %vm2199, %v2020
      %2278 = vst.msk [vmem:[%s172 + $0x138] sm:$0xf] %vm2199, %v2021
      %2279 = vst.msk [vmem:[%s172 + $0x13c] sm:$0xf] %vm2199, %v2022
      %2280 = vst.msk [vmem:[%s172 + $0x140] sm:$0xf] %vm2199, %v2023
      %2281 = vst.msk [vmem:[%s172 + $0x144] sm:$0xf] %vm2199, %v2024
      %2282 = vst.msk [vmem:[%s172 + $0x148] sm:$0xf] %vm2199, %v2025
      %2283 = vst.msk [vmem:[%s172 + $0x14c] sm:$0xf] %vm2199, %v2026
      %2284 = vst.msk [vmem:[%s172 + $0x150] sm:$0xf] %vm2199, %v2027
      %2285 = vst.msk [vmem:[%s172 + $0x154] sm:$0xf] %vm2199, %v2028
      %2286 = vst.msk [vmem:[%s172 + $0x158] sm:$0xf] %vm2199, %v2029
      %2287 = vst.msk [vmem:[%s172 + $0x15c] sm:$0xf] %vm2199, %v2030
      %2288 = vst.msk [vmem:[%s172 + $0x160] sm:$0xf] %vm2199, %v2031
      %2289 = vst.msk [vmem:[%s172 + $0x164] sm:$0xf] %vm2199, %v2032
      %2290 = vst.msk [vmem:[%s172 + $0x168] sm:$0xf] %vm2199, %v2033
      %2291 = vst.msk [vmem:[%s172 + $0x16c] sm:$0xf] %vm2199, %v2034
      %2292 = vst.msk [vmem:[%s172 + $0x170] sm:$0xf] %vm2199, %v2035
      %2293 = vst.msk [vmem:[%s172 + $0x174] sm:$0xf] %vm2199, %v2036
      %2294 = vst.msk [vmem:[%s172 + $0x178] sm:$0xf] %vm2199, %v2037
      %2295 = vst.msk [vmem:[%s172 + $0x17c] sm:$0xf] %vm2199, %v2038
      %2296 = vst.msk [vmem:[%s172 + $0x180] sm:$0xf] %vm2199, %v2039
      %2297 = vst.msk [vmem:[%s172 + $0x184] sm:$0xf] %vm2199, %v2040
      %2298 = vst.msk [vmem:[%s172 + $0x188] sm:$0xf] %vm2199, %v2041
      %2299 = vst.msk [vmem:[%s172 + $0x18c] sm:$0xf] %vm2199, %v2042
      %2300 = vst.msk [vmem:[%s172 + $0x190] sm:$0xf] %vm2199, %v2043
      %2301 = vst.msk [vmem:[%s172 + $0x194] sm:$0xf] %vm2199, %v2044
      %2302 = vst.msk [vmem:[%s172 + $0x198] sm:$0xf] %vm2199, %v2045
      %2303 = vst.msk [vmem:[%s172 + $0x19c] sm:$0xf] %vm2199, %v2046
      %2304 = vst.msk [vmem:[%s172 + $0x1a0] sm:$0xf] %vm2199, %v2047
      %2305 = vst.msk [vmem:[%s172 + $0x1a4] sm:$0xf] %vm2199, %v2048
      %2306 = vst.msk [vmem:[%s172 + $0x1a8] sm:$0xf] %vm2199, %v2049
      %2307 = vst.msk [vmem:[%s172 + $0x1ac] sm:$0xf] %vm2199, %v2050
      %2308 = vst.msk [vmem:[%s172 + $0x1b0] sm:$0xf] %vm2199, %v2051
      %2309 = vst.msk [vmem:[%s172 + $0x1b4] sm:$0xf] %vm2199, %v2052
      %2310 = vst.msk [vmem:[%s172 + $0x1b8] sm:$0xf] %vm2199, %v2053
      %2311 = vst.msk [vmem:[%s172 + $0x1bc] sm:$0xf] %vm2199, %v2054
      %2312 = vst.msk [vmem:[%s172 + $0x1c0] sm:$0xf] %vm2199, %v2055
      %2313 = vst.msk [vmem:[%s172 + $0x1c4] sm:$0xf] %vm2199, %v2056
      %2314 = vst.msk [vmem:[%s172 + $0x1c8] sm:$0xf] %vm2199, %v2057
      %2315 = vst.msk [vmem:[%s172 + $0x1cc] sm:$0xf] %vm2199, %v2058
      %2316 = vst.msk [vmem:[%s172 + $0x1d0] sm:$0xf] %vm2199, %v2059
      %2317 = vst.msk [vmem:[%s172 + $0x1d4] sm:$0xf] %vm2199, %v2060
      %2318 = vst.msk [vmem:[%s172 + $0x1d8] sm:$0xf] %vm2199, %v2061
      %2319 = vst.msk [vmem:[%s172 + $0x1dc] sm:$0xf] %vm2199, %v2062
      %2320 = vst.msk [vmem:[%s172 + $0x1e0] sm:$0xf] %vm2199, %v2063
      %2321 = vst.msk [vmem:[%s172 + $0x1e4] sm:$0xf] %vm2199, %v2064
      %2322 = vst.msk [vmem:[%s172 + $0x1e8] sm:$0xf] %vm2199, %v2065
      %2323 = vst.msk [vmem:[%s172 + $0x1ec] sm:$0xf] %vm2199, %v2066
      %2324 = vst.msk [vmem:[%s172 + $0x1f0] sm:$0xf] %vm2199, %v2067
      %2325 = vst.msk [vmem:[%s172 + $0x1f4] sm:$0xf] %vm2199, %v2068
      %2326 = vst.msk [vmem:[%s172 + $0x1f8] sm:$0xf] %vm2199, %v2069
      %2327 = vst.msk [vmem:[%s172 + $0x1fc] sm:$0xf] %vm2199, %v2070
      %s2328 = smul.u32 128, %s14
      %p2329 = scmp.lt.s32.totalorder %s2328, 255
      %s2330 = scalar_select %p2329, %s2328, 255
      %s2331 = smul.addr %s2330, 4
      %s2332 = scalar_lea.vmem %s3, %s2331
      // Predicated region
      $region33: #{discriminator_forward.4} parent=31 // pred_check
        %p2333 = pneg %p100
      $region34: #{discriminator_forward.4} parent=31 // pred_check_branch
        %2335 = sbr.rel (%p2333) target = $region36
      $region35: #{discriminator_forward.4} parent=31 // pred_region
        %s2336 = smul.u32 128, %s14
      $region36: #{discriminator_forward.4} parent=31 // pred_fallthru
        _
    $region32: #{discriminator_forward.4} parent=5 // pred_fallthru
      _
    %p2337 = scmp.le.s32.totalorder 2, %s9
    // Predicated region
    $region37: #{discriminator_forward.4} parent=5 // pred_check
      %p2338 = pneg %p2337
    $region38: #{discriminator_forward.4} parent=5 // pred_check_branch
      %2340 = sbr.rel (%p2338) target = $region40
    $region39: #{discriminator_forward.4} parent=5 // pred_region
      %s2341 = ssub.s32 %s9, 2
      // Predicated region
      $region41: #{discriminator_forward.4} parent=39 // pred_check
        %p2342 = pneg %p106
      $region42: #{discriminator_forward.4} parent=39 // pred_check_branch
        %2344 = sbr.rel (%p2342) target = $region44
      $region43: #{discriminator_forward.4} parent=39 // pred_region
        %s2345 = smul.u32 128, %s15
        %p2346 = scmp.lt.s32.totalorder %s2345, 255
        %s2347 = scalar_select %p2346, %s2345, 255
        %s2348 = smul.addr %s2347, 4
        %s2349 = scalar_lea.vmem %s3, %s2348
      $region44: #{discriminator_forward.4} parent=39 // pred_fallthru
        _
    $region40: #{discriminator_forward.4} parent=5 // pred_fallthru
      _
  $region6: #{discriminator_forward.4} parent=0 // loop_footer
    %s13 = sadd.s32 1, %s9
  $region7: #{discriminator_forward.4} parent=0 // loop_footer_branch
    %8 = sbr.rel target = $region3
  $region8: #{discriminator_forward.4} parent=0 // loop_exit
    _

// kernel: discriminator_forward.5
$region0: #{discriminator_forward.5}
  #allocation0 [shape = 'u32[]', space=smem, size = 0x4, offset = 0x4, fixed_abs, tag = 'smem constant byte address 0x4 - core index']
  #allocation1 [shape = 'u32[144,128]{1,0:T(1,128)}', space=vmem, size = 0x12000, scoped, tag = 'internal scratch']
  #allocation2 [shape = 'f32[1,16]{1,0:T(1,128)}', space=vmem, size = 0x200, scoped, tag = 'scratch operand']
  #allocation3 [shape = 'f32[1,16]{1,0:T(1,128)}', space=vmem, size = 0x200, scoped, tag = 'scratch operand']
  %s0 = inlined_call_operand.vmem [shape: bf16[512,128], index: 0, kind: input, shape index: {}]
  %s1 = inlined_call_operand.vmem [shape: bf16[128,16], index: 1, kind: input, shape index: {}]
  %s2 = inlined_call_operand.vmem [shape: f32[1,16], index: 2, kind: input, shape index: {}]
  %s3 = inlined_call_operand.vmem [shape: f32[1,16], index: 3, kind: input, shape index: {}]
  %s4 = inlined_call_operand.vmem [shape: bf16[512,16], index: 4, kind: output, shape index: {}]
  %s5 = sld [smem:[#allocation0]]
  $region61: #{discriminator_forward.5} parent=0
    _
  %s7 = ssub.s32 1, %s5
  %s8 = scalar_select 0, %s7, %s5
  loop: start=0, step=1, limit=4
  $region2: #{discriminator_forward.5} parent=0 // loop_pre_header
    _
  $region3: #{discriminator_forward.5} parent=0 // loop_header
    %s10 = sphi 0, %s14
    %p11 = scmp.ge.s32.totalorder %s10, 4
    %s17 = sphi 0, %s29
    %s18 = sphi 0, %s25
    %s19 = sphi 0, %s17
    %s20 = sphi 0, %s18
    %s21 = sphi 0, %s19
    %s22 = sphi 0, %s20
    %s32 = sphi 0, %s34
    %s35 = sphi 0, %s32
    %s36 = sphi 0, %s35
    %s52 = sphi 0, %s36
    %s56 = sphi 0, %s56
    %s58 = sphi 0, %s56
    %s59 = sphi 0, %s58
    %s73 = sphi 0, %s59
    %s77 = sphi 0, %s77
    %s79 = sphi 0, %s77
    %s80 = sphi 0, %s79
    %s94 = sphi 0, %s80
    %s98 = sphi 0, %s98
    %s100 = sphi 0, %s98
    %s101 = sphi 0, %s100
    %s115 = sphi 0, %s101
    %s121 = sphi 0, %s123
    %s124 = sphi 0, %s121
    %s125 = sphi 0, %s124
    %s141 = sphi 0, %s125
  $region4: #{discriminator_forward.5} parent=0 // loop_header_branch
    %13 = sbr.rel (%p11) target = $region8
  $region5: #{discriminator_forward.5} parent=0 // loop_body
    %s15 = ssub.s32 %s10, 1
    %s16 = ssub.s32 %s10, 2
    %s23 = sadd.s32 1, %s18
    %p24 = scmp.ge.s32.totalorder %s23, 1
    %s25 = scalar_select %p24, 0, %s23
    %s26 = sadd.s32 1, %s17
    %s27 = scalar_select %p24, %s26, %s17
    %p28 = scmp.ge.s32.totalorder %s27, 2
    %s29 = scalar_select %p28, 0, %s27
    %s30 = ssub.s32 %s18, %s25
    %p31 = scmp.eq.s32.totalorder %s30, 0
    %s33 = sadd.s32 %s32, 1
    %s34 = scalar_select %p31, %s32, %s33
    %p37 = pneg %p31
    %p38 = scmp.eq.s32.totalorder %s10, 1
    %p39 = por %p37, %p38
    %p40 = scmp.ne.s32.totalorder %s32, %s35
    %p41 = scmp.eq.s32.totalorder %s10, 0
    %p42 = por %p40, %p41
    %p43 = scmp.ne.s32.totalorder %s32, %s35
    %p44 = scmp.eq.s32.totalorder %s15, 1
    %p45 = por %p43, %p44
    %p46 = scmp.ne.s32.totalorder %s35, %s36
    %p47 = scmp.eq.s32.totalorder %s15, 0
    %p48 = por %p46, %p47
    %p49 = scmp.ne.s32.totalorder %s35, %s36
    %p50 = scmp.eq.s32.totalorder %s16, 1
    %p51 = por %p49, %p50
    %p53 = scmp.ne.s32.totalorder %s36, %s52
    %p54 = scmp.eq.s32.totalorder %s16, 0
    %p55 = por %p53, %p54
    %s57 = sadd.s32 %s56, 1
    %p60 = scmp.eq.s32.totalorder %s10, 1
    %p61 = scmp.ne.s32.totalorder %s56, %s58
    %p62 = scmp.eq.s32.totalorder %s10, 0
    %p63 = por %p61, %p62
    %p64 = scmp.ne.s32.totalorder %s56, %s58
    %p65 = scmp.eq.s32.totalorder %s15, 1
    %p66 = por %p64, %p65
    %p67 = scmp.ne.s32.totalorder %s58, %s59
    %p68 = scmp.eq.s32.totalorder %s15, 0
    %p69 = por %p67, %p68
    %p70 = scmp.ne.s32.totalorder %s58, %s59
    %p71 = scmp.eq.s32.totalorder %s16, 1
    %p72 = por %p70, %p71
    %p74 = scmp.ne.s32.totalorder %s59, %s73
    %p75 = scmp.eq.s32.totalorder %s16, 0
    %p76 = por %p74, %p75
    %s78 = sadd.s32 %s77, 1
    %p81 = scmp.eq.s32.totalorder %s10, 1
    %p82 = scmp.ne.s32.totalorder %s77, %s79
    %p83 = scmp.eq.s32.totalorder %s10, 0
    %p84 = por %p82, %p83
    %p85 = scmp.ne.s32.totalorder %s77, %s79
    %p86 = scmp.eq.s32.totalorder %s15, 1
    %p87 = por %p85, %p86
    %p88 = scmp.ne.s32.totalorder %s79, %s80
    %p89 = scmp.eq.s32.totalorder %s15, 0
    %p90 = por %p88, %p89
    %p91 = scmp.ne.s32.totalorder %s79, %s80
    %p92 = scmp.eq.s32.totalorder %s16, 1
    %p93 = por %p91, %p92
    %p95 = scmp.ne.s32.totalorder %s80, %s94
    %p96 = scmp.eq.s32.totalorder %s16, 0
    %p97 = por %p95, %p96
    %s99 = sadd.s32 %s98, 1
    %p102 = scmp.eq.s32.totalorder %s10, 1
    %p103 = scmp.ne.s32.totalorder %s98, %s100
    %p104 = scmp.eq.s32.totalorder %s10, 0
    %p105 = por %p103, %p104
    %p106 = scmp.ne.s32.totalorder %s98, %s100
    %p107 = scmp.eq.s32.totalorder %s15, 1
    %p108 = por %p106, %p107
    %p109 = scmp.ne.s32.totalorder %s100, %s101
    %p110 = scmp.eq.s32.totalorder %s15, 0
    %p111 = por %p109, %p110
    %p112 = scmp.ne.s32.totalorder %s100, %s101
    %p113 = scmp.eq.s32.totalorder %s16, 1
    %p114 = por %p112, %p113
    %p116 = scmp.ne.s32.totalorder %s101, %s115
    %p117 = scmp.eq.s32.totalorder %s16, 0
    %p118 = por %p116, %p117
    %s119 = ssub.s32 %s18, %s25
    %p120 = scmp.eq.s32.totalorder %s119, 0
    %s122 = sadd.s32 %s121, 1
    %s123 = scalar_select %p120, %s121, %s122
    %p126 = pneg %p120
    %p127 = scmp.eq.s32.totalorder %s10, 1
    %p128 = por %p126, %p127
    %p129 = scmp.ne.s32.totalorder %s121, %s124
    %p130 = scmp.eq.s32.totalorder %s10, 0
    %p131 = por %p129, %p130
    %p132 = scmp.ne.s32.totalorder %s121, %s124
    %p133 = scmp.eq.s32.totalorder %s15, 1
    %p134 = por %p132, %p133
    %p135 = scmp.ne.s32.totalorder %s124, %s125
    %p136 = scmp.eq.s32.totalorder %s15, 0
    %p137 = por %p135, %p136
    %p138 = scmp.ne.s32.totalorder %s124, %s125
    %p139 = scmp.eq.s32.totalorder %s16, 1
    %p140 = por %p138, %p139
    %p142 = scmp.ne.s32.totalorder %s125, %s141
    %p143 = scmp.eq.s32.totalorder %s16, 0
    %p144 = por %p142, %p143
    %p145 = scmp.le.s32.totalorder 1, %s10
    %p146 = scmp.lt.s32.totalorder %s10, 3
    %p147 = pnand %p145, %p146
    %p148 = pneg %p147
    // Predicated region
    $region9: #{discriminator_forward.5} parent=5 // pred_check
      _
    $region10: #{discriminator_forward.5} parent=5 // pred_check_branch
      %150 = sbr.rel (%p147) target = $region12
    $region11: #{discriminator_forward.5} parent=5 // pred_region
      %s151 = ssub.s32 %s10, 1
      // Predicated region
      $region13: #{discriminator_forward.5} parent=11 // pred_check
        %p152 = pneg %p48
      $region14: #{discriminator_forward.5} parent=11 // pred_check_branch
        %154 = sbr.rel (%p152) target = $region16
      $region15: #{discriminator_forward.5} parent=11 // pred_region
        %s155 = smul.u32 64, %s20
        %p156 = scmp.lt.s32.totalorder %s155, 63
        %s157 = scalar_select %p156, %s155, 63
        %s158 = smul.addr %s157, 4
        %s159 = scalar_lea.vmem %s0, %s158
        %s160 = smul.u32 64, %s20
      $region16: #{discriminator_forward.5} parent=11 // pred_fallthru
        _
      // Predicated region
      $region17: #{discriminator_forward.5} parent=11 // pred_check
        %p161 = pneg %p69
      $region18: #{discriminator_forward.5} parent=11 // pred_check_branch
        %163 = sbr.rel (%p161) target = $region20
      $region19: #{discriminator_forward.5} parent=11 // pred_region
        _
      $region20: #{discriminator_forward.5} parent=11 // pred_fallthru
        _
      // Predicated region
      $region21: #{discriminator_forward.5} parent=11 // pred_check
        %p164 = pneg %p90
      $region22: #{discriminator_forward.5} parent=11 // pred_check_branch
        %166 = sbr.rel (%p164) target = $region24
      $region23: #{discriminator_forward.5} parent=11 // pred_region
        _
      $region24: #{discriminator_forward.5} parent=11 // pred_fallthru
        _
      // Predicated region
      $region25: #{discriminator_forward.5} parent=11 // pred_check
        %p167 = pneg %p111
      $region26: #{discriminator_forward.5} parent=11 // pred_check_branch
        %169 = sbr.rel (%p167) target = $region28
      $region27: #{discriminator_forward.5} parent=11 // pred_region
        _
      $region28: #{discriminator_forward.5} parent=11 // pred_fallthru
        _
    $region12: #{discriminator_forward.5} parent=5 // pred_fallthru
      _
    %p170 = scmp.lt.s32.totalorder %s10, 2
    // Predicated region
    $region29: #{discriminator_forward.5} parent=5 // pred_check
      %p171 = pneg %p170
    $region30: #{discriminator_forward.5} parent=5 // pred_check_branch
      %173 = sbr.rel (%p171) target = $region32
    $region31: #{discriminator_forward.5} parent=5 // pred_region
      _
    $region32: #{discriminator_forward.5} parent=5 // pred_fallthru
      _
    %p174 = scmp.le.s32.totalorder 1, %s10
    %p175 = scmp.lt.s32.totalorder %s10, 3
    %p176 = pnand %p174, %p175
    %p177 = pneg %p176
    // Predicated region
    $region33: #{discriminator_forward.5} parent=5 // pred_check
      _
    $region34: #{discriminator_forward.5} parent=5 // pred_check_branch
      %179 = sbr.rel (%p176) target = $region36
    $region35: #{discriminator_forward.5} parent=5 // pred_region
      %s180 = ssub.s32 %s10, 1
      %s181 = smul.u32 64, %s20
      %p182 = scmp.lt.s32.totalorder %s181, 63
      %s183 = scalar_select %p182, %s181, 63
      %s184 = smul.addr %s183, 4
      %s185 = scalar_lea.vmem %s0, %s184
      %p186 = pneg %p48
      %p187 = pneg %p45
      %p188 = pneg %p69
      %p189 = pneg %p66
      %p190 = pneg %p90
      %p191 = pneg %p87
      %p192 = pneg %p111
      %p193 = pneg %p108
      %p194 = pneg %p137
      %p195 = pneg %p134
      %s196 = smul.u32 64, %s20
      %p197 = scmp.lt.s32.totalorder %s196, 63
      %s198 = scalar_select %p197, %s196, 63
      %s199 = smul.addr %s198, 4
      %s200 = scalar_lea.vmem %s4, %s199
      %s201 = smul.u32 64, %s20
      %p202 = scmp.lt.s32.totalorder %s201, 63
      %s203 = scalar_select %p202, %s201, 63
      %s204 = smul.addr %s203, 4
      %s205 = scalar_lea.vmem %s0, %s204
      %s206 = smul.u32 64, %s20
      %s207 = smul.u32 64, %s20
      %p208 = scmp.lt.s32.totalorder %s207, 63
      %s209 = scalar_select %p208, %s207, 63
      %s210 = smul.addr %s209, 4
      %s211 = scalar_lea.vmem %s4, %s210
      %s212 = smul.u32 64, %s20
      %v214 = vld [vmem:[%s205] sm:$0xf]
      %v215 = vld [vmem:[%s205 + $0x4] sm:$0xf]
      %v216 = vld [vmem:[%s205 + $0x8] sm:$0xf]
      %v217 = vld [vmem:[%s205 + $0xc] sm:$0xf]
      %v218 = vld [vmem:[%s205 + $0x10] sm:$0xf]
      %v219 = vld [vmem:[%s205 + $0x14] sm:$0xf]
      %v220 = vld [vmem:[%s205 + $0x18] sm:$0xf]
      %v221 = vld [vmem:[%s205 + $0x1c] sm:$0xf]
      %v222 = vld [vmem:[%s205 + $0x20] sm:$0xf]
      %v223 = vld [vmem:[%s205 + $0x24] sm:$0xf]
      %v224 = vld [vmem:[%s205 + $0x28] sm:$0xf]
      %v225 = vld [vmem:[%s205 + $0x2c] sm:$0xf]
      %v226 = vld [vmem:[%s205 + $0x30] sm:$0xf]
      %v227 = vld [vmem:[%s205 + $0x34] sm:$0xf]
      %v228 = vld [vmem:[%s205 + $0x38] sm:$0xf]
      %v229 = vld [vmem:[%s205 + $0x3c] sm:$0xf]
      %v230 = vld [vmem:[%s205 + $0x40] sm:$0xf]
      %v231 = vld [vmem:[%s205 + $0x44] sm:$0xf]
      %v232 = vld [vmem:[%s205 + $0x48] sm:$0xf]
      %v233 = vld [vmem:[%s205 + $0x4c] sm:$0xf]
      %v234 = vld [vmem:[%s205 + $0x50] sm:$0xf]
      %v235 = vld [vmem:[%s205 + $0x54] sm:$0xf]
      %v236 = vld [vmem:[%s205 + $0x58] sm:$0xf]
      %v237 = vld [vmem:[%s205 + $0x5c] sm:$0xf]
      %v238 = vld [vmem:[%s205 + $0x60] sm:$0xf]
      %v239 = vld [vmem:[%s205 + $0x64] sm:$0xf]
      %v240 = vld [vmem:[%s205 + $0x68] sm:$0xf]
      %v241 = vld [vmem:[%s205 + $0x6c] sm:$0xf]
      %v242 = vld [vmem:[%s205 + $0x70] sm:$0xf]
      %v243 = vld [vmem:[%s205 + $0x74] sm:$0xf]
      %v244 = vld [vmem:[%s205 + $0x78] sm:$0xf]
      %v245 = vld [vmem:[%s205 + $0x7c] sm:$0xf]
      %v246 = vld [vmem:[%s205 + $0x80] sm:$0xf]
      %v247 = vld [vmem:[%s205 + $0x84] sm:$0xf]
      %v248 = vld [vmem:[%s205 + $0x88] sm:$0xf]
      %v249 = vld [vmem:[%s205 + $0x8c] sm:$0xf]
      %v250 = vld [vmem:[%s205 + $0x90] sm:$0xf]
      %v251 = vld [vmem:[%s205 + $0x94] sm:$0xf]
      %v252 = vld [vmem:[%s205 + $0x98] sm:$0xf]
      %v253 = vld [vmem:[%s205 + $0x9c] sm:$0xf]
      %v254 = vld [vmem:[%s205 + $0xa0] sm:$0xf]
      %v255 = vld [vmem:[%s205 + $0xa4] sm:$0xf]
      %v256 = vld [vmem:[%s205 + $0xa8] sm:$0xf]
      %v257 = vld [vmem:[%s205 + $0xac] sm:$0xf]
      %v258 = vld [vmem:[%s205 + $0xb0] sm:$0xf]
      %v259 = vld [vmem:[%s205 + $0xb4] sm:$0xf]
      %v260 = vld [vmem:[%s205 + $0xb8] sm:$0xf]
      %v261 = vld [vmem:[%s205 + $0xbc] sm:$0xf]
      %v262 = vld [vmem:[%s205 + $0xc0] sm:$0xf]
      %v263 = vld [vmem:[%s205 + $0xc4] sm:$0xf]
      %v264 = vld [vmem:[%s205 + $0xc8] sm:$0xf]
      %v265 = vld [vmem:[%s205 + $0xcc] sm:$0xf]
      %v266 = vld [vmem:[%s205 + $0xd0] sm:$0xf]
      %v267 = vld [vmem:[%s205 + $0xd4] sm:$0xf]
      %v268 = vld [vmem:[%s205 + $0xd8] sm:$0xf]
      %v269 = vld [vmem:[%s205 + $0xdc] sm:$0xf]
      %v270 = vld [vmem:[%s205 + $0xe0] sm:$0xf]
      %v271 = vld [vmem:[%s205 + $0xe4] sm:$0xf]
      %v272 = vld [vmem:[%s205 + $0xe8] sm:$0xf]
      %v273 = vld [vmem:[%s205 + $0xec] sm:$0xf]
      %v274 = vld [vmem:[%s205 + $0xf0] sm:$0xf]
      %v275 = vld [vmem:[%s205 + $0xf4] sm:$0xf]
      %v276 = vld [vmem:[%s205 + $0xf8] sm:$0xf]
      %v277 = vld [vmem:[%s205 + $0xfc] sm:$0xf]
      %v278 = vld [vmem:[%s1] sm:$0xf]
      %v279 = vld [vmem:[%s1 + $0x4] sm:$0xf]
      %v280 = vld [vmem:[%s1 + $0x8] sm:$0xf]
      %v281 = vld [vmem:[%s1 + $0xc] sm:$0xf]
      %v282 = vld [vmem:[%s1 + $0x10] sm:$0xf]
      %v283 = vld [vmem:[%s1 + $0x14] sm:$0xf]
      %v284 = vld [vmem:[%s1 + $0x18] sm:$0xf]
      %v285 = vld [vmem:[%s1 + $0x1c] sm:$0xf]
      %v286 = vld [vmem:[%s1 + $0x20] sm:$0xf]
      %v287 = vld [vmem:[%s1 + $0x24] sm:$0xf]
      %v288 = vld [vmem:[%s1 + $0x28] sm:$0xf]
      %v289 = vld [vmem:[%s1 + $0x2c] sm:$0xf]
      %v290 = vld [vmem:[%s1 + $0x30] sm:$0xf]
      %v291 = vld [vmem:[%s1 + $0x34] sm:$0xf]
      %v292 = vld [vmem:[%s1 + $0x38] sm:$0xf]
      %v293 = vld [vmem:[%s1 + $0x3c] sm:$0xf]
      %v358 = vunpack.c.l.b16 %v214
      %v359 = vunpack.c.l.b16 %v215
      %v360 = vunpack.c.l.b16 %v216
      %v361 = vunpack.c.l.b16 %v217
      %v362 = vunpack.c.l.b16 %v218
      %v363 = vunpack.c.l.b16 %v219
      %v364 = vunpack.c.l.b16 %v220
      %v365 = vunpack.c.l.b16 %v221
      %v366 = vunpack.c.l.b16 %v222
      %v367 = vunpack.c.l.b16 %v223
      %v368 = vunpack.c.l.b16 %v224
      %v369 = vunpack.c.l.b16 %v225
      %v370 = vunpack.c.l.b16 %v226
      %v371 = vunpack.c.l.b16 %v227
      %v372 = vunpack.c.l.b16 %v228
      %v373 = vunpack.c.l.b16 %v229
      %v374 = vunpack.c.l.b16 %v230
      %v375 = vunpack.c.l.b16 %v231
      %v376 = vunpack.c.l.b16 %v232
      %v377 = vunpack.c.l.b16 %v233
      %v378 = vunpack.c.l.b16 %v234
      %v379 = vunpack.c.l.b16 %v235
      %v380 = vunpack.c.l.b16 %v236
      %v381 = vunpack.c.l.b16 %v237
      %v382 = vunpack.c.l.b16 %v238
      %v383 = vunpack.c.l.b16 %v239
      %v384 = vunpack.c.l.b16 %v240
      %v385 = vunpack.c.l.b16 %v241
      %v386 = vunpack.c.l.b16 %v242
      %v387 = vunpack.c.l.b16 %v243
      %v388 = vunpack.c.l.b16 %v244
      %v389 = vunpack.c.l.b16 %v245
      %v390 = vunpack.c.l.b16 %v246
      %v391 = vunpack.c.l.b16 %v247
      %v392 = vunpack.c.l.b16 %v248
      %v393 = vunpack.c.l.b16 %v249
      %v394 = vunpack.c.l.b16 %v250
      %v395 = vunpack.c.l.b16 %v251
      %v396 = vunpack.c.l.b16 %v252
      %v397 = vunpack.c.l.b16 %v253
      %v398 = vunpack.c.l.b16 %v254
      %v399 = vunpack.c.l.b16 %v255
      %v400 = vunpack.c.l.b16 %v256
      %v401 = vunpack.c.l.b16 %v257
      %v402 = vunpack.c.l.b16 %v258
      %v403 = vunpack.c.l.b16 %v259
      %v404 = vunpack.c.l.b16 %v260
      %v405 = vunpack.c.l.b16 %v261
      %v406 = vunpack.c.l.b16 %v262
      %v407 = vunpack.c.l.b16 %v263
      %v408 = vunpack.c.l.b16 %v264
      %v409 = vunpack.c.l.b16 %v265
      %v410 = vunpack.c.l.b16 %v266
      %v411 = vunpack.c.l.b16 %v267
      %v412 = vunpack.c.l.b16 %v268
      %v413 = vunpack.c.l.b16 %v269
      %v414 = vunpack.c.l.b16 %v270
      %v415 = vunpack.c.l.b16 %v271
      %v416 = vunpack.c.l.b16 %v272
      %v417 = vunpack.c.l.b16 %v273
      %v418 = vunpack.c.l.b16 %v274
      %v419 = vunpack.c.l.b16 %v275
      %v420 = vunpack.c.l.b16 %v276
      %v421 = vunpack.c.l.b16 %v277
      %v422 = vpack.c.b16 %v359, %v358
      %v423 = vpack.c.b16 %v361, %v360
      %v424 = vpack.c.b16 %v363, %v362
      %v425 = vpack.c.b16 %v365, %v364
      %v426 = vpack.c.b16 %v367, %v366
      %v427 = vpack.c.b16 %v369, %v368
      %v428 = vpack.c.b16 %v371, %v370
      %v429 = vpack.c.b16 %v373, %v372
      %v430 = vpack.c.b16 %v375, %v374
      %v431 = vpack.c.b16 %v377, %v376
      %v432 = vpack.c.b16 %v379, %v378
      %v433 = vpack.c.b16 %v381, %v380
      %v434 = vpack.c.b16 %v383, %v382
      %v435 = vpack.c.b16 %v385, %v384
      %v436 = vpack.c.b16 %v387, %v386
      %v437 = vpack.c.b16 %v389, %v388
      %v438 = vpack.c.b16 %v391, %v390
      %v439 = vpack.c.b16 %v393, %v392
      %v440 = vpack.c.b16 %v395, %v394
      %v441 = vpack.c.b16 %v397, %v396
      %v442 = vpack.c.b16 %v399, %v398
      %v443 = vpack.c.b16 %v401, %v400
      %v444 = vpack.c.b16 %v403, %v402
      %v445 = vpack.c.b16 %v405, %v404
      %v446 = vpack.c.b16 %v407, %v406
      %v447 = vpack.c.b16 %v409, %v408
      %v448 = vpack.c.b16 %v411, %v410
      %v449 = vpack.c.b16 %v413, %v412
      %v450 = vpack.c.b16 %v415, %v414
      %v451 = vpack.c.b16 %v417, %v416
      %v452 = vpack.c.b16 %v419, %v418
      %v453 = vpack.c.b16 %v421, %v420
      %v502 = vunpack.c.l.b16 %v278
      %v503 = vunpack.c.l.b16 %v279
      %v504 = vunpack.c.l.b16 %v280
      %v505 = vunpack.c.l.b16 %v281
      %v506 = vunpack.c.l.b16 %v282
      %v507 = vunpack.c.l.b16 %v283
      %v508 = vunpack.c.l.b16 %v284
      %v509 = vunpack.c.l.b16 %v285
      %v510 = vunpack.c.l.b16 %v286
      %v511 = vunpack.c.l.b16 %v287
      %v512 = vunpack.c.l.b16 %v288
      %v513 = vunpack.c.l.b16 %v289
      %v514 = vunpack.c.l.b16 %v290
      %v515 = vunpack.c.l.b16 %v291
      %v516 = vunpack.c.l.b16 %v292
      %v517 = vunpack.c.l.b16 %v293
      %v518 = vpack.c.b16 %v503, %v502
      %v519 = vpack.c.b16 %v505, %v504
      %v520 = vpack.c.b16 %v507, %v506
      %v521 = vpack.c.b16 %v509, %v508
      %v522 = vpack.c.b16 %v511, %v510
      %v523 = vpack.c.b16 %v513, %v512
      %v524 = vpack.c.b16 %v515, %v514
      %v525 = vpack.c.b16 %v517, %v516
      %534 = vmatprep.subr.bf16.mxu0 0
      %535 = vmatpush1.bf16.msra.mxu0 %v518
      %536 = vmatprep.subr.bf16.mxu0 0
      %537 = vmatpush1.bf16.msra.mxu0 %v519
      %538 = vmatprep.subr.bf16.mxu0 0
      %539 = vmatpush1.bf16.msra.mxu0 %v520
      %540 = vmatprep.subr.bf16.mxu0 0
      %541 = vmatpush1.bf16.msra.mxu0 %v521
      %542 = vmatprep.subr.bf16.mxu0 0
      %543 = vmatpush1.bf16.msra.mxu0 %v522
      %544 = vmatprep.subr.bf16.mxu0 0
      %545 = vmatpush1.bf16.msra.mxu0 %v523
      %546 = vmatprep.subr.bf16.mxu0 0
      %547 = vmatpush1.bf16.msra.mxu0 %v524
      %548 = vmatprep.subr.bf16.mxu0 0
      %549 = vmatpush1.bf16.msra.mxu0 %v525
      %550 = vmatprep.subr.bf16.mxu0 0
      %551 = vmatpush1.bf16.msra.mxu0 0
      %552 = vmatprep.subr.bf16.mxu0 0
      %553 = vmatpush1.bf16.msra.mxu0 0
      %554 = vmatprep.subr.bf16.mxu0 0
      %555 = vmatpush1.bf16.msra.mxu0 0
      %556 = vmatprep.subr.bf16.mxu0 0
      %557 = vmatpush1.bf16.msra.mxu0 0
      %558 = vmatprep.subr.bf16.mxu0 0
      %559 = vmatpush1.bf16.msra.mxu0 0
      %560 = vmatprep.subr.bf16.mxu0 0
      %561 = vmatpush1.bf16.msra.mxu0 0
      %562 = vmatprep.subr.bf16.mxu0 0
      %563 = vmatpush1.bf16.msra.mxu0 0
      %564 = vmatprep.subr.bf16.mxu0 0
      %565 = vmatpush1.bf16.msra.mxu0 0
      %566 = vmatprep.mubr.bf16.mxu0 0
      %567 = vmatmul.mubr.bf16.gmra.mrb[0].mxu0 %v422
      %v568 = vpop.f32.mrb[0].mxu0
      %v569 = vadd.f32 0.0, %v568
      %v570 = vpop.f32.mrb[0].mxu0
      %v571 = vpop.f32.mrb[0].mxu0
      %v572 = vadd.f32 0.0, %v571
      %v573 = vpop.f32.mrb[0].mxu0
      %574 = vmatprep.mubr.bf16.mxu0 0
      %575 = vmatmul.mubr.bf16.gmra.mrb[0].mxu0 %v423
      %v576 = vpop.f32.mrb[0].mxu0
      %v577 = vadd.f32 0.0, %v576
      %v578 = vpop.f32.mrb[0].mxu0
      %v579 = vpop.f32.mrb[0].mxu0
      %v580 = vadd.f32 0.0, %v579
      %v581 = vpop.f32.mrb[0].mxu0
      %582 = vmatprep.mubr.bf16.mxu0 0
      %583 = vmatmul.mubr.bf16.gmra.mrb[0].mxu0 %v424
      %v584 = vpop.f32.mrb[0].mxu0
      %v585 = vadd.f32 0.0, %v584
      %v586 = vpop.f32.mrb[0].mxu0
      %v587 = vpop.f32.mrb[0].mxu0
      %v588 = vadd.f32 0.0, %v587
      %v589 = vpop.f32.mrb[0].mxu0
      %590 = vmatprep.mubr.bf16.mxu0 0
      %591 = vmatmul.mubr.bf16.gmra.mrb[0].mxu0 %v425
      %v592 = vpop.f32.mrb[0].mxu0
      %v593 = vadd.f32 0.0, %v592
      %v594 = vpop.f32.mrb[0].mxu0
      %v595 = vpop.f32.mrb[0].mxu0
      %v596 = vadd.f32 0.0, %v595
      %v597 = vpop.f32.mrb[0].mxu0
      %598 = vmatprep.mubr.bf16.mxu0 0
      %599 = vmatmul.mubr.bf16.gmra.mrb[0].mxu0 %v426
      %v600 = vpop.f32.mrb[0].mxu0
      %v601 = vadd.f32 0.0, %v600
      %v602 = vpop.f32.mrb[0].mxu0
      %v603 = vpop.f32.mrb[0].mxu0
      %v604 = vadd.f32 0.0, %v603
      %v605 = vpop.f32.mrb[0].mxu0
      %606 = vmatprep.mubr.bf16.mxu0 0
      %607 = vmatmul.mubr.bf16.gmra.mrb[0].mxu0 %v427
      %v608 = vpop.f32.mrb[0].mxu0
      %v609 = vadd.f32 0.0, %v608
      %v610 = vpop.f32.mrb[0].mxu0
      %v611 = vpop.f32.mrb[0].mxu0
      %v612 = vadd.f32 0.0, %v611
      %v613 = vpop.f32.mrb[0].mxu0
      %614 = vmatprep.mubr.bf16.mxu0 0
      %615 = vmatmul.mubr.bf16.gmra.mrb[0].mxu0 %v428
      %v616 = vpop.f32.mrb[0].mxu0
      %v617 = vadd.f32 0.0, %v616
      %v618 = vpop.f32.mrb[0].mxu0
      %v619 = vpop.f32.mrb[0].mxu0
      %v620 = vadd.f32 0.0, %v619
      %v621 = vpop.f32.mrb[0].mxu0
      %622 = vmatprep.mubr.bf16.mxu0 0
      %623 = vmatmul.mubr.bf16.gmra.mrb[0].mxu0 %v429
      %v624 = vpop.f32.mrb[0].mxu0
      %v625 = vadd.f32 0.0, %v624
      %v626 = vpop.f32.mrb[0].mxu0
      %v627 = vpop.f32.mrb[0].mxu0
      %v628 = vadd.f32 0.0, %v627
      %v629 = vpop.f32.mrb[0].mxu0
      %630 = vmatprep.mubr.bf16.mxu0 0
      %631 = vmatmul.mubr.bf16.gmra.mrb[0].mxu0 %v430
      %v632 = vpop.f32.mrb[0].mxu0
      %v633 = vadd.f32 0.0, %v632
      %v634 = vpop.f32.mrb[0].mxu0
      %v635 = vpop.f32.mrb[0].mxu0
      %v636 = vadd.f32 0.0, %v635
      %v637 = vpop.f32.mrb[0].mxu0
      %638 = vmatprep.mubr.bf16.mxu0 0
      %639 = vmatmul.mubr.bf16.gmra.mrb[0].mxu0 %v431
      %v640 = vpop.f32.mrb[0].mxu0
      %v641 = vadd.f32 0.0, %v640
      %v642 = vpop.f32.mrb[0].mxu0
      %v643 = vpop.f32.mrb[0].mxu0
      %v644 = vadd.f32 0.0, %v643
      %v645 = vpop.f32.mrb[0].mxu0
      %646 = vmatprep.mubr.bf16.mxu0 0
      %647 = vmatmul.mubr.bf16.gmra.mrb[0].mxu0 %v432
      %v648 = vpop.f32.mrb[0].mxu0
      %v649 = vadd.f32 0.0, %v648
      %v650 = vpop.f32.mrb[0].mxu0
      %v651 = vpop.f32.mrb[0].mxu0
      %v652 = vadd.f32 0.0, %v651
      %v653 = vpop.f32.mrb[0].mxu0
      %654 = vmatprep.mubr.bf16.mxu0 0
      %655 = vmatmul.mubr.bf16.gmra.mrb[0].mxu0 %v433
      %v656 = vpop.f32.mrb[0].mxu0
      %v657 = vadd.f32 0.0, %v656
      %v658 = vpop.f32.mrb[0].mxu0
      %v659 = vpop.f32.mrb[0].mxu0
      %v660 = vadd.f32 0.0, %v659
      %v661 = vpop.f32.mrb[0].mxu0
      %662 = vmatprep.mubr.bf16.mxu0 0
      %663 = vmatmul.mubr.bf16.gmra.mrb[0].mxu0 %v434
      %v664 = vpop.f32.mrb[0].mxu0
      %v665 = vadd.f32 0.0, %v664
      %v666 = vpop.f32.mrb[0].mxu0
      %v667 = vpop.f32.mrb[0].mxu0
      %v668 = vadd.f32 0.0, %v667
      %v669 = vpop.f32.mrb[0].mxu0
      %670 = vmatprep.mubr.bf16.mxu0 0
      %671 = vmatmul.mubr.bf16.gmra.mrb[0].mxu0 %v435
      %v672 = vpop.f32.mrb[0].mxu0
      %v673 = vadd.f32 0.0, %v672
      %v674 = vpop.f32.mrb[0].mxu0
      %v675 = vpop.f32.mrb[0].mxu0
      %v676 = vadd.f32 0.0, %v675
      %v677 = vpop.f32.mrb[0].mxu0
      %678 = vmatprep.mubr.bf16.mxu0 0
      %679 = vmatmul.mubr.bf16.gmra.mrb[0].mxu0 %v436
      %v680 = vpop.f32.mrb[0].mxu0
      %v681 = vadd.f32 0.0, %v680
      %v682 = vpop.f32.mrb[0].mxu0
      %v683 = vpop.f32.mrb[0].mxu0
      %v684 = vadd.f32 0.0, %v683
      %v685 = vpop.f32.mrb[0].mxu0
      %686 = vmatprep.mubr.bf16.mxu0 0
      %687 = vmatmul.mubr.bf16.gmra.mrb[0].mxu0 %v437
      %v688 = vpop.f32.mrb[0].mxu0
      %v689 = vadd.f32 0.0, %v688
      %v690 = vpop.f32.mrb[0].mxu0
      %v691 = vpop.f32.mrb[0].mxu0
      %v692 = vadd.f32 0.0, %v691
      %v693 = vpop.f32.mrb[0].mxu0
      %694 = vmatprep.mubr.bf16.mxu0 0
      %695 = vmatmul.mubr.bf16.gmra.mrb[0].mxu0 %v438
      %v696 = vpop.f32.mrb[0].mxu0
      %v697 = vadd.f32 0.0, %v696
      %v698 = vpop.f32.mrb[0].mxu0
      %v699 = vpop.f32.mrb[0].mxu0
      %v700 = vadd.f32 0.0, %v699
      %v701 = vpop.f32.mrb[0].mxu0
      %702 = vmatprep.mubr.bf16.mxu0 0
      %703 = vmatmul.mubr.bf16.gmra.mrb[0].mxu0 %v439
      %v704 = vpop.f32.mrb[0].mxu0
      %v705 = vadd.f32 0.0, %v704
      %v706 = vpop.f32.mrb[0].mxu0
      %v707 = vpop.f32.mrb[0].mxu0
      %v708 = vadd.f32 0.0, %v707
      %v709 = vpop.f32.mrb[0].mxu0
      %710 = vmatprep.mubr.bf16.mxu0 0
      %711 = vmatmul.mubr.bf16.gmra.mrb[0].mxu0 %v440
      %v712 = vpop.f32.mrb[0].mxu0
      %v713 = vadd.f32 0.0, %v712
      %v714 = vpop.f32.mrb[0].mxu0
      %v715 = vpop.f32.mrb[0].mxu0
      %v716 = vadd.f32 0.0, %v715
      %v717 = vpop.f32.mrb[0].mxu0
      %718 = vmatprep.mubr.bf16.mxu0 0
      %719 = vmatmul.mubr.bf16.gmra.mrb[0].mxu0 %v441
      %v720 = vpop.f32.mrb[0].mxu0
      %v721 = vadd.f32 0.0, %v720
      %v722 = vpop.f32.mrb[0].mxu0
      %v723 = vpop.f32.mrb[0].mxu0
      %v724 = vadd.f32 0.0, %v723
      %v725 = vpop.f32.mrb[0].mxu0
      %726 = vmatprep.mubr.bf16.mxu0 0
      %727 = vmatmul.mubr.bf16.gmra.mrb[0].mxu0 %v442
      %v728 = vpop.f32.mrb[0].mxu0
      %v729 = vadd.f32 0.0, %v728
      %v730 = vpop.f32.mrb[0].mxu0
      %v731 = vpop.f32.mrb[0].mxu0
      %v732 = vadd.f32 0.0, %v731
      %v733 = vpop.f32.mrb[0].mxu0
      %734 = vmatprep.mubr.bf16.mxu0 0
      %735 = vmatmul.mubr.bf16.gmra.mrb[0].mxu0 %v443
      %v736 = vpop.f32.mrb[0].mxu0
      %v737 = vadd.f32 0.0, %v736
      %v738 = vpop.f32.mrb[0].mxu0
      %v739 = vpop.f32.mrb[0].mxu0
      %v740 = vadd.f32 0.0, %v739
      %v741 = vpop.f32.mrb[0].mxu0
      %742 = vmatprep.mubr.bf16.mxu0 0
      %743 = vmatmul.mubr.bf16.gmra.mrb[0].mxu0 %v444
      %v744 = vpop.f32.mrb[0].mxu0
      %v745 = vadd.f32 0.0, %v744
      %v746 = vpop.f32.mrb[0].mxu0
      %v747 = vpop.f32.mrb[0].mxu0
      %v748 = vadd.f32 0.0, %v747
      %v749 = vpop.f32.mrb[0].mxu0
      %750 = vmatprep.mubr.bf16.mxu0 0
      %751 = vmatmul.mubr.bf16.gmra.mrb[0].mxu0 %v445
      %v752 = vpop.f32.mrb[0].mxu0
      %v753 = vadd.f32 0.0, %v752
      %v754 = vpop.f32.mrb[0].mxu0
      %v755 = vpop.f32.mrb[0].mxu0
      %v756 = vadd.f32 0.0, %v755
      %v757 = vpop.f32.mrb[0].mxu0
      %758 = vmatprep.mubr.bf16.mxu0 0
      %759 = vmatmul.mubr.bf16.gmra.mrb[0].mxu0 %v446
      %v760 = vpop.f32.mrb[0].mxu0
      %v761 = vadd.f32 0.0, %v760
      %v762 = vpop.f32.mrb[0].mxu0
      %v763 = vpop.f32.mrb[0].mxu0
      %v764 = vadd.f32 0.0, %v763
      %v765 = vpop.f32.mrb[0].mxu0
      %766 = vmatprep.mubr.bf16.mxu0 0
      %767 = vmatmul.mubr.bf16.gmra.mrb[0].mxu0 %v447
      %v768 = vpop.f32.mrb[0].mxu0
      %v769 = vadd.f32 0.0, %v768
      %v770 = vpop.f32.mrb[0].mxu0
      %v771 = vpop.f32.mrb[0].mxu0
      %v772 = vadd.f32 0.0, %v771
      %v773 = vpop.f32.mrb[0].mxu0
      %774 = vmatprep.mubr.bf16.mxu0 0
      %775 = vmatmul.mubr.bf16.gmra.mrb[0].mxu0 %v448
      %v776 = vpop.f32.mrb[0].mxu0
      %v777 = vadd.f32 0.0, %v776
      %v778 = vpop.f32.mrb[0].mxu0
      %v779 = vpop.f32.mrb[0].mxu0
      %v780 = vadd.f32 0.0, %v779
      %v781 = vpop.f32.mrb[0].mxu0
      %782 = vmatprep.mubr.bf16.mxu0 0
      %783 = vmatmul.mubr.bf16.gmra.mrb[0].mxu0 %v449
      %v784 = vpop.f32.mrb[0].mxu0
      %v785 = vadd.f32 0.0, %v784
      %v786 = vpop.f32.mrb[0].mxu0
      %v787 = vpop.f32.mrb[0].mxu0
      %v788 = vadd.f32 0.0, %v787
      %v789 = vpop.f32.mrb[0].mxu0
      %790 = vmatprep.mubr.bf16.mxu0 0
      %791 = vmatmul.mubr.bf16.gmra.mrb[0].mxu0 %v450
      %v792 = vpop.f32.mrb[0].mxu0
      %v793 = vadd.f32 0.0, %v792
      %v794 = vpop.f32.mrb[0].mxu0
      %v795 = vpop.f32.mrb[0].mxu0
      %v796 = vadd.f32 0.0, %v795
      %v797 = vpop.f32.mrb[0].mxu0
      %798 = vmatprep.mubr.bf16.mxu0 0
      %799 = vmatmul.mubr.bf16.gmra.mrb[0].mxu0 %v451
      %v800 = vpop.f32.mrb[0].mxu0
      %v801 = vadd.f32 0.0, %v800
      %v802 = vpop.f32.mrb[0].mxu0
      %v803 = vpop.f32.mrb[0].mxu0
      %v804 = vadd.f32 0.0, %v803
      %v805 = vpop.f32.mrb[0].mxu0
      %806 = vmatprep.mubr.bf16.mxu0 0
      %807 = vmatmul.mubr.bf16.gmra.mrb[0].mxu0 %v452
      %v808 = vpop.f32.mrb[0].mxu0
      %v809 = vadd.f32 0.0, %v808
      %v810 = vpop.f32.mrb[0].mxu0
      %v811 = vpop.f32.mrb[0].mxu0
      %v812 = vadd.f32 0.0, %v811
      %v813 = vpop.f32.mrb[0].mxu0
      %814 = vmatprep.mubr.bf16.mxu0 0
      %815 = vmatmul.mubr.bf16.gmra.mrb[0].mxu0 %v453
      %v816 = vpop.f32.mrb[0].mxu0
      %v817 = vadd.f32 0.0, %v816
      %v818 = vpop.f32.mrb[0].mxu0
      %v819 = vpop.f32.mrb[0].mxu0
      %v820 = vadd.f32 0.0, %v819
      %v821 = vpop.f32.mrb[0].mxu0
      %822 = vdwg.mxu0
      %p823 = scmp.eq.s32.totalorder %s19, 0
      %p824 = scmp.eq.s32.totalorder %s20, 0
      %p825 = pnand %p823, %p824
      %p826 = pneg %p825
      // Predicated region
      $region37: #{discriminator_forward.5} parent=35 // pred_check
        _
      $region38: #{discriminator_forward.5} parent=35 // pred_check_branch
        %828 = sbr.rel (%p825) target = $region40
      $region39: #{discriminator_forward.5} parent=35 // pred_region
        %vm829 = vcmask 122880
        %830 = vst.msk [vmem:[#allocation2] sm:$0x1] %vm829, 0.0
        %831 = vst.msk [vmem:[#allocation3] sm:$0x1] %vm829, 0.0
      $region40: #{discriminator_forward.5} parent=35 // pred_fallthru
        _
      // Predicated region
      $region41: #{discriminator_forward.5} parent=35 // pred_check
        %p832 = pneg %p823
      $region42: #{discriminator_forward.5} parent=35 // pred_check_branch
        %834 = sbr.rel (%p832) target = $region44
      $region43: #{discriminator_forward.5} parent=35 // pred_region
        %v835 = vld [vmem:[#allocation2] sm:$0x1]
        %vm836 = vcmask 130048
        %v837 = vsel %vm836, %v569, 0.0
        %v838 = vsel %vm836, %v572, 0.0
        %v839 = vadd.f32 %v837, %v838
        %v840 = vsel %vm836, %v577, 0.0
        %v841 = vadd.f32 %v839, %v840
        %v842 = vsel %vm836, %v580, 0.0
        %v843 = vadd.f32 %v841, %v842
        %v844 = vsel %vm836, %v585, 0.0
        %v845 = vadd.f32 %v843, %v844
        %v846 = vsel %vm836, %v588, 0.0
        %v847 = vadd.f32 %v845, %v846
        %v848 = vsel %vm836, %v593, 0.0
        %v849 = vadd.f32 %v847, %v848
        %v850 = vsel %vm836, %v596, 0.0
        %v851 = vadd.f32 %v849, %v850
        %v852 = vsel %vm836, %v601, 0.0
        %v853 = vadd.f32 %v851, %v852
        %v854 = vsel %vm836, %v604, 0.0
        %v855 = vadd.f32 %v853, %v854
        %v856 = vsel %vm836, %v609, 0.0
        %v857 = vadd.f32 %v855, %v856
        %v858 = vsel %vm836, %v612, 0.0
        %v859 = vadd.f32 %v857, %v858
        %v860 = vsel %vm836, %v617, 0.0
        %v861 = vadd.f32 %v859, %v860
        %v862 = vsel %vm836, %v620, 0.0
        %v863 = vadd.f32 %v861, %v862
        %v864 = vsel %vm836, %v625, 0.0
        %v865 = vadd.f32 %v863, %v864
        %v866 = vsel %vm836, %v628, 0.0
        %v867 = vadd.f32 %v865, %v866
        %v868 = vsel %vm836, %v633, 0.0
        %v869 = vadd.f32 %v867, %v868
        %v870 = vsel %vm836, %v636, 0.0
        %v871 = vadd.f32 %v869, %v870
        %v872 = vsel %vm836, %v641, 0.0
        %v873 = vadd.f32 %v871, %v872
        %v874 = vsel %vm836, %v644, 0.0
        %v875 = vadd.f32 %v873, %v874
        %v876 = vsel %vm836, %v649, 0.0
        %v877 = vadd.f32 %v875, %v876
        %v878 = vsel %vm836, %v652, 0.0
        %v879 = vadd.f32 %v877, %v878
        %v880 = vsel %vm836, %v657, 0.0
        %v881 = vadd.f32 %v879, %v880
        %v882 = vsel %vm836, %v660, 0.0
        %v883 = vadd.f32 %v881, %v882
        %v884 = vsel %vm836, %v665, 0.0
        %v885 = vadd.f32 %v883, %v884
        %v886 = vsel %vm836, %v668, 0.0
        %v887 = vadd.f32 %v885, %v886
        %v888 = vsel %vm836, %v673, 0.0
        %v889 = vadd.f32 %v887, %v888
        %v890 = vsel %vm836, %v676, 0.0
        %v891 = vadd.f32 %v889, %v890
        %v892 = vsel %vm836, %v681, 0.0
        %v893 = vadd.f32 %v891, %v892
        %v894 = vsel %vm836, %v684, 0.0
        %v895 = vadd.f32 %v893, %v894
        %v896 = vsel %vm836, %v689, 0.0
        %v897 = vadd.f32 %v895, %v896
        %v898 = vsel %vm836, %v692, 0.0
        %v899 = vadd.f32 %v897, %v898
        %v900 = vsel %vm836, %v697, 0.0
        %v901 = vadd.f32 %v899, %v900
        %v902 = vsel %vm836, %v700, 0.0
        %v903 = vadd.f32 %v901, %v902
        %v904 = vsel %vm836, %v705, 0.0
        %v905 = vadd.f32 %v903, %v904
        %v906 = vsel %vm836, %v708, 0.0
        %v907 = vadd.f32 %v905, %v906
        %v908 = vsel %vm836, %v713, 0.0
        %v909 = vadd.f32 %v907, %v908
        %v910 = vsel %vm836, %v716, 0.0
        %v911 = vadd.f32 %v909, %v910
        %v912 = vsel %vm836, %v721, 0.0
        %v913 = vadd.f32 %v911, %v912
        %v914 = vsel %vm836, %v724, 0.0
        %v915 = vadd.f32 %v913, %v914
        %v916 = vsel %vm836, %v729, 0.0
        %v917 = vadd.f32 %v915, %v916
        %v918 = vsel %vm836, %v732, 0.0
        %v919 = vadd.f32 %v917, %v918
        %v920 = vsel %vm836, %v737, 0.0
        %v921 = vadd.f32 %v919, %v920
        %v922 = vsel %vm836, %v740, 0.0
        %v923 = vadd.f32 %v921, %v922
        %v924 = vsel %vm836, %v745, 0.0
        %v925 = vadd.f32 %v923, %v924
        %v926 = vsel %vm836, %v748, 0.0
        %v927 = vadd.f32 %v925, %v926
        %v928 = vsel %vm836, %v753, 0.0
        %v929 = vadd.f32 %v927, %v928
        %v930 = vsel %vm836, %v756, 0.0
        %v931 = vadd.f32 %v929, %v930
        %v932 = vsel %vm836, %v761, 0.0
        %v933 = vadd.f32 %v931, %v932
        %v934 = vsel %vm836, %v764, 0.0
        %v935 = vadd.f32 %v933, %v934
        %v936 = vsel %vm836, %v769, 0.0
        %v937 = vadd.f32 %v935, %v936
        %v938 = vsel %vm836, %v772, 0.0
        %v939 = vadd.f32 %v937, %v938
        %v940 = vsel %vm836, %v777, 0.0
        %v941 = vadd.f32 %v939, %v940
        %v942 = vsel %vm836, %v780, 0.0
        %v943 = vadd.f32 %v941, %v942
        %v944 = vsel %vm836, %v785, 0.0
        %v945 = vadd.f32 %v943, %v944
        %v946 = vsel %vm836, %v788, 0.0
        %v947 = vadd.f32 %v945, %v946
        %v948 = vsel %vm836, %v793, 0.0
        %v949 = vadd.f32 %v947, %v948
        %v950 = vsel %vm836, %v796, 0.0
        %v951 = vadd.f32 %v949, %v950
        %v952 = vsel %vm836, %v801, 0.0
        %v953 = vadd.f32 %v951, %v952
        %v954 = vsel %vm836, %v804, 0.0
        %v955 = vadd.f32 %v953, %v954
        %v956 = vsel %vm836, %v809, 0.0
        %v957 = vadd.f32 %v955, %v956
        %v958 = vsel %vm836, %v812, 0.0
        %v959 = vadd.f32 %v957, %v958
        %v960 = vsel %vm836, %v817, 0.0
        %v961 = vadd.f32 %v959, %v960
        %v962 = vsel %vm836, %v820, 0.0
        %v963 = vadd.f32 %v961, %v962
        %v964 = vrot.slane %v963, 4
        %v965 = vadd.f32 %v963, %v964
        %v966 = vrot.slane %v965, 2
        %v967 = vadd.f32 %v965, %v966
        %v968 = vrot.slane %v967, 1
        %v969 = vadd.f32 %v967, %v968
        %v970 = vadd.f32 %v835, %v969
        %vm971 = vcmask 122880
        %972 = vst.msk [vmem:[#allocation2] sm:$0x1] %vm971, %v970
        %v973 = vld [vmem:[#allocation3] sm:$0x1]
        %v974 = vmul.f32 %v569, %v569
        %v975 = vmul.f32 %v572, %v572
        %v976 = vmul.f32 %v577, %v577
        %v977 = vmul.f32 %v580, %v580
        %v978 = vmul.f32 %v585, %v585
        %v979 = vmul.f32 %v588, %v588
        %v980 = vmul.f32 %v593, %v593
        %v981 = vmul.f32 %v596, %v596
        %v982 = vmul.f32 %v601, %v601
        %v983 = vmul.f32 %v604, %v604
        %v984 = vmul.f32 %v609, %v609
        %v985 = vmul.f32 %v612, %v612
        %v986 = vmul.f32 %v617, %v617
        %v987 = vmul.f32 %v620, %v620
        %v988 = vmul.f32 %v625, %v625
        %v989 = vmul.f32 %v628, %v628
        %v990 = vmul.f32 %v633, %v633
        %v991 = vmul.f32 %v636, %v636
        %v992 = vmul.f32 %v641, %v641
        %v993 = vmul.f32 %v644, %v644
        %v994 = vmul.f32 %v649, %v649
        %v995 = vmul.f32 %v652, %v652
        %v996 = vmul.f32 %v657, %v657
        %v997 = vmul.f32 %v660, %v660
        %v998 = vmul.f32 %v665, %v665
        %v999 = vmul.f32 %v668, %v668
        %v1000 = vmul.f32 %v673, %v673
        %v1001 = vmul.f32 %v676, %v676
        %v1002 = vmul.f32 %v681, %v681
        %v1003 = vmul.f32 %v684, %v684
        %v1004 = vmul.f32 %v689, %v689
        %v1005 = vmul.f32 %v692, %v692
        %v1006 = vmul.f32 %v697, %v697
        %v1007 = vmul.f32 %v700, %v700
        %v1008 = vmul.f32 %v705, %v705
        %v1009 = vmul.f32 %v708, %v708
        %v1010 = vmul.f32 %v713, %v713
        %v1011 = vmul.f32 %v716, %v716
        %v1012 = vmul.f32 %v721, %v721
        %v1013 = vmul.f32 %v724, %v724
        %v1014 = vmul.f32 %v729, %v729
        %v1015 = vmul.f32 %v732, %v732
        %v1016 = vmul.f32 %v737, %v737
        %v1017 = vmul.f32 %v740, %v740
        %v1018 = vmul.f32 %v745, %v745
        %v1019 = vmul.f32 %v748, %v748
        %v1020 = vmul.f32 %v753, %v753
        %v1021 = vmul.f32 %v756, %v756
        %v1022 = vmul.f32 %v761, %v761
        %v1023 = vmul.f32 %v764, %v764
        %v1024 = vmul.f32 %v769, %v769
        %v1025 = vmul.f32 %v772, %v772
        %v1026 = vmul.f32 %v777, %v777
        %v1027 = vmul.f32 %v780, %v780
        %v1028 = vmul.f32 %v785, %v785
        %v1029 = vmul.f32 %v788, %v788
        %v1030 = vmul.f32 %v793, %v793
        %v1031 = vmul.f32 %v796, %v796
        %v1032 = vmul.f32 %v801, %v801
        %v1033 = vmul.f32 %v804, %v804
        %v1034 = vmul.f32 %v809, %v809
        %v1035 = vmul.f32 %v812, %v812
        %v1036 = vmul.f32 %v817, %v817
        %v1037 = vmul.f32 %v820, %v820
        %v1038 = vsel %vm836, %v974, 0.0
        %v1039 = vsel %vm836, %v975, 0.0
        %v1040 = vadd.f32 %v1038, %v1039
        %v1041 = vsel %vm836, %v976, 0.0
        %v1042 = vadd.f32 %v1040, %v1041
        %v1043 = vsel %vm836, %v977, 0.0
        %v1044 = vadd.f32 %v1042, %v1043
        %v1045 = vsel %vm836, %v978, 0.0
        %v1046 = vadd.f32 %v1044, %v1045
        %v1047 = vsel %vm836, %v979, 0.0
        %v1048 = vadd.f32 %v1046, %v1047
        %v1049 = vsel %vm836, %v980, 0.0
        %v1050 = vadd.f32 %v1048, %v1049
        %v1051 = vsel %vm836, %v981, 0.0
        %v1052 = vadd.f32 %v1050, %v1051
        %v1053 = vsel %vm836, %v982, 0.0
        %v1054 = vadd.f32 %v1052, %v1053
        %v1055 = vsel %vm836, %v983, 0.0
        %v1056 = vadd.f32 %v1054, %v1055
        %v1057 = vsel %vm836, %v984, 0.0
        %v1058 = vadd.f32 %v1056, %v1057
        %v1059 = vsel %vm836, %v985, 0.0
        %v1060 = vadd.f32 %v1058, %v1059
        %v1061 = vsel %vm836, %v986, 0.0
        %v1062 = vadd.f32 %v1060, %v1061
        %v1063 = vsel %vm836, %v987, 0.0
        %v1064 = vadd.f32 %v1062, %v1063
        %v1065 = vsel %vm836, %v988, 0.0
        %v1066 = vadd.f32 %v1064, %v1065
        %v1067 = vsel %vm836, %v989, 0.0
        %v1068 = vadd.f32 %v1066, %v1067
        %v1069 = vsel %vm836, %v990, 0.0
        %v1070 = vadd.f32 %v1068, %v1069
        %v1071 = vsel %vm836, %v991, 0.0
        %v1072 = vadd.f32 %v1070, %v1071
        %v1073 = vsel %vm836, %v992, 0.0
        %v1074 = vadd.f32 %v1072, %v1073
        %v1075 = vsel %vm836, %v993, 0.0
        %v1076 = vadd.f32 %v1074, %v1075
        %v1077 = vsel %vm836, %v994, 0.0
        %v1078 = vadd.f32 %v1076, %v1077
        %v1079 = vsel %vm836, %v995, 0.0
        %v1080 = vadd.f32 %v1078, %v1079
        %v1081 = vsel %vm836, %v996, 0.0
        %v1082 = vadd.f32 %v1080, %v1081
        %v1083 = vsel %vm836, %v997, 0.0
        %v1084 = vadd.f32 %v1082, %v1083
        %v1085 = vsel %vm836, %v998, 0.0
        %v1086 = vadd.f32 %v1084, %v1085
        %v1087 = vsel %vm836, %v999, 0.0
        %v1088 = vadd.f32 %v1086, %v1087
        %v1089 = vsel %vm836, %v1000, 0.0
        %v1090 = vadd.f32 %v1088, %v1089
        %v1091 = vsel %vm836, %v1001, 0.0
        %v1092 = vadd.f32 %v1090, %v1091
        %v1093 = vsel %vm836, %v1002, 0.0
        %v1094 = vadd.f32 %v1092, %v1093
        %v1095 = vsel %vm836, %v1003, 0.0
        %v1096 = vadd.f32 %v1094, %v1095
        %v1097 = vsel %vm836, %v1004, 0.0
        %v1098 = vadd.f32 %v1096, %v1097
        %v1099 = vsel %vm836, %v1005, 0.0
        %v1100 = vadd.f32 %v1098, %v1099
        %v1101 = vsel %vm836, %v1006, 0.0
        %v1102 = vadd.f32 %v1100, %v1101
        %v1103 = vsel %vm836, %v1007, 0.0
        %v1104 = vadd.f32 %v1102, %v1103
        %v1105 = vsel %vm836, %v1008, 0.0
        %v1106 = vadd.f32 %v1104, %v1105
        %v1107 = vsel %vm836, %v1009, 0.0
        %v1108 = vadd.f32 %v1106, %v1107
        %v1109 = vsel %vm836, %v1010, 0.0
        %v1110 = vadd.f32 %v1108, %v1109
        %v1111 = vsel %vm836, %v1011, 0.0
        %v1112 = vadd.f32 %v1110, %v1111
        %v1113 = vsel %vm836, %v1012, 0.0
        %v1114 = vadd.f32 %v1112, %v1113
        %v1115 = vsel %vm836, %v1013, 0.0
        %v1116 = vadd.f32 %v1114, %v1115
        %v1117 = vsel %vm836, %v1014, 0.0
        %v1118 = vadd.f32 %v1116, %v1117
        %v1119 = vsel %vm836, %v1015, 0.0
        %v1120 = vadd.f32 %v1118, %v1119
        %v1121 = vsel %vm836, %v1016, 0.0
        %v1122 = vadd.f32 %v1120, %v1121
        %v1123 = vsel %vm836, %v1017, 0.0
        %v1124 = vadd.f32 %v1122, %v1123
        %v1125 = vsel %vm836, %v1018, 0.0
        %v1126 = vadd.f32 %v1124, %v1125
        %v1127 = vsel %vm836, %v1019, 0.0
        %v1128 = vadd.f32 %v1126, %v1127
        %v1129 = vsel %vm836, %v1020, 0.0
        %v1130 = vadd.f32 %v1128, %v1129
        %v1131 = vsel %vm836, %v1021, 0.0
        %v1132 = vadd.f32 %v1130, %v1131
        %v1133 = vsel %vm836, %v1022, 0.0
        %v1134 = vadd.f32 %v1132, %v1133
        %v1135 = vsel %vm836, %v1023, 0.0
        %v1136 = vadd.f32 %v1134, %v1135
        %v1137 = vsel %vm836, %v1024, 0.0
        %v1138 = vadd.f32 %v1136, %v1137
        %v1139 = vsel %vm836, %v1025, 0.0
        %v1140 = vadd.f32 %v1138, %v1139
        %v1141 = vsel %vm836, %v1026, 0.0
        %v1142 = vadd.f32 %v1140, %v1141
        %v1143 = vsel %vm836, %v1027, 0.0
        %v1144 = vadd.f32 %v1142, %v1143
        %v1145 = vsel %vm836, %v1028, 0.0
        %v1146 = vadd.f32 %v1144, %v1145
        %v1147 = vsel %vm836, %v1029, 0.0
        %v1148 = vadd.f32 %v1146, %v1147
        %v1149 = vsel %vm836, %v1030, 0.0
        %v1150 = vadd.f32 %v1148, %v1149
        %v1151 = vsel %vm836, %v1031, 0.0
        %v1152 = vadd.f32 %v1150, %v1151
        %v1153 = vsel %vm836, %v1032, 0.0
        %v1154 = vadd.f32 %v1152, %v1153
        %v1155 = vsel %vm836, %v1033, 0.0
        %v1156 = vadd.f32 %v1154, %v1155
        %v1157 = vsel %vm836, %v1034, 0.0
        %v1158 = vadd.f32 %v1156, %v1157
        %v1159 = vsel %vm836, %v1035, 0.0
        %v1160 = vadd.f32 %v1158, %v1159
        %v1161 = vsel %vm836, %v1036, 0.0
        %v1162 = vadd.f32 %v1160, %v1161
        %v1163 = vsel %vm836, %v1037, 0.0
        %v1164 = vadd.f32 %v1162, %v1163
        %v1165 = vrot.slane %v1164, 4
        %v1166 = vadd.f32 %v1164, %v1165
        %v1167 = vrot.slane %v1166, 2
        %v1168 = vadd.f32 %v1166, %v1167
        %v1169 = vrot.slane %v1168, 1
        %v1170 = vadd.f32 %v1168, %v1169
        %v1171 = vadd.f32 %v973, %v1170
        %1172 = vst.msk [vmem:[#allocation3] sm:$0x1] %vm971, %v1171
      $region44: #{discriminator_forward.5} parent=35 // pred_fallthru
        _
      %p1173 = scmp.eq.s32.totalorder %s19, 1
      // Predicated region
      $region45: #{discriminator_forward.5} parent=35 // pred_check
        %p1174 = pneg %p1173
      $region46: #{discriminator_forward.5} parent=35 // pred_check_branch
        %1176 = sbr.rel (%p1174) target = $region48
      $region47: #{discriminator_forward.5} parent=35 // pred_region
        %v1177 = vld [vmem:[#allocation2] sm:$0x1]
        %v1178 = vmul.f32 %v1177, 0.001953125
        %v1179 = vld [vmem:[#allocation3] sm:$0x1]
        %v1180 = vmul.f32 %v1179, 0.001953125
        %v1181 = vmul.f32 %v1178, %v1178
        %v1182 = vsub.f32 %v1180, %v1181
        %v1183 = vmax.f32 %v1182, 0.0
        %v1184 = vld [vmem:[%s2] sm:$0x1]
        %v1185 = vadd.f32 %v1183, 1e-05
        %v1186 = vrsqrt.pop %v1185
        %v1187 = vmul.f32 %v1184, %v1186
        %v1188 = vld [vmem:[%s3] sm:$0x1]
        %v1189 = vmul.f32 %v1178, %v1187
        %v1190 = vsub.f32 %v1188, %v1189
        %v1192 = vlaneseq
        %v1193 = vshrl.u32 %v1192, 7
        %v1194 = vsub.s32 0, %v1193
        %v1195 = vrot.slane %v1187, %v1194
        %v1197 = vmul.f32 %v569, %v1195
        %v1198 = vmul.f32 %v572, %v1195
        %v1199 = vmul.f32 %v577, %v1195
        %v1200 = vmul.f32 %v580, %v1195
        %v1201 = vmul.f32 %v585, %v1195
        %v1202 = vmul.f32 %v588, %v1195
        %v1203 = vmul.f32 %v593, %v1195
        %v1204 = vmul.f32 %v596, %v1195
        %v1205 = vmul.f32 %v601, %v1195
        %v1206 = vmul.f32 %v604, %v1195
        %v1207 = vmul.f32 %v609, %v1195
        %v1208 = vmul.f32 %v612, %v1195
        %v1209 = vmul.f32 %v617, %v1195
        %v1210 = vmul.f32 %v620, %v1195
        %v1211 = vmul.f32 %v625, %v1195
        %v1212 = vmul.f32 %v628, %v1195
        %v1213 = vmul.f32 %v633, %v1195
        %v1214 = vmul.f32 %v636, %v1195
        %v1215 = vmul.f32 %v641, %v1195
        %v1216 = vmul.f32 %v644, %v1195
        %v1217 = vmul.f32 %v649, %v1195
        %v1218 = vmul.f32 %v652, %v1195
        %v1219 = vmul.f32 %v657, %v1195
        %v1220 = vmul.f32 %v660, %v1195
        %v1221 = vmul.f32 %v665, %v1195
        %v1222 = vmul.f32 %v668, %v1195
        %v1223 = vmul.f32 %v673, %v1195
        %v1224 = vmul.f32 %v676, %v1195
        %v1225 = vmul.f32 %v681, %v1195
        %v1226 = vmul.f32 %v684, %v1195
        %v1227 = vmul.f32 %v689, %v1195
        %v1228 = vmul.f32 %v692, %v1195
        %v1229 = vmul.f32 %v697, %v1195
        %v1230 = vmul.f32 %v700, %v1195
        %v1231 = vmul.f32 %v705, %v1195
        %v1232 = vmul.f32 %v708, %v1195
        %v1233 = vmul.f32 %v713, %v1195
        %v1234 = vmul.f32 %v716, %v1195
        %v1235 = vmul.f32 %v721, %v1195
        %v1236 = vmul.f32 %v724, %v1195
        %v1237 = vmul.f32 %v729, %v1195
        %v1238 = vmul.f32 %v732, %v1195
        %v1239 = vmul.f32 %v737, %v1195
        %v1240 = vmul.f32 %v740, %v1195
        %v1241 = vmul.f32 %v745, %v1195
        %v1242 = vmul.f32 %v748, %v1195
        %v1243 = vmul.f32 %v753, %v1195
        %v1244 = vmul.f32 %v756, %v1195
        %v1245 = vmul.f32 %v761, %v1195
        %v1246 = vmul.f32 %v764, %v1195
        %v1247 = vmul.f32 %v769, %v1195
        %v1248 = vmul.f32 %v772, %v1195
        %v1249 = vmul.f32 %v777, %v1195
        %v1250 = vmul.f32 %v780, %v1195
        %v1251 = vmul.f32 %v785, %v1195
        %v1252 = vmul.f32 %v788, %v1195
        %v1253 = vmul.f32 %v793, %v1195
        %v1254 = vmul.f32 %v796, %v1195
        %v1255 = vmul.f32 %v801, %v1195
        %v1256 = vmul.f32 %v804, %v1195
        %v1257 = vmul.f32 %v809, %v1195
        %v1258 = vmul.f32 %v812, %v1195
        %v1259 = vmul.f32 %v817, %v1195
        %v1260 = vmul.f32 %v820, %v1195
        %v1262 = vlaneseq
        %v1263 = vshrl.u32 %v1262, 7
        %v1264 = vsub.s32 0, %v1263
        %v1265 = vrot.slane %v1190, %v1264
        %v1267 = vadd.f32 %v1197, %v1265
        %v1268 = vadd.f32 %v1198, %v1265
        %v1269 = vadd.f32 %v1199, %v1265
        %v1270 = vadd.f32 %v1200, %v1265
        %v1271 = vadd.f32 %v1201, %v1265
        %v1272 = vadd.f32 %v1202, %v1265
        %v1273 = vadd.f32 %v1203, %v1265
        %v1274 = vadd.f32 %v1204, %v1265
        %v1275 = vadd.f32 %v1205, %v1265
        %v1276 = vadd.f32 %v1206, %v1265
        %v1277 = vadd.f32 %v1207, %v1265
        %v1278 = vadd.f32 %v1208, %v1265
        %v1279 = vadd.f32 %v1209, %v1265
        %v1280 = vadd.f32 %v1210, %v1265
        %v1281 = vadd.f32 %v1211, %v1265
        %v1282 = vadd.f32 %v1212, %v1265
        %v1283 = vadd.f32 %v1213, %v1265
        %v1284 = vadd.f32 %v1214, %v1265
        %v1285 = vadd.f32 %v1215, %v1265
        %v1286 = vadd.f32 %v1216, %v1265
        %v1287 = vadd.f32 %v1217, %v1265
        %v1288 = vadd.f32 %v1218, %v1265
        %v1289 = vadd.f32 %v1219, %v1265
        %v1290 = vadd.f32 %v1220, %v1265
        %v1291 = vadd.f32 %v1221, %v1265
        %v1292 = vadd.f32 %v1222, %v1265
        %v1293 = vadd.f32 %v1223, %v1265
        %v1294 = vadd.f32 %v1224, %v1265
        %v1295 = vadd.f32 %v1225, %v1265
        %v1296 = vadd.f32 %v1226, %v1265
        %v1297 = vadd.f32 %v1227, %v1265
        %v1298 = vadd.f32 %v1228, %v1265
        %v1299 = vadd.f32 %v1229, %v1265
        %v1300 = vadd.f32 %v1230, %v1265
        %v1301 = vadd.f32 %v1231, %v1265
        %v1302 = vadd.f32 %v1232, %v1265
        %v1303 = vadd.f32 %v1233, %v1265
        %v1304 = vadd.f32 %v1234, %v1265
        %v1305 = vadd.f32 %v1235, %v1265
        %v1306 = vadd.f32 %v1236, %v1265
        %v1307 = vadd.f32 %v1237, %v1265
        %v1308 = vadd.f32 %v1238, %v1265
        %v1309 = vadd.f32 %v1239, %v1265
        %v1310 = vadd.f32 %v1240, %v1265
        %v1311 = vadd.f32 %v1241, %v1265
        %v1312 = vadd.f32 %v1242, %v1265
        %v1313 = vadd.f32 %v1243, %v1265
        %v1314 = vadd.f32 %v1244, %v1265
        %v1315 = vadd.f32 %v1245, %v1265
        %v1316 = vadd.f32 %v1246, %v1265
        %v1317 = vadd.f32 %v1247, %v1265
        %v1318 = vadd.f32 %v1248, %v1265
        %v1319 = vadd.f32 %v1249, %v1265
        %v1320 = vadd.f32 %v1250, %v1265
        %v1321 = vadd.f32 %v1251, %v1265
        %v1322 = vadd.f32 %v1252, %v1265
        %v1323 = vadd.f32 %v1253, %v1265
        %v1324 = vadd.f32 %v1254, %v1265
        %v1325 = vadd.f32 %v1255, %v1265
        %v1326 = vadd.f32 %v1256, %v1265
        %v1327 = vadd.f32 %v1257, %v1265
        %v1328 = vadd.f32 %v1258, %v1265
        %v1329 = vadd.f32 %v1259, %v1265
        %v1330 = vadd.f32 %v1260, %v1265
        %vm1331 = vcmp.gt.f32.partialorder %v1267, 0.0
        %vm1332 = vcmp.gt.f32.partialorder %v1268, 0.0
        %vm1333 = vcmp.gt.f32.partialorder %v1269, 0.0
        %vm1334 = vcmp.gt.f32.partialorder %v1270, 0.0
        %vm1335 = vcmp.gt.f32.partialorder %v1271, 0.0
        %vm1336 = vcmp.gt.f32.partialorder %v1272, 0.0
        %vm1337 = vcmp.gt.f32.partialorder %v1273, 0.0
        %vm1338 = vcmp.gt.f32.partialorder %v1274, 0.0
        %vm1339 = vcmp.gt.f32.partialorder %v1275, 0.0
        %vm1340 = vcmp.gt.f32.partialorder %v1276, 0.0
        %vm1341 = vcmp.gt.f32.partialorder %v1277, 0.0
        %vm1342 = vcmp.gt.f32.partialorder %v1278, 0.0
        %vm1343 = vcmp.gt.f32.partialorder %v1279, 0.0
        %vm1344 = vcmp.gt.f32.partialorder %v1280, 0.0
        %vm1345 = vcmp.gt.f32.partialorder %v1281, 0.0
        %vm1346 = vcmp.gt.f32.partialorder %v1282, 0.0
        %vm1347 = vcmp.gt.f32.partialorder %v1283, 0.0
        %vm1348 = vcmp.gt.f32.partialorder %v1284, 0.0
        %vm1349 = vcmp.gt.f32.partialorder %v1285, 0.0
        %vm1350 = vcmp.gt.f32.partialorder %v1286, 0.0
        %vm1351 = vcmp.gt.f32.partialorder %v1287, 0.0
        %vm1352 = vcmp.gt.f32.partialorder %v1288, 0.0
        %vm1353 = vcmp.gt.f32.partialorder %v1289, 0.0
        %vm1354 = vcmp.gt.f32.partialorder %v1290, 0.0
        %vm1355 = vcmp.gt.f32.partialorder %v1291, 0.0
        %vm1356 = vcmp.gt.f32.partialorder %v1292, 0.0
        %vm1357 = vcmp.gt.f32.partialorder %v1293, 0.0
        %vm1358 = vcmp.gt.f32.partialorder %v1294, 0.0
        %vm1359 = vcmp.gt.f32.partialorder %v1295, 0.0
        %vm1360 = vcmp.gt.f32.partialorder %v1296, 0.0
        %vm1361 = vcmp.gt.f32.partialorder %v1297, 0.0
        %vm1362 = vcmp.gt.f32.partialorder %v1298, 0.0
        %vm1363 = vcmp.gt.f32.partialorder %v1299, 0.0
        %vm1364 = vcmp.gt.f32.partialorder %v1300, 0.0
        %vm1365 = vcmp.gt.f32.partialorder %v1301, 0.0
        %vm1366 = vcmp.gt.f32.partialorder %v1302, 0.0
        %vm1367 = vcmp.gt.f32.partialorder %v1303, 0.0
        %vm1368 = vcmp.gt.f32.partialorder %v1304, 0.0
        %vm1369 = vcmp.gt.f32.partialorder %v1305, 0.0
        %vm1370 = vcmp.gt.f32.partialorder %v1306, 0.0
        %vm1371 = vcmp.gt.f32.partialorder %v1307, 0.0
        %vm1372 = vcmp.gt.f32.partialorder %v1308, 0.0
        %vm1373 = vcmp.gt.f32.partialorder %v1309, 0.0
        %vm1374 = vcmp.gt.f32.partialorder %v1310, 0.0
        %vm1375 = vcmp.gt.f32.partialorder %v1311, 0.0
        %vm1376 = vcmp.gt.f32.partialorder %v1312, 0.0
        %vm1377 = vcmp.gt.f32.partialorder %v1313, 0.0
        %vm1378 = vcmp.gt.f32.partialorder %v1314, 0.0
        %vm1379 = vcmp.gt.f32.partialorder %v1315, 0.0
        %vm1380 = vcmp.gt.f32.partialorder %v1316, 0.0
        %vm1381 = vcmp.gt.f32.partialorder %v1317, 0.0
        %vm1382 = vcmp.gt.f32.partialorder %v1318, 0.0
        %vm1383 = vcmp.gt.f32.partialorder %v1319, 0.0
        %vm1384 = vcmp.gt.f32.partialorder %v1320, 0.0
        %vm1385 = vcmp.gt.f32.partialorder %v1321, 0.0
        %vm1386 = vcmp.gt.f32.partialorder %v1322, 0.0
        %vm1387 = vcmp.gt.f32.partialorder %v1323, 0.0
        %vm1388 = vcmp.gt.f32.partialorder %v1324, 0.0
        %vm1389 = vcmp.gt.f32.partialorder %v1325, 0.0
        %vm1390 = vcmp.gt.f32.partialorder %v1326, 0.0
        %vm1391 = vcmp.gt.f32.partialorder %v1327, 0.0
        %vm1392 = vcmp.gt.f32.partialorder %v1328, 0.0
        %vm1393 = vcmp.gt.f32.partialorder %v1329, 0.0
        %vm1394 = vcmp.gt.f32.partialorder %v1330, 0.0
        %v1395 = vmul.f32 %v1267, 0.2
        %v1396 = vmul.f32 %v1268, 0.2
        %v1397 = vmul.f32 %v1269, 0.2
        %v1398 = vmul.f32 %v1270, 0.2
        %v1399 = vmul.f32 %v1271, 0.2
        %v1400 = vmul.f32 %v1272, 0.2
        %v1401 = vmul.f32 %v1273, 0.2
        %v1402 = vmul.f32 %v1274, 0.2
        %v1403 = vmul.f32 %v1275, 0.2
        %v1404 = vmul.f32 %v1276, 0.2
        %v1405 = vmul.f32 %v1277, 0.2
        %v1406 = vmul.f32 %v1278, 0.2
        %v1407 = vmul.f32 %v1279, 0.2
        %v1408 = vmul.f32 %v1280, 0.2
        %v1409 = vmul.f32 %v1281, 0.2
        %v1410 = vmul.f32 %v1282, 0.2
        %v1411 = vmul.f32 %v1283, 0.2
        %v1412 = vmul.f32 %v1284, 0.2
        %v1413 = vmul.f32 %v1285, 0.2
        %v1414 = vmul.f32 %v1286, 0.2
        %v1415 = vmul.f32 %v1287, 0.2
        %v1416 = vmul.f32 %v1288, 0.2
        %v1417 = vmul.f32 %v1289, 0.2
        %v1418 = vmul.f32 %v1290, 0.2
        %v1419 = vmul.f32 %v1291, 0.2
        %v1420 = vmul.f32 %v1292, 0.2
        %v1421 = vmul.f32 %v1293, 0.2
        %v1422 = vmul.f32 %v1294, 0.2
        %v1423 = vmul.f32 %v1295, 0.2
        %v1424 = vmul.f32 %v1296, 0.2
        %v1425 = vmul.f32 %v1297, 0.2
        %v1426 = vmul.f32 %v1298, 0.2
        %v1427 = vmul.f32 %v1299, 0.2
        %v1428 = vmul.f32 %v1300, 0.2
        %v1429 = vmul.f32 %v1301, 0.2
        %v1430 = vmul.f32 %v1302, 0.2
        %v1431 = vmul.f32 %v1303, 0.2
        %v1432 = vmul.f32 %v1304, 0.2
        %v1433 = vmul.f32 %v1305, 0.2
        %v1434 = vmul.f32 %v1306, 0.2
        %v1435 = vmul.f32 %v1307, 0.2
        %v1436 = vmul.f32 %v1308, 0.2
        %v1437 = vmul.f32 %v1309, 0.2
        %v1438 = vmul.f32 %v1310, 0.2
        %v1439 = vmul.f32 %v1311, 0.2
        %v1440 = vmul.f32 %v1312, 0.2
        %v1441 = vmul.f32 %v1313, 0.2
        %v1442 = vmul.f32 %v1314, 0.2
        %v1443 = vmul.f32 %v1315, 0.2
        %v1444 = vmul.f32 %v1316, 0.2
        %v1445 = vmul.f32 %v1317, 0.2
        %v1446 = vmul.f32 %v1318, 0.2
        %v1447 = vmul.f32 %v1319, 0.2
        %v1448 = vmul.f32 %v1320, 0.2
        %v1449 = vmul.f32 %v1321, 0.2
        %v1450 = vmul.f32 %v1322, 0.2
        %v1451 = vmul.f32 %v1323, 0.2
        %v1452 = vmul.f32 %v1324, 0.2
        %v1453 = vmul.f32 %v1325, 0.2
        %v1454 = vmul.f32 %v1326, 0.2
        %v1455 = vmul.f32 %v1327, 0.2
        %v1456 = vmul.f32 %v1328, 0.2
        %v1457 = vmul.f32 %v1329, 0.2
        %v1458 = vmul.f32 %v1330, 0.2
        %v1459 = vsel %vm1331, %v1267, %v1395
        %v1460 = vsel %vm1332, %v1268, %v1396
        %v1461 = vsel %vm1333, %v1269, %v1397
        %v1462 = vsel %vm1334, %v1270, %v1398
        %v1463 = vsel %vm1335, %v1271, %v1399
        %v1464 = vsel %vm1336, %v1272, %v1400
        %v1465 = vsel %vm1337, %v1273, %v1401
        %v1466 = vsel %vm1338, %v1274, %v1402
        %v1467 = vsel %vm1339, %v1275, %v1403
        %v1468 = vsel %vm1340, %v1276, %v1404
        %v1469 = vsel %vm1341, %v1277, %v1405
        %v1470 = vsel %vm1342, %v1278, %v1406
        %v1471 = vsel %vm1343, %v1279, %v1407
        %v1472 = vsel %vm1344, %v1280, %v1408
        %v1473 = vsel %vm1345, %v1281, %v1409
        %v1474 = vsel %vm1346, %v1282, %v1410
        %v1475 = vsel %vm1347, %v1283, %v1411
        %v1476 = vsel %vm1348, %v1284, %v1412
        %v1477 = vsel %vm1349, %v1285, %v1413
        %v1478 = vsel %vm1350, %v1286, %v1414
        %v1479 = vsel %vm1351, %v1287, %v1415
        %v1480 = vsel %vm1352, %v1288, %v1416
        %v1481 = vsel %vm1353, %v1289, %v1417
        %v1482 = vsel %vm1354, %v1290, %v1418
        %v1483 = vsel %vm1355, %v1291, %v1419
        %v1484 = vsel %vm1356, %v1292, %v1420
        %v1485 = vsel %vm1357, %v1293, %v1421
        %v1486 = vsel %vm1358, %v1294, %v1422
        %v1487 = vsel %vm1359, %v1295, %v1423
        %v1488 = vsel %vm1360, %v1296, %v1424
        %v1489 = vsel %vm1361, %v1297, %v1425
        %v1490 = vsel %vm1362, %v1298, %v1426
        %v1491 = vsel %vm1363, %v1299, %v1427
        %v1492 = vsel %vm1364, %v1300, %v1428
        %v1493 = vsel %vm1365, %v1301, %v1429
        %v1494 = vsel %vm1366, %v1302, %v1430
        %v1495 = vsel %vm1367, %v1303, %v1431
        %v1496 = vsel %vm1368, %v1304, %v1432
        %v1497 = vsel %vm1369, %v1305, %v1433
        %v1498 = vsel %vm1370, %v1306, %v1434
        %v1499 = vsel %vm1371, %v1307, %v1435
        %v1500 = vsel %vm1372, %v1308, %v1436
        %v1501 = vsel %vm1373, %v1309, %v1437
        %v1502 = vsel %vm1374, %v1310, %v1438
        %v1503 = vsel %vm1375, %v1311, %v1439
        %v1504 = vsel %vm1376, %v1312, %v1440
        %v1505 = vsel %vm1377, %v1313, %v1441
        %v1506 = vsel %vm1378, %v1314, %v1442
        %v1507 = vsel %vm1379, %v1315, %v1443
        %v1508 = vsel %vm1380, %v1316, %v1444
        %v1509 = vsel %vm1381, %v1317, %v1445
        %v1510 = vsel %vm1382, %v1318, %v1446
        %v1511 = vsel %vm1383, %v1319, %v1447
        %v1512 = vsel %vm1384, %v1320, %v1448
        %v1513 = vsel %vm1385, %v1321, %v1449
        %v1514 = vsel %vm1386, %v1322, %v1450
        %v1515 = vsel %vm1387, %v1323, %v1451
        %v1516 = vsel %vm1388, %v1324, %v1452
        %v1517 = vsel %vm1389, %v1325, %v1453
        %v1518 = vsel %vm1390, %v1326, %v1454
        %v1519 = vsel %vm1391, %v1327, %v1455
        %v1520 = vsel %vm1392, %v1328, %v1456
        %v1521 = vsel %vm1393, %v1329, %v1457
        %v1522 = vsel %vm1394, %v1330, %v1458
        %v1523 = vpack.c.bf16 %v1460, %v1459
        %v1524 = vpack.c.bf16 %v1462, %v1461
        %v1525 = vpack.c.bf16 %v1464, %v1463
        %v1526 = vpack.c.bf16 %v1466, %v1465
        %v1527 = vpack.c.bf16 %v1468, %v1467
        %v1528 = vpack.c.bf16 %v1470, %v1469
        %v1529 = vpack.c.bf16 %v1472, %v1471
        %v1530 = vpack.c.bf16 %v1474, %v1473
        %v1531 = vpack.c.bf16 %v1476, %v1475
        %v1532 = vpack.c.bf16 %v1478, %v1477
        %v1533 = vpack.c.bf16 %v1480, %v1479
        %v1534 = vpack.c.bf16 %v1482, %v1481
        %v1535 = vpack.c.bf16 %v1484, %v1483
        %v1536 = vpack.c.bf16 %v1486, %v1485
        %v1537 = vpack.c.bf16 %v1488, %v1487
        %v1538 = vpack.c.bf16 %v1490, %v1489
        %v1539 = vpack.c.bf16 %v1492, %v1491
        %v1540 = vpack.c.bf16 %v1494, %v1493
        %v1541 = vpack.c.bf16 %v1496, %v1495
        %v1542 = vpack.c.bf16 %v1498, %v1497
        %v1543 = vpack.c.bf16 %v1500, %v1499
        %v1544 = vpack.c.bf16 %v1502, %v1501
        %v1545 = vpack.c.bf16 %v1504, %v1503
        %v1546 = vpack.c.bf16 %v1506, %v1505
        %v1547 = vpack.c.bf16 %v1508, %v1507
        %v1548 = vpack.c.bf16 %v1510, %v1509
        %v1549 = vpack.c.bf16 %v1512, %v1511
        %v1550 = vpack.c.bf16 %v1514, %v1513
        %v1551 = vpack.c.bf16 %v1516, %v1515
        %v1552 = vpack.c.bf16 %v1518, %v1517
        %v1553 = vpack.c.bf16 %v1520, %v1519
        %v1554 = vpack.c.bf16 %v1522, %v1521
        %v1587 = vunpack.c.l.b16 %v1523
        %v1588 = vunpack.c.h.b16 %v1523
        %v1589 = vunpack.c.l.b16 %v1524
        %v1590 = vunpack.c.h.b16 %v1524
        %v1591 = vunpack.c.l.b16 %v1525
        %v1592 = vunpack.c.h.b16 %v1525
        %v1593 = vunpack.c.l.b16 %v1526
        %v1594 = vunpack.c.h.b16 %v1526
        %v1595 = vunpack.c.l.b16 %v1527
        %v1596 = vunpack.c.h.b16 %v1527
        %v1597 = vunpack.c.l.b16 %v1528
        %v1598 = vunpack.c.h.b16 %v1528
        %v1599 = vunpack.c.l.b16 %v1529
        %v1600 = vunpack.c.h.b16 %v1529
        %v1601 = vunpack.c.l.b16 %v1530
        %v1602 = vunpack.c.h.b16 %v1530
        %v1603 = vunpack.c.l.b16 %v1531
        %v1604 = vunpack.c.h.b16 %v1531
        %v1605 = vunpack.c.l.b16 %v1532
        %v1606 = vunpack.c.h.b16 %v1532
        %v1607 = vunpack.c.l.b16 %v1533
        %v1608 = vunpack.c.h.b16 %v1533
        %v1609 = vunpack.c.l.b16 %v1534
        %v1610 = vunpack.c.h.b16 %v1534
        %v1611 = vunpack.c.l.b16 %v1535
        %v1612 = vunpack.c.h.b16 %v1535
        %v1613 = vunpack.c.l.b16 %v1536
        %v1614 = vunpack.c.h.b16 %v1536
        %v1615 = vunpack.c.l.b16 %v1537
        %v1616 = vunpack.c.h.b16 %v1537
        %v1617 = vunpack.c.l.b16 %v1538
        %v1618 = vunpack.c.h.b16 %v1538
        %v1619 = vunpack.c.l.b16 %v1539
        %v1620 = vunpack.c.h.b16 %v1539
        %v1621 = vunpack.c.l.b16 %v1540
        %v1622 = vunpack.c.h.b16 %v1540
        %v1623 = vunpack.c.l.b16 %v1541
        %v1624 = vunpack.c.h.b16 %v1541
        %v1625 = vunpack.c.l.b16 %v1542
        %v1626 = vunpack.c.h.b16 %v1542
        %v1627 = vunpack.c.l.b16 %v1543
        %v1628 = vunpack.c.h.b16 %v1543
        %v1629 = vunpack.c.l.b16 %v1544
        %v1630 = vunpack.c.h.b16 %v1544
        %v1631 = vunpack.c.l.b16 %v1545
        %v1632 = vunpack.c.h.b16 %v1545
        %v1633 = vunpack.c.l.b16 %v1546
        %v1634 = vunpack.c.h.b16 %v1546
        %v1635 = vunpack.c.l.b16 %v1547
        %v1636 = vunpack.c.h.b16 %v1547
        %v1637 = vunpack.c.l.b16 %v1548
        %v1638 = vunpack.c.h.b16 %v1548
        %v1639 = vunpack.c.l.b16 %v1549
        %v1640 = vunpack.c.h.b16 %v1549
        %v1641 = vunpack.c.l.b16 %v1550
        %v1642 = vunpack.c.h.b16 %v1550
        %v1643 = vunpack.c.l.b16 %v1551
        %v1644 = vunpack.c.h.b16 %v1551
        %v1645 = vunpack.c.l.b16 %v1552
        %v1646 = vunpack.c.h.b16 %v1552
        %v1647 = vunpack.c.l.b16 %v1553
        %v1648 = vunpack.c.h.b16 %v1553
        %v1649 = vunpack.c.l.b16 %v1554
        %v1650 = vunpack.c.h.b16 %v1554
        %v1651 = vpack.c.b16 %v1587, %v1587
        %v1652 = vpack.c.b16 %v1588, %v1588
        %v1653 = vpack.c.b16 %v1589, %v1589
        %v1654 = vpack.c.b16 %v1590, %v1590
        %v1655 = vpack.c.b16 %v1591, %v1591
        %v1656 = vpack.c.b16 %v1592, %v1592
        %v1657 = vpack.c.b16 %v1593, %v1593
        %v1658 = vpack.c.b16 %v1594, %v1594
        %v1659 = vpack.c.b16 %v1595, %v1595
        %v1660 = vpack.c.b16 %v1596, %v1596
        %v1661 = vpack.c.b16 %v1597, %v1597
        %v1662 = vpack.c.b16 %v1598, %v1598
        %v1663 = vpack.c.b16 %v1599, %v1599
        %v1664 = vpack.c.b16 %v1600, %v1600
        %v1665 = vpack.c.b16 %v1601, %v1601
        %v1666 = vpack.c.b16 %v1602, %v1602
        %v1667 = vpack.c.b16 %v1603, %v1603
        %v1668 = vpack.c.b16 %v1604, %v1604
        %v1669 = vpack.c.b16 %v1605, %v1605
        %v1670 = vpack.c.b16 %v1606, %v1606
        %v1671 = vpack.c.b16 %v1607, %v1607
        %v1672 = vpack.c.b16 %v1608, %v1608
        %v1673 = vpack.c.b16 %v1609, %v1609
        %v1674 = vpack.c.b16 %v1610, %v1610
        %v1675 = vpack.c.b16 %v1611, %v1611
        %v1676 = vpack.c.b16 %v1612, %v1612
        %v1677 = vpack.c.b16 %v1613, %v1613
        %v1678 = vpack.c.b16 %v1614, %v1614
        %v1679 = vpack.c.b16 %v1615, %v1615
        %v1680 = vpack.c.b16 %v1616, %v1616
        %v1681 = vpack.c.b16 %v1617, %v1617
        %v1682 = vpack.c.b16 %v1618, %v1618
        %v1683 = vpack.c.b16 %v1619, %v1619
        %v1684 = vpack.c.b16 %v1620, %v1620
        %v1685 = vpack.c.b16 %v1621, %v1621
        %v1686 = vpack.c.b16 %v1622, %v1622
        %v1687 = vpack.c.b16 %v1623, %v1623
        %v1688 = vpack.c.b16 %v1624, %v1624
        %v1689 = vpack.c.b16 %v1625, %v1625
        %v1690 = vpack.c.b16 %v1626, %v1626
        %v1691 = vpack.c.b16 %v1627, %v1627
        %v1692 = vpack.c.b16 %v1628, %v1628
        %v1693 = vpack.c.b16 %v1629, %v1629
        %v1694 = vpack.c.b16 %v1630, %v1630
        %v1695 = vpack.c.b16 %v1631, %v1631
        %v1696 = vpack.c.b16 %v1632, %v1632
        %v1697 = vpack.c.b16 %v1633, %v1633
        %v1698 = vpack.c.b16 %v1634, %v1634
        %v1699 = vpack.c.b16 %v1635, %v1635
        %v1700 = vpack.c.b16 %v1636, %v1636
        %v1701 = vpack.c.b16 %v1637, %v1637
        %v1702 = vpack.c.b16 %v1638, %v1638
        %v1703 = vpack.c.b16 %v1639, %v1639
        %v1704 = vpack.c.b16 %v1640, %v1640
        %v1705 = vpack.c.b16 %v1641, %v1641
        %v1706 = vpack.c.b16 %v1642, %v1642
        %v1707 = vpack.c.b16 %v1643, %v1643
        %v1708 = vpack.c.b16 %v1644, %v1644
        %v1709 = vpack.c.b16 %v1645, %v1645
        %v1710 = vpack.c.b16 %v1646, %v1646
        %v1711 = vpack.c.b16 %v1647, %v1647
        %v1712 = vpack.c.b16 %v1648, %v1648
        %v1713 = vpack.c.b16 %v1649, %v1649
        %v1714 = vpack.c.b16 %v1650, %v1650
        %vm1779 = vcmask 125952
        %1780 = vst.msk [vmem:[%s211] sm:$0xf] %vm1779, %v1651
        %1781 = vst.msk [vmem:[%s211 + $0x4] sm:$0xf] %vm1779, %v1652
        %1782 = vst.msk [vmem:[%s211 + $0x8] sm:$0xf] %vm1779, %v1653
        %1783 = vst.msk [vmem:[%s211 + $0xc] sm:$0xf] %vm1779, %v1654
        %1784 = vst.msk [vmem:[%s211 + $0x10] sm:$0xf] %vm1779, %v1655
        %1785 = vst.msk [vmem:[%s211 + $0x14] sm:$0xf] %vm1779, %v1656
        %1786 = vst.msk [vmem:[%s211 + $0x18] sm:$0xf] %vm1779, %v1657
        %1787 = vst.msk [vmem:[%s211 + $0x1c] sm:$0xf] %vm1779, %v1658
        %1788 = vst.msk [vmem:[%s211 + $0x20] sm:$0xf] %vm1779, %v1659
        %1789 = vst.msk [vmem:[%s211 + $0x24] sm:$0xf] %vm1779, %v1660
        %1790 = vst.msk [vmem:[%s211 + $0x28] sm:$0xf] %vm1779, %v1661
        %1791 = vst.msk [vmem:[%s211 + $0x2c] sm:$0xf] %vm1779, %v1662
        %1792 = vst.msk [vmem:[%s211 + $0x30] sm:$0xf] %vm1779, %v1663
        %1793 = vst.msk [vmem:[%s211 + $0x34] sm:$0xf] %vm1779, %v1664
        %1794 = vst.msk [vmem:[%s211 + $0x38] sm:$0xf] %vm1779, %v1665
        %1795 = vst.msk [vmem:[%s211 + $0x3c] sm:$0xf] %vm1779, %v1666
        %1796 = vst.msk [vmem:[%s211 + $0x40] sm:$0xf] %vm1779, %v1667
        %1797 = vst.msk [vmem:[%s211 + $0x44] sm:$0xf] %vm1779, %v1668
        %1798 = vst.msk [vmem:[%s211 + $0x48] sm:$0xf] %vm1779, %v1669
        %1799 = vst.msk [vmem:[%s211 + $0x4c] sm:$0xf] %vm1779, %v1670
        %1800 = vst.msk [vmem:[%s211 + $0x50] sm:$0xf] %vm1779, %v1671
        %1801 = vst.msk [vmem:[%s211 + $0x54] sm:$0xf] %vm1779, %v1672
        %1802 = vst.msk [vmem:[%s211 + $0x58] sm:$0xf] %vm1779, %v1673
        %1803 = vst.msk [vmem:[%s211 + $0x5c] sm:$0xf] %vm1779, %v1674
        %1804 = vst.msk [vmem:[%s211 + $0x60] sm:$0xf] %vm1779, %v1675
        %1805 = vst.msk [vmem:[%s211 + $0x64] sm:$0xf] %vm1779, %v1676
        %1806 = vst.msk [vmem:[%s211 + $0x68] sm:$0xf] %vm1779, %v1677
        %1807 = vst.msk [vmem:[%s211 + $0x6c] sm:$0xf] %vm1779, %v1678
        %1808 = vst.msk [vmem:[%s211 + $0x70] sm:$0xf] %vm1779, %v1679
        %1809 = vst.msk [vmem:[%s211 + $0x74] sm:$0xf] %vm1779, %v1680
        %1810 = vst.msk [vmem:[%s211 + $0x78] sm:$0xf] %vm1779, %v1681
        %1811 = vst.msk [vmem:[%s211 + $0x7c] sm:$0xf] %vm1779, %v1682
        %1812 = vst.msk [vmem:[%s211 + $0x80] sm:$0xf] %vm1779, %v1683
        %1813 = vst.msk [vmem:[%s211 + $0x84] sm:$0xf] %vm1779, %v1684
        %1814 = vst.msk [vmem:[%s211 + $0x88] sm:$0xf] %vm1779, %v1685
        %1815 = vst.msk [vmem:[%s211 + $0x8c] sm:$0xf] %vm1779, %v1686
        %1816 = vst.msk [vmem:[%s211 + $0x90] sm:$0xf] %vm1779, %v1687
        %1817 = vst.msk [vmem:[%s211 + $0x94] sm:$0xf] %vm1779, %v1688
        %1818 = vst.msk [vmem:[%s211 + $0x98] sm:$0xf] %vm1779, %v1689
        %1819 = vst.msk [vmem:[%s211 + $0x9c] sm:$0xf] %vm1779, %v1690
        %1820 = vst.msk [vmem:[%s211 + $0xa0] sm:$0xf] %vm1779, %v1691
        %1821 = vst.msk [vmem:[%s211 + $0xa4] sm:$0xf] %vm1779, %v1692
        %1822 = vst.msk [vmem:[%s211 + $0xa8] sm:$0xf] %vm1779, %v1693
        %1823 = vst.msk [vmem:[%s211 + $0xac] sm:$0xf] %vm1779, %v1694
        %1824 = vst.msk [vmem:[%s211 + $0xb0] sm:$0xf] %vm1779, %v1695
        %1825 = vst.msk [vmem:[%s211 + $0xb4] sm:$0xf] %vm1779, %v1696
        %1826 = vst.msk [vmem:[%s211 + $0xb8] sm:$0xf] %vm1779, %v1697
        %1827 = vst.msk [vmem:[%s211 + $0xbc] sm:$0xf] %vm1779, %v1698
        %1828 = vst.msk [vmem:[%s211 + $0xc0] sm:$0xf] %vm1779, %v1699
        %1829 = vst.msk [vmem:[%s211 + $0xc4] sm:$0xf] %vm1779, %v1700
        %1830 = vst.msk [vmem:[%s211 + $0xc8] sm:$0xf] %vm1779, %v1701
        %1831 = vst.msk [vmem:[%s211 + $0xcc] sm:$0xf] %vm1779, %v1702
        %1832 = vst.msk [vmem:[%s211 + $0xd0] sm:$0xf] %vm1779, %v1703
        %1833 = vst.msk [vmem:[%s211 + $0xd4] sm:$0xf] %vm1779, %v1704
        %1834 = vst.msk [vmem:[%s211 + $0xd8] sm:$0xf] %vm1779, %v1705
        %1835 = vst.msk [vmem:[%s211 + $0xdc] sm:$0xf] %vm1779, %v1706
        %1836 = vst.msk [vmem:[%s211 + $0xe0] sm:$0xf] %vm1779, %v1707
        %1837 = vst.msk [vmem:[%s211 + $0xe4] sm:$0xf] %vm1779, %v1708
        %1838 = vst.msk [vmem:[%s211 + $0xe8] sm:$0xf] %vm1779, %v1709
        %1839 = vst.msk [vmem:[%s211 + $0xec] sm:$0xf] %vm1779, %v1710
        %1840 = vst.msk [vmem:[%s211 + $0xf0] sm:$0xf] %vm1779, %v1711
        %1841 = vst.msk [vmem:[%s211 + $0xf4] sm:$0xf] %vm1779, %v1712
        %1842 = vst.msk [vmem:[%s211 + $0xf8] sm:$0xf] %vm1779, %v1713
        %1843 = vst.msk [vmem:[%s211 + $0xfc] sm:$0xf] %vm1779, %v1714
      $region48: #{discriminator_forward.5} parent=35 // pred_fallthru
        _
      %s1844 = smul.u32 64, %s20
      %p1845 = scmp.lt.s32.totalorder %s1844, 63
      %s1846 = scalar_select %p1845, %s1844, 63
      %s1847 = smul.addr %s1846, 4
      %s1848 = scalar_lea.vmem %s4, %s1847
      // Predicated region
      $region49: #{discriminator_forward.5} parent=35 // pred_check
        %p1849 = pneg %p134
      $region50: #{discriminator_forward.5} parent=35 // pred_check_branch
        %1851 = sbr.rel (%p1849) target = $region52
      $region51: #{discriminator_forward.5} parent=35 // pred_region
        %s1852 = smul.u32 64, %s20
      $region52: #{discriminator_forward.5} parent=35 // pred_fallthru
        _
      // Predicated region
      $region53: #{discriminator_forward.5} parent=35 // pred_check
        %p1853 = pneg %p134
      $region54: #{discriminator_forward.5} parent=35 // pred_check_branch
        %1855 = sbr.rel (%p1853) target = $region56
      $region55: #{discriminator_forward.5} parent=35 // pred_region
        %s1856 = smul.u32 64, %s20
        %p1857 = scmp.lt.s32.totalorder %s1856, 63
        %s1858 = scalar_select %p1857, %s1856, 63
        %s1859 = smul.addr %s1858, 4
        %s1860 = scalar_lea.vmem %s4, %s1859
      $region56: #{discriminator_forward.5} parent=35 // pred_fallthru
        _
    $region36: #{discriminator_forward.5} parent=5 // pred_fallthru
      _
    %p1861 = scmp.le.s32.totalorder 2, %s10
    // Predicated region
    $region57: #{discriminator_forward.5} parent=5 // pred_check
      %p1862 = pneg %p1861
    $region58: #{discriminator_forward.5} parent=5 // pred_check_branch
      %1864 = sbr.rel (%p1862) target = $region60
    $region59: #{discriminator_forward.5} parent=5 // pred_region
      %s1865 = ssub.s32 %s10, 2
    $region60: #{discriminator_forward.5} parent=5 // pred_fallthru
      _
  $region6: #{discriminator_forward.5} parent=0 // loop_footer
    %s14 = sadd.s32 1, %s10
  $region7: #{discriminator_forward.5} parent=0 // loop_footer_branch
    %9 = sbr.rel target = $region3
  $region8: #{discriminator_forward.5} parent=0 // loop_exit
    _

// kernel: discriminator_forward.6
$region0: #{discriminator_forward.6}
  #allocation0 [shape = 'u32[]', space=smem, size = 0x4, offset = 0x4, fixed_abs, tag = 'smem constant byte address 0x4 - core index']
  #allocation1 [shape = 'u32[144,128]{1,0:T(1,128)}', space=vmem, size = 0x12000, scoped, tag = 'internal scratch']
  #allocation2 [shape = 'f32[1,32]{1,0:T(1,128)}', space=vmem, size = 0x200, scoped, tag = 'scratch operand']
  #allocation3 [shape = 'f32[1,32]{1,0:T(1,128)}', space=vmem, size = 0x200, scoped, tag = 'scratch operand']
  %s0 = inlined_call_operand.vmem [shape: bf16[128,256], index: 0, kind: input, shape index: {}]
  %s1 = inlined_call_operand.vmem [shape: bf16[256,32], index: 1, kind: input, shape index: {}]
  %s2 = inlined_call_operand.vmem [shape: f32[1,32], index: 2, kind: input, shape index: {}]
  %s3 = inlined_call_operand.vmem [shape: f32[1,32], index: 3, kind: input, shape index: {}]
  %s4 = inlined_call_operand.vmem [shape: bf16[128,32], index: 4, kind: output, shape index: {}]
  %s5 = sld [smem:[#allocation0]]
  $region61: #{discriminator_forward.6} parent=0
    _
  %s7 = ssub.s32 1, %s5
  %s8 = scalar_select 0, %s7, %s5
  loop: start=0, step=1, limit=4
  $region2: #{discriminator_forward.6} parent=0 // loop_pre_header
    _
  $region3: #{discriminator_forward.6} parent=0 // loop_header
    %s10 = sphi 0, %s14
    %p11 = scmp.ge.s32.totalorder %s10, 4
    %s17 = sphi 0, %s29
    %s18 = sphi 0, %s25
    %s19 = sphi 0, %s17
    %s20 = sphi 0, %s18
    %s21 = sphi 0, %s19
    %s22 = sphi 0, %s20
    %s32 = sphi 0, %s34
    %s35 = sphi 0, %s32
    %s36 = sphi 0, %s35
    %s52 = sphi 0, %s36
    %s56 = sphi 0, %s56
    %s58 = sphi 0, %s56
    %s59 = sphi 0, %s58
    %s73 = sphi 0, %s59
    %s77 = sphi 0, %s77
    %s79 = sphi 0, %s77
    %s80 = sphi 0, %s79
    %s94 = sphi 0, %s80
    %s98 = sphi 0, %s98
    %s100 = sphi 0, %s98
    %s101 = sphi 0, %s100
    %s115 = sphi 0, %s101
    %s121 = sphi 0, %s123
    %s124 = sphi 0, %s121
    %s125 = sphi 0, %s124
    %s141 = sphi 0, %s125
  $region4: #{discriminator_forward.6} parent=0 // loop_header_branch
    %13 = sbr.rel (%p11) target = $region8
  $region5: #{discriminator_forward.6} parent=0 // loop_body
    %s15 = ssub.s32 %s10, 1
    %s16 = ssub.s32 %s10, 2
    %s23 = sadd.s32 1, %s18
    %p24 = scmp.ge.s32.totalorder %s23, 1
    %s25 = scalar_select %p24, 0, %s23
    %s26 = sadd.s32 1, %s17
    %s27 = scalar_select %p24, %s26, %s17
    %p28 = scmp.ge.s32.totalorder %s27, 2
    %s29 = scalar_select %p28, 0, %s27
    %s30 = ssub.s32 %s18, %s25
    %p31 = scmp.eq.s32.totalorder %s30, 0
    %s33 = sadd.s32 %s32, 1
    %s34 = scalar_select %p31, %s32, %s33
    %p37 = pneg %p31
    %p38 = scmp.eq.s32.totalorder %s10, 1
    %p39 = por %p37, %p38
    %p40 = scmp.ne.s32.totalorder %s32, %s35
    %p41 = scmp.eq.s32.totalorder %s10, 0
    %p42 = por %p40, %p41
    %p43 = scmp.ne.s32.totalorder %s32, %s35
    %p44 = scmp.eq.s32.totalorder %s15, 1
    %p45 = por %p43, %p44
    %p46 = scmp.ne.s32.totalorder %s35, %s36
    %p47 = scmp.eq.s32.totalorder %s15, 0
    %p48 = por %p46, %p47
    %p49 = scmp.ne.s32.totalorder %s35, %s36
    %p50 = scmp.eq.s32.totalorder %s16, 1
    %p51 = por %p49, %p50
    %p53 = scmp.ne.s32.totalorder %s36, %s52
    %p54 = scmp.eq.s32.totalorder %s16, 0
    %p55 = por %p53, %p54
    %s57 = sadd.s32 %s56, 1
    %p60 = scmp.eq.s32.totalorder %s10, 1
    %p61 = scmp.ne.s32.totalorder %s56, %s58
    %p62 = scmp.eq.s32.totalorder %s10, 0
    %p63 = por %p61, %p62
    %p64 = scmp.ne.s32.totalorder %s56, %s58
    %p65 = scmp.eq.s32.totalorder %s15, 1
    %p66 = por %p64, %p65
    %p67 = scmp.ne.s32.totalorder %s58, %s59
    %p68 = scmp.eq.s32.totalorder %s15, 0
    %p69 = por %p67, %p68
    %p70 = scmp.ne.s32.totalorder %s58, %s59
    %p71 = scmp.eq.s32.totalorder %s16, 1
    %p72 = por %p70, %p71
    %p74 = scmp.ne.s32.totalorder %s59, %s73
    %p75 = scmp.eq.s32.totalorder %s16, 0
    %p76 = por %p74, %p75
    %s78 = sadd.s32 %s77, 1
    %p81 = scmp.eq.s32.totalorder %s10, 1
    %p82 = scmp.ne.s32.totalorder %s77, %s79
    %p83 = scmp.eq.s32.totalorder %s10, 0
    %p84 = por %p82, %p83
    %p85 = scmp.ne.s32.totalorder %s77, %s79
    %p86 = scmp.eq.s32.totalorder %s15, 1
    %p87 = por %p85, %p86
    %p88 = scmp.ne.s32.totalorder %s79, %s80
    %p89 = scmp.eq.s32.totalorder %s15, 0
    %p90 = por %p88, %p89
    %p91 = scmp.ne.s32.totalorder %s79, %s80
    %p92 = scmp.eq.s32.totalorder %s16, 1
    %p93 = por %p91, %p92
    %p95 = scmp.ne.s32.totalorder %s80, %s94
    %p96 = scmp.eq.s32.totalorder %s16, 0
    %p97 = por %p95, %p96
    %s99 = sadd.s32 %s98, 1
    %p102 = scmp.eq.s32.totalorder %s10, 1
    %p103 = scmp.ne.s32.totalorder %s98, %s100
    %p104 = scmp.eq.s32.totalorder %s10, 0
    %p105 = por %p103, %p104
    %p106 = scmp.ne.s32.totalorder %s98, %s100
    %p107 = scmp.eq.s32.totalorder %s15, 1
    %p108 = por %p106, %p107
    %p109 = scmp.ne.s32.totalorder %s100, %s101
    %p110 = scmp.eq.s32.totalorder %s15, 0
    %p111 = por %p109, %p110
    %p112 = scmp.ne.s32.totalorder %s100, %s101
    %p113 = scmp.eq.s32.totalorder %s16, 1
    %p114 = por %p112, %p113
    %p116 = scmp.ne.s32.totalorder %s101, %s115
    %p117 = scmp.eq.s32.totalorder %s16, 0
    %p118 = por %p116, %p117
    %s119 = ssub.s32 %s18, %s25
    %p120 = scmp.eq.s32.totalorder %s119, 0
    %s122 = sadd.s32 %s121, 1
    %s123 = scalar_select %p120, %s121, %s122
    %p126 = pneg %p120
    %p127 = scmp.eq.s32.totalorder %s10, 1
    %p128 = por %p126, %p127
    %p129 = scmp.ne.s32.totalorder %s121, %s124
    %p130 = scmp.eq.s32.totalorder %s10, 0
    %p131 = por %p129, %p130
    %p132 = scmp.ne.s32.totalorder %s121, %s124
    %p133 = scmp.eq.s32.totalorder %s15, 1
    %p134 = por %p132, %p133
    %p135 = scmp.ne.s32.totalorder %s124, %s125
    %p136 = scmp.eq.s32.totalorder %s15, 0
    %p137 = por %p135, %p136
    %p138 = scmp.ne.s32.totalorder %s124, %s125
    %p139 = scmp.eq.s32.totalorder %s16, 1
    %p140 = por %p138, %p139
    %p142 = scmp.ne.s32.totalorder %s125, %s141
    %p143 = scmp.eq.s32.totalorder %s16, 0
    %p144 = por %p142, %p143
    %p145 = scmp.le.s32.totalorder 1, %s10
    %p146 = scmp.lt.s32.totalorder %s10, 3
    %p147 = pnand %p145, %p146
    %p148 = pneg %p147
    // Predicated region
    $region9: #{discriminator_forward.6} parent=5 // pred_check
      _
    $region10: #{discriminator_forward.6} parent=5 // pred_check_branch
      %150 = sbr.rel (%p147) target = $region12
    $region11: #{discriminator_forward.6} parent=5 // pred_region
      %s151 = ssub.s32 %s10, 1
      // Predicated region
      $region13: #{discriminator_forward.6} parent=11 // pred_check
        %p152 = pneg %p48
      $region14: #{discriminator_forward.6} parent=11 // pred_check_branch
        %154 = sbr.rel (%p152) target = $region16
      $region15: #{discriminator_forward.6} parent=11 // pred_region
        %s155 = smul.u32 16, %s20
        %p156 = scmp.lt.s32.totalorder %s155, 15
        %s157 = scalar_select %p156, %s155, 15
        %s158 = smul.addr %s157, 2
        %s159 = smul.addr %s158, 4
        %s160 = scalar_lea.vmem %s0, %s159
        %s161 = smul.u32 16, %s20
      $region16: #{discriminator_forward.6} parent=11 // pred_fallthru
        _
      // Predicated region
      $region17: #{discriminator_forward.6} parent=11 // pred_check
        %p162 = pneg %p69
      $region18: #{discriminator_forward.6} parent=11 // pred_check_branch
        %164 = sbr.rel (%p162) target = $region20
      $region19: #{discriminator_forward.6} parent=11 // pred_region
        _
      $region20: #{discriminator_forward.6} parent=11 // pred_fallthru
        _
      // Predicated region
      $region21: #{discriminator_forward.6} parent=11 // pred_check
        %p165 = pneg %p90
      $region22: #{discriminator_forward.6} parent=11 // pred_check_branch
        %167 = sbr.rel (%p165) target = $region24
      $region23: #{discriminator_forward.6} parent=11 // pred_region
        _
      $region24: #{discriminator_forward.6} parent=11 // pred_fallthru
        _
      // Predicated region
      $region25: #{discriminator_forward.6} parent=11 // pred_check
        %p168 = pneg %p111
      $region26: #{discriminator_forward.6} parent=11 // pred_check_branch
        %170 = sbr.rel (%p168) target = $region28
      $region27: #{discriminator_forward.6} parent=11 // pred_region
        _
      $region28: #{discriminator_forward.6} parent=11 // pred_fallthru
        _
    $region12: #{discriminator_forward.6} parent=5 // pred_fallthru
      _
    %p171 = scmp.lt.s32.totalorder %s10, 2
    // Predicated region
    $region29: #{discriminator_forward.6} parent=5 // pred_check
      %p172 = pneg %p171
    $region30: #{discriminator_forward.6} parent=5 // pred_check_branch
      %174 = sbr.rel (%p172) target = $region32
    $region31: #{discriminator_forward.6} parent=5 // pred_region
      _
    $region32: #{discriminator_forward.6} parent=5 // pred_fallthru
      _
    %p175 = scmp.le.s32.totalorder 1, %s10
    %p176 = scmp.lt.s32.totalorder %s10, 3
    %p177 = pnand %p175, %p176
    %p178 = pneg %p177
    // Predicated region
    $region33: #{discriminator_forward.6} parent=5 // pred_check
      _
    $region34: #{discriminator_forward.6} parent=5 // pred_check_branch
      %180 = sbr.rel (%p177) target = $region36
    $region35: #{discriminator_forward.6} parent=5 // pred_region
      %s181 = ssub.s32 %s10, 1
      %s182 = smul.u32 16, %s20
      %p183 = scmp.lt.s32.totalorder %s182, 15
      %s184 = scalar_select %p183, %s182, 15
      %s185 = smul.addr %s184, 2
      %s186 = smul.addr %s185, 4
      %s187 = scalar_lea.vmem %s0, %s186
      %p188 = pneg %p48
      %p189 = pneg %p45
      %p190 = pneg %p69
      %p191 = pneg %p66
      %p192 = pneg %p90
      %p193 = pneg %p87
      %p194 = pneg %p111
      %p195 = pneg %p108
      %p196 = pneg %p137
      %p197 = pneg %p134
      %s198 = smul.u32 16, %s20
      %p199 = scmp.lt.s32.totalorder %s198, 15
      %s200 = scalar_select %p199, %s198, 15
      %s201 = smul.addr %s200, 4
      %s202 = scalar_lea.vmem %s4, %s201
      %s203 = smul.u32 16, %s20
      %p204 = scmp.lt.s32.totalorder %s203, 15
      %s205 = scalar_select %p204, %s203, 15
      %s206 = smul.addr %s205, 2
      %s207 = smul.addr %s206, 4
      %s208 = scalar_lea.vmem %s0, %s207
      %s209 = smul.u32 16, %s20
      %s210 = smul.u32 16, %s20
      %p211 = scmp.lt.s32.totalorder %s210, 15
      %s212 = scalar_select %p211, %s210, 15
      %s213 = smul.addr %s212, 4
      %s214 = scalar_lea.vmem %s4, %s213
      %s215 = smul.u32 16, %s20
      %v217 = vld [vmem:[%s208] sm:$0xff]
      %v218 = vld [vmem:[%s208 + $0x8] sm:$0xff]
      %v219 = vld [vmem:[%s208 + $0x10] sm:$0xff]
      %v220 = vld [vmem:[%s208 + $0x18] sm:$0xff]
      %v221 = vld [vmem:[%s208 + $0x20] sm:$0xff]
      %v222 = vld [vmem:[%s208 + $0x28] sm:$0xff]
      %v223 = vld [vmem:[%s208 + $0x30] sm:$0xff]
      %v224 = vld [vmem:[%s208 + $0x38] sm:$0xff]
      %v225 = vld [vmem:[%s208 + $0x40] sm:$0xff]
      %v226 = vld [vmem:[%s208 + $0x48] sm:$0xff]
      %v227 = vld [vmem:[%s208 + $0x50] sm:$0xff]
      %v228 = vld [vmem:[%s208 + $0x58] sm:$0xff]
      %v229 = vld [vmem:[%s208 + $0x60] sm:$0xff]
      %v230 = vld [vmem:[%s208 + $0x68] sm:$0xff]
      %v231 = vld [vmem:[%s208 + $0x70] sm:$0xff]
      %v232 = vld [vmem:[%s208 + $0x78] sm:$0xff]
      %v233 = vld [vmem:[%s1] sm:$0xf]
      %v234 = vld [vmem:[%s1 + $0x4] sm:$0xf]
      %v235 = vld [vmem:[%s1 + $0x8] sm:$0xf]
      %v236 = vld [vmem:[%s1 + $0xc] sm:$0xf]
      %v237 = vld [vmem:[%s1 + $0x10] sm:$0xf]
      %v238 = vld [vmem:[%s1 + $0x14] sm:$0xf]
      %v239 = vld [vmem:[%s1 + $0x18] sm:$0xf]
      %v240 = vld [vmem:[%s1 + $0x1c] sm:$0xf]
      %v241 = vld [vmem:[%s1 + $0x20] sm:$0xf]
      %v242 = vld [vmem:[%s1 + $0x24] sm:$0xf]
      %v243 = vld [vmem:[%s1 + $0x28] sm:$0xf]
      %v244 = vld [vmem:[%s1 + $0x2c] sm:$0xf]
      %v245 = vld [vmem:[%s1 + $0x30] sm:$0xf]
      %v246 = vld [vmem:[%s1 + $0x34] sm:$0xf]
      %v247 = vld [vmem:[%s1 + $0x38] sm:$0xf]
      %v248 = vld [vmem:[%s1 + $0x3c] sm:$0xf]
      %v249 = vld [vmem:[%s1 + $0x40] sm:$0xf]
      %v250 = vld [vmem:[%s1 + $0x44] sm:$0xf]
      %v251 = vld [vmem:[%s1 + $0x48] sm:$0xf]
      %v252 = vld [vmem:[%s1 + $0x4c] sm:$0xf]
      %v253 = vld [vmem:[%s1 + $0x50] sm:$0xf]
      %v254 = vld [vmem:[%s1 + $0x54] sm:$0xf]
      %v255 = vld [vmem:[%s1 + $0x58] sm:$0xf]
      %v256 = vld [vmem:[%s1 + $0x5c] sm:$0xf]
      %v257 = vld [vmem:[%s1 + $0x60] sm:$0xf]
      %v258 = vld [vmem:[%s1 + $0x64] sm:$0xf]
      %v259 = vld [vmem:[%s1 + $0x68] sm:$0xf]
      %v260 = vld [vmem:[%s1 + $0x6c] sm:$0xf]
      %v261 = vld [vmem:[%s1 + $0x70] sm:$0xf]
      %v262 = vld [vmem:[%s1 + $0x74] sm:$0xf]
      %v263 = vld [vmem:[%s1 + $0x78] sm:$0xf]
      %v264 = vld [vmem:[%s1 + $0x7c] sm:$0xf]
      %v281 = vunpack.c.l.b16 %v217
      %v282 = vunpack.c.h.b16 %v217
      %v283 = vunpack.c.l.b16 %v218
      %v284 = vunpack.c.h.b16 %v218
      %v285 = vunpack.c.l.b16 %v219
      %v286 = vunpack.c.h.b16 %v219
      %v287 = vunpack.c.l.b16 %v220
      %v288 = vunpack.c.h.b16 %v220
      %v289 = vunpack.c.l.b16 %v221
      %v290 = vunpack.c.h.b16 %v221
      %v291 = vunpack.c.l.b16 %v222
      %v292 = vunpack.c.h.b16 %v222
      %v293 = vunpack.c.l.b16 %v223
      %v294 = vunpack.c.h.b16 %v223
      %v295 = vunpack.c.l.b16 %v224
      %v296 = vunpack.c.h.b16 %v224
      %v297 = vunpack.c.l.b16 %v225
      %v298 = vunpack.c.h.b16 %v225
      %v299 = vunpack.c.l.b16 %v226
      %v300 = vunpack.c.h.b16 %v226
      %v301 = vunpack.c.l.b16 %v227
      %v302 = vunpack.c.h.b16 %v227
      %v303 = vunpack.c.l.b16 %v228
      %v304 = vunpack.c.h.b16 %v228
      %v305 = vunpack.c.l.b16 %v229
      %v306 = vunpack.c.h.b16 %v229
      %v307 = vunpack.c.l.b16 %v230
      %v308 = vunpack.c.h.b16 %v230
      %v309 = vunpack.c.l.b16 %v231
      %v310 = vunpack.c.h.b16 %v231
      %v311 = vunpack.c.l.b16 %v232
      %v312 = vunpack.c.h.b16 %v232
      %v313 = vpack.c.b16 %v283, %v281
      %v314 = vpack.c.b16 %v284, %v282
      %v315 = vpack.c.b16 %v287, %v285
      %v316 = vpack.c.b16 %v288, %v286
      %v317 = vpack.c.b16 %v291, %v289
      %v318 = vpack.c.b16 %v292, %v290
      %v319 = vpack.c.b16 %v295, %v293
      %v320 = vpack.c.b16 %v296, %v294
      %v321 = vpack.c.b16 %v299, %v297
      %v322 = vpack.c.b16 %v300, %v298
      %v323 = vpack.c.b16 %v303, %v301
      %v324 = vpack.c.b16 %v304, %v302
      %v325 = vpack.c.b16 %v307, %v305
      %v326 = vpack.c.b16 %v308, %v306
      %v327 = vpack.c.b16 %v311, %v309
      %v328 = vpack.c.b16 %v312, %v310
      %v377 = vunpack.c.l.b16 %v233
      %v378 = vunpack.c.l.b16 %v234
      %v379 = vunpack.c.l.b16 %v235
      %v380 = vunpack.c.l.b16 %v236
      %v381 = vunpack.c.l.b16 %v237
      %v382 = vunpack.c.l.b16 %v238
      %v383 = vunpack.c.l.b16 %v239
      %v384 = vunpack.c.l.b16 %v240
      %v385 = vunpack.c.l.b16 %v241
      %v386 = vunpack.c.l.b16 %v242
      %v387 = vunpack.c.l.b16 %v243
      %v388 = vunpack.c.l.b16 %v244
      %v389 = vunpack.c.l.b16 %v245
      %v390 = vunpack.c.l.b16 %v246
      %v391 = vunpack.c.l.b16 %v247
      %v392 = vunpack.c.l.b16 %v248
      %v393 = vunpack.c.l.b16 %v249
      %v394 = vunpack.c.l.b16 %v250
      %v395 = vunpack.c.l.b16 %v251
      %v396 = vunpack.c.l.b16 %v252
      %v397 = vunpack.c.l.b16 %v253
      %v398 = vunpack.c.l.b16 %v254
      %v399 = vunpack.c.l.b16 %v255
      %v400 = vunpack.c.l.b16 %v256
      %v401 = vunpack.c.l.b16 %v257
      %v402 = vunpack.c.l.b16 %v258
      %v403 = vunpack.c.l.b16 %v259
      %v404 = vunpack.c.l.b16 %v260
      %v405 = vunpack.c.l.b16 %v261
      %v406 = vunpack.c.l.b16 %v262
      %v407 = vunpack.c.l.b16 %v263
      %v408 = vunpack.c.l.b16 %v264
      %v409 = vpack.c.b16 %v378, %v377
      %v410 = vpack.c.b16 %v380, %v379
      %v411 = vpack.c.b16 %v382, %v381
      %v412 = vpack.c.b16 %v384, %v383
      %v413 = vpack.c.b16 %v386, %v385
      %v414 = vpack.c.b16 %v388, %v387
      %v415 = vpack.c.b16 %v390, %v389
      %v416 = vpack.c.b16 %v392, %v391
      %v417 = vpack.c.b16 %v394, %v393
      %v418 = vpack.c.b16 %v396, %v395
      %v419 = vpack.c.b16 %v398, %v397
      %v420 = vpack.c.b16 %v400, %v399
      %v421 = vpack.c.b16 %v402, %v401
      %v422 = vpack.c.b16 %v404, %v403
      %v423 = vpack.c.b16 %v406, %v405
      %v424 = vpack.c.b16 %v408, %v407
      %441 = vmatprep.subr.bf16.mxu0 0
      %442 = vmatpush1.bf16.msra.mxu0 %v409
      %443 = vmatprep.subr.bf16.mxu0 0
      %444 = vmatpush1.bf16.msra.mxu0 %v410
      %445 = vmatprep.subr.bf16.mxu0 0
      %446 = vmatpush1.bf16.msra.mxu0 %v411
      %447 = vmatprep.subr.bf16.mxu0 0
      %448 = vmatpush1.bf16.msra.mxu0 %v412
      %449 = vmatprep.subr.bf16.mxu0 0
      %450 = vmatpush1.bf16.msra.mxu0 %v413
      %451 = vmatprep.subr.bf16.mxu0 0
      %452 = vmatpush1.bf16.msra.mxu0 %v414
      %453 = vmatprep.subr.bf16.mxu0 0
      %454 = vmatpush1.bf16.msra.mxu0 %v415
      %455 = vmatprep.subr.bf16.mxu0 0
      %456 = vmatpush1.bf16.msra.mxu0 %v416
      %457 = vmatprep.subr.bf16.mxu0 0
      %458 = vmatpush1.bf16.msra.mxu0 %v417
      %459 = vmatprep.subr.bf16.mxu0 0
      %460 = vmatpush1.bf16.msra.mxu0 %v418
      %461 = vmatprep.subr.bf16.mxu0 0
      %462 = vmatpush1.bf16.msra.mxu0 %v419
      %463 = vmatprep.subr.bf16.mxu0 0
      %464 = vmatpush1.bf16.msra.mxu0 %v420
      %465 = vmatprep.subr.bf16.mxu0 0
      %466 = vmatpush1.bf16.msra.mxu0 %v421
      %467 = vmatprep.subr.bf16.mxu0 0
      %468 = vmatpush1.bf16.msra.mxu0 %v422
      %469 = vmatprep.subr.bf16.mxu0 0
      %470 = vmatpush1.bf16.msra.mxu0 %v423
      %471 = vmatprep.subr.bf16.mxu0 0
      %472 = vmatpush1.bf16.msra.mxu0 %v424
      %473 = vmatprep.mubr.bf16.mxu0 %v314
      %474 = vmatmul.mubr.bf16.gmra.mrb[0].mxu0 %v313
      %v475 = vpop.f32.mrb[0].mxu0
      %v476 = vadd.f32 0.0, %v475
      %v477 = vpop.f32.mrb[0].mxu0
      %v478 = vpop.f32.mrb[0].mxu0
      %v479 = vadd.f32 0.0, %v478
      %v480 = vpop.f32.mrb[0].mxu0
      %481 = vmatprep.mubr.bf16.mxu0 %v316
      %482 = vmatmul.mubr.bf16.gmra.mrb[0].mxu0 %v315
      %v483 = vpop.f32.mrb[0].mxu0
      %v484 = vadd.f32 0.0, %v483
      %v485 = vpop.f32.mrb[0].mxu0
      %v486 = vpop.f32.mrb[0].mxu0
      %v487 = vadd.f32 0.0, %v486
      %v488 = vpop.f32.mrb[0].mxu0
      %489 = vmatprep.mubr.bf16.mxu0 %v318
      %490 = vmatmul.mubr.bf16.gmra.mrb[0].mxu0 %v317
      %v491 = vpop.f32.mrb[0].mxu0
      %v492 = vadd.f32 0.0, %v491
      %v493 = vpop.f32.mrb[0].mxu0
      %v494 = vpop.f32.mrb[0].mxu0
      %v495 = vadd.f32 0.0, %v494
      %v496 = vpop.f32.mrb[0].mxu0
      %497 = vmatprep.mubr.bf16.mxu0 %v320
      %498 = vmatmul.mubr.bf16.gmra.mrb[0].mxu0 %v319
      %v499 = vpop.f32.mrb[0].mxu0
      %v500 = vadd.f32 0.0, %v499
      %v501 = vpop.f32.mrb[0].mxu0
      %v502 = vpop.f32.mrb[0].mxu0
      %v503 = vadd.f32 0.0, %v502
      %v504 = vpop.f32.mrb[0].mxu0
      %505 = vmatprep.mubr.bf16.mxu0 %v322
      %506 = vmatmul.mubr.bf16.gmra.mrb[0].mxu0 %v321
      %v507 = vpop.f32.mrb[0].mxu0
      %v508 = vadd.f32 0.0, %v507
      %v509 = vpop.f32.mrb[0].mxu0
      %v510 = vpop.f32.mrb[0].mxu0
      %v511 = vadd.f32 0.0, %v510
      %v512 = vpop.f32.mrb[0].mxu0
      %513 = vmatprep.mubr.bf16.mxu0 %v324
      %514 = vmatmul.mubr.bf16.gmra.mrb[0].mxu0 %v323
      %v515 = vpop.f32.mrb[0].mxu0
      %v516 = vadd.f32 0.0, %v515
      %v517 = vpop.f32.mrb[0].mxu0
      %v518 = vpop.f32.mrb[0].mxu0
      %v519 = vadd.f32 0.0, %v518
      %v520 = vpop.f32.mrb[0].mxu0
      %521 = vmatprep.mubr.bf16.mxu0 %v326
      %522 = vmatmul.mubr.bf16.gmra.mrb[0].mxu0 %v325
      %v523 = vpop.f32.mrb[0].mxu0
      %v524 = vadd.f32 0.0, %v523
      %v525 = vpop.f32.mrb[0].mxu0
      %v526 = vpop.f32.mrb[0].mxu0
      %v527 = vadd.f32 0.0, %v526
      %v528 = vpop.f32.mrb[0].mxu0
      %529 = vmatprep.mubr.bf16.mxu0 %v328
      %530 = vmatmul.mubr.bf16.gmra.mrb[0].mxu0 %v327
      %v531 = vpop.f32.mrb[0].mxu0
      %v532 = vadd.f32 0.0, %v531
      %v533 = vpop.f32.mrb[0].mxu0
      %v534 = vpop.f32.mrb[0].mxu0
      %v535 = vadd.f32 0.0, %v534
      %v536 = vpop.f32.mrb[0].mxu0
      %537 = vdwg.mxu0
      %p538 = scmp.eq.s32.totalorder %s19, 0
      %p539 = scmp.eq.s32.totalorder %s20, 0
      %p540 = pnand %p538, %p539
      %p541 = pneg %p540
      // Predicated region
      $region37: #{discriminator_forward.6} parent=35 // pred_check
        _
      $region38: #{discriminator_forward.6} parent=35 // pred_check_branch
        %543 = sbr.rel (%p540) target = $region40
      $region39: #{discriminator_forward.6} parent=35 // pred_region
        %vm544 = vcmask 253952
        %545 = vst.msk [vmem:[#allocation2] sm:$0x1] %vm544, 0.0
        %546 = vst.msk [vmem:[#allocation3] sm:$0x1] %vm544, 0.0
      $region40: #{discriminator_forward.6} parent=35 // pred_fallthru
        _
      // Predicated region
      $region41: #{discriminator_forward.6} parent=35 // pred_check
        %p547 = pneg %p538
      $region42: #{discriminator_forward.6} parent=35 // pred_check_branch
        %549 = sbr.rel (%p547) target = $region44
      $region43: #{discriminator_forward.6} parent=35 // pred_region
        %v550 = vld [vmem:[#allocation2] sm:$0x1]
        %vm551 = vcmask 261120
        %v552 = vsel %vm551, %v476, 0.0
        %v553 = vsel %vm551, %v479, 0.0
        %v554 = vadd.f32 %v552, %v553
        %v555 = vsel %vm551, %v484, 0.0
        %v556 = vadd.f32 %v554, %v555
        %v557 = vsel %vm551, %v487, 0.0
        %v558 = vadd.f32 %v556, %v557
        %v559 = vsel %vm551, %v492, 0.0
        %v560 = vadd.f32 %v558, %v559
        %v561 = vsel %vm551, %v495, 0.0
        %v562 = vadd.f32 %v560, %v561
        %v563 = vsel %vm551, %v500, 0.0
        %v564 = vadd.f32 %v562, %v563
        %v565 = vsel %vm551, %v503, 0.0
        %v566 = vadd.f32 %v564, %v565
        %v567 = vsel %vm551, %v508, 0.0
        %v568 = vadd.f32 %v566, %v567
        %v569 = vsel %vm551, %v511, 0.0
        %v570 = vadd.f32 %v568, %v569
        %v571 = vsel %vm551, %v516, 0.0
        %v572 = vadd.f32 %v570, %v571
        %v573 = vsel %vm551, %v519, 0.0
        %v574 = vadd.f32 %v572, %v573
        %v575 = vsel %vm551, %v524, 0.0
        %v576 = vadd.f32 %v574, %v575
        %v577 = vsel %vm551, %v527, 0.0
        %v578 = vadd.f32 %v576, %v577
        %v579 = vsel %vm551, %v532, 0.0
        %v580 = vadd.f32 %v578, %v579
        %v581 = vsel %vm551, %v535, 0.0
        %v582 = vadd.f32 %v580, %v581
        %v583 = vrot.slane %v582, 4
        %v584 = vadd.f32 %v582, %v583
        %v585 = vrot.slane %v584, 2
        %v586 = vadd.f32 %v584, %v585
        %v587 = vrot.slane %v586, 1
        %v588 = vadd.f32 %v586, %v587
        %v589 = vadd.f32 %v550, %v588
        %vm590 = vcmask 253952
        %591 = vst.msk [vmem:[#allocation2] sm:$0x1] %vm590, %v589
        %v592 = vld [vmem:[#allocation3] sm:$0x1]
        %v593 = vmul.f32 %v476, %v476
        %v594 = vmul.f32 %v479, %v479
        %v595 = vmul.f32 %v484, %v484
        %v596 = vmul.f32 %v487, %v487
        %v597 = vmul.f32 %v492, %v492
        %v598 = vmul.f32 %v495, %v495
        %v599 = vmul.f32 %v500, %v500
        %v600 = vmul.f32 %v503, %v503
        %v601 = vmul.f32 %v508, %v508
        %v602 = vmul.f32 %v511, %v511
        %v603 = vmul.f32 %v516, %v516
        %v604 = vmul.f32 %v519, %v519
        %v605 = vmul.f32 %v524, %v524
        %v606 = vmul.f32 %v527, %v527
        %v607 = vmul.f32 %v532, %v532
        %v608 = vmul.f32 %v535, %v535
        %v609 = vsel %vm551, %v593, 0.0
        %v610 = vsel %vm551, %v594, 0.0
        %v611 = vadd.f32 %v609, %v610
        %v612 = vsel %vm551, %v595, 0.0
        %v613 = vadd.f32 %v611, %v612
        %v614 = vsel %vm551, %v596, 0.0
        %v615 = vadd.f32 %v613, %v614
        %v616 = vsel %vm551, %v597, 0.0
        %v617 = vadd.f32 %v615, %v616
        %v618 = vsel %vm551, %v598, 0.0
        %v619 = vadd.f32 %v617, %v618
        %v620 = vsel %vm551, %v599, 0.0
        %v621 = vadd.f32 %v619, %v620
        %v622 = vsel %vm551, %v600, 0.0
        %v623 = vadd.f32 %v621, %v622
        %v624 = vsel %vm551, %v601, 0.0
        %v625 = vadd.f32 %v623, %v624
        %v626 = vsel %vm551, %v602, 0.0
        %v627 = vadd.f32 %v625, %v626
        %v628 = vsel %vm551, %v603, 0.0
        %v629 = vadd.f32 %v627, %v628
        %v630 = vsel %vm551, %v604, 0.0
        %v631 = vadd.f32 %v629, %v630
        %v632 = vsel %vm551, %v605, 0.0
        %v633 = vadd.f32 %v631, %v632
        %v634 = vsel %vm551, %v606, 0.0
        %v635 = vadd.f32 %v633, %v634
        %v636 = vsel %vm551, %v607, 0.0
        %v637 = vadd.f32 %v635, %v636
        %v638 = vsel %vm551, %v608, 0.0
        %v639 = vadd.f32 %v637, %v638
        %v640 = vrot.slane %v639, 4
        %v641 = vadd.f32 %v639, %v640
        %v642 = vrot.slane %v641, 2
        %v643 = vadd.f32 %v641, %v642
        %v644 = vrot.slane %v643, 1
        %v645 = vadd.f32 %v643, %v644
        %v646 = vadd.f32 %v592, %v645
        %647 = vst.msk [vmem:[#allocation3] sm:$0x1] %vm590, %v646
      $region44: #{discriminator_forward.6} parent=35 // pred_fallthru
        _
      %p648 = scmp.eq.s32.totalorder %s19, 1
      // Predicated region
      $region45: #{discriminator_forward.6} parent=35 // pred_check
        %p649 = pneg %p648
      $region46: #{discriminator_forward.6} parent=35 // pred_check_branch
        %651 = sbr.rel (%p649) target = $region48
      $region47: #{discriminator_forward.6} parent=35 // pred_region
        %v652 = vld [vmem:[#allocation2] sm:$0x1]
        %v653 = vmul.f32 %v652, 0.0078125
        %v654 = vld [vmem:[#allocation3] sm:$0x1]
        %v655 = vmul.f32 %v654, 0.0078125
        %v656 = vmul.f32 %v653, %v653
        %v657 = vsub.f32 %v655, %v656
        %v658 = vmax.f32 %v657, 0.0
        %v659 = vld [vmem:[%s2] sm:$0x1]
        %v660 = vadd.f32 %v658, 1e-05
        %v661 = vrsqrt.pop %v660
        %v662 = vmul.f32 %v659, %v661
        %v663 = vld [vmem:[%s3] sm:$0x1]
        %v664 = vmul.f32 %v653, %v662
        %v665 = vsub.f32 %v663, %v664
        %v667 = vlaneseq
        %v668 = vshrl.u32 %v667, 7
        %v669 = vsub.s32 0, %v668
        %v670 = vrot.slane %v662, %v669
        %v672 = vmul.f32 %v476, %v670
        %v673 = vmul.f32 %v479, %v670
        %v674 = vmul.f32 %v484, %v670
        %v675 = vmul.f32 %v487, %v670
        %v676 = vmul.f32 %v492, %v670
        %v677 = vmul.f32 %v495, %v670
        %v678 = vmul.f32 %v500, %v670
        %v679 = vmul.f32 %v503, %v670
        %v680 = vmul.f32 %v508, %v670
        %v681 = vmul.f32 %v511, %v670
        %v682 = vmul.f32 %v516, %v670
        %v683 = vmul.f32 %v519, %v670
        %v684 = vmul.f32 %v524, %v670
        %v685 = vmul.f32 %v527, %v670
        %v686 = vmul.f32 %v532, %v670
        %v687 = vmul.f32 %v535, %v670
        %v689 = vlaneseq
        %v690 = vshrl.u32 %v689, 7
        %v691 = vsub.s32 0, %v690
        %v692 = vrot.slane %v665, %v691
        %v694 = vadd.f32 %v672, %v692
        %v695 = vadd.f32 %v673, %v692
        %v696 = vadd.f32 %v674, %v692
        %v697 = vadd.f32 %v675, %v692
        %v698 = vadd.f32 %v676, %v692
        %v699 = vadd.f32 %v677, %v692
        %v700 = vadd.f32 %v678, %v692
        %v701 = vadd.f32 %v679, %v692
        %v702 = vadd.f32 %v680, %v692
        %v703 = vadd.f32 %v681, %v692
        %v704 = vadd.f32 %v682, %v692
        %v705 = vadd.f32 %v683, %v692
        %v706 = vadd.f32 %v684, %v692
        %v707 = vadd.f32 %v685, %v692
        %v708 = vadd.f32 %v686, %v692
        %v709 = vadd.f32 %v687, %v692
        %vm710 = vcmp.gt.f32.partialorder %v694, 0.0
        %vm711 = vcmp.gt.f32.partialorder %v695, 0.0
        %vm712 = vcmp.gt.f32.partialorder %v696, 0.0
        %vm713 = vcmp.gt.f32.partialorder %v697, 0.0
        %vm714 = vcmp.gt.f32.partialorder %v698, 0.0
        %vm715 = vcmp.gt.f32.partialorder %v699, 0.0
        %vm716 = vcmp.gt.f32.partialorder %v700, 0.0
        %vm717 = vcmp.gt.f32.partialorder %v701, 0.0
        %vm718 = vcmp.gt.f32.partialorder %v702, 0.0
        %vm719 = vcmp.gt.f32.partialorder %v703, 0.0
        %vm720 = vcmp.gt.f32.partialorder %v704, 0.0
        %vm721 = vcmp.gt.f32.partialorder %v705, 0.0
        %vm722 = vcmp.gt.f32.partialorder %v706, 0.0
        %vm723 = vcmp.gt.f32.partialorder %v707, 0.0
        %vm724 = vcmp.gt.f32.partialorder %v708, 0.0
        %vm725 = vcmp.gt.f32.partialorder %v709, 0.0
        %v726 = vmul.f32 %v694, 0.2
        %v727 = vmul.f32 %v695, 0.2
        %v728 = vmul.f32 %v696, 0.2
        %v729 = vmul.f32 %v697, 0.2
        %v730 = vmul.f32 %v698, 0.2
        %v731 = vmul.f32 %v699, 0.2
        %v732 = vmul.f32 %v700, 0.2
        %v733 = vmul.f32 %v701, 0.2
        %v734 = vmul.f32 %v702, 0.2
        %v735 = vmul.f32 %v703, 0.2
        %v736 = vmul.f32 %v704, 0.2
        %v737 = vmul.f32 %v705, 0.2
        %v738 = vmul.f32 %v706, 0.2
        %v739 = vmul.f32 %v707, 0.2
        %v740 = vmul.f32 %v708, 0.2
        %v741 = vmul.f32 %v709, 0.2
        %v742 = vsel %vm710, %v694, %v726
        %v743 = vsel %vm711, %v695, %v727
        %v744 = vsel %vm712, %v696, %v728
        %v745 = vsel %vm713, %v697, %v729
        %v746 = vsel %vm714, %v698, %v730
        %v747 = vsel %vm715, %v699, %v731
        %v748 = vsel %vm716, %v700, %v732
        %v749 = vsel %vm717, %v701, %v733
        %v750 = vsel %vm718, %v702, %v734
        %v751 = vsel %vm719, %v703, %v735
        %v752 = vsel %vm720, %v704, %v736
        %v753 = vsel %vm721, %v705, %v737
        %v754 = vsel %vm722, %v706, %v738
        %v755 = vsel %vm723, %v707, %v739
        %v756 = vsel %vm724, %v708, %v740
        %v757 = vsel %vm725, %v709, %v741
        %v758 = vpack.c.bf16 %v743, %v742
        %v759 = vpack.c.bf16 %v745, %v744
        %v760 = vpack.c.bf16 %v747, %v746
        %v761 = vpack.c.bf16 %v749, %v748
        %v762 = vpack.c.bf16 %v751, %v750
        %v763 = vpack.c.bf16 %v753, %v752
        %v764 = vpack.c.bf16 %v755, %v754
        %v765 = vpack.c.bf16 %v757, %v756
        %v774 = vunpack.c.l.b16 %v758
        %v775 = vunpack.c.h.b16 %v758
        %v776 = vunpack.c.l.b16 %v759
        %v777 = vunpack.c.h.b16 %v759
        %v778 = vunpack.c.l.b16 %v760
        %v779 = vunpack.c.h.b16 %v760
        %v780 = vunpack.c.l.b16 %v761
        %v781 = vunpack.c.h.b16 %v761
        %v782 = vunpack.c.l.b16 %v762
        %v783 = vunpack.c.h.b16 %v762
        %v784 = vunpack.c.l.b16 %v763
        %v785 = vunpack.c.h.b16 %v763
        %v786 = vunpack.c.l.b16 %v764
        %v787 = vunpack.c.h.b16 %v764
        %v788 = vunpack.c.l.b16 %v765
        %v789 = vunpack.c.h.b16 %v765
        %v790 = vpack.c.b16 %v774, %v774
        %v791 = vpack.c.b16 %v775, %v775
        %v792 = vpack.c.b16 %v776, %v776
        %v793 = vpack.c.b16 %v777, %v777
        %v794 = vpack.c.b16 %v778, %v778
        %v795 = vpack.c.b16 %v779, %v779
        %v796 = vpack.c.b16 %v780, %v780
        %v797 = vpack.c.b16 %v781, %v781
        %v798 = vpack.c.b16 %v782, %v782
        %v799 = vpack.c.b16 %v783, %v783
        %v800 = vpack.c.b16 %v784, %v784
        %v801 = vpack.c.b16 %v785, %v785
        %v802 = vpack.c.b16 %v786, %v786
        %v803 = vpack.c.b16 %v787, %v787
        %v804 = vpack.c.b16 %v788, %v788
        %v805 = vpack.c.b16 %v789, %v789
        %vm822 = vcmask 257024
        %823 = vst.msk [vmem:[%s214] sm:$0xf] %vm822, %v790
        %824 = vst.msk [vmem:[%s214 + $0x4] sm:$0xf] %vm822, %v791
        %825 = vst.msk [vmem:[%s214 + $0x8] sm:$0xf] %vm822, %v792
        %826 = vst.msk [vmem:[%s214 + $0xc] sm:$0xf] %vm822, %v793
        %827 = vst.msk [vmem:[%s214 + $0x10] sm:$0xf] %vm822, %v794
        %828 = vst.msk [vmem:[%s214 + $0x14] sm:$0xf] %vm822, %v795
        %829 = vst.msk [vmem:[%s214 + $0x18] sm:$0xf] %vm822, %v796
        %830 = vst.msk [vmem:[%s214 + $0x1c] sm:$0xf] %vm822, %v797
        %831 = vst.msk [vmem:[%s214 + $0x20] sm:$0xf] %vm822, %v798
        %832 = vst.msk [vmem:[%s214 + $0x24] sm:$0xf] %vm822, %v799
        %833 = vst.msk [vmem:[%s214 + $0x28] sm:$0xf] %vm822, %v800
        %834 = vst.msk [vmem:[%s214 + $0x2c] sm:$0xf] %vm822, %v801
        %835 = vst.msk [vmem:[%s214 + $0x30] sm:$0xf] %vm822, %v802
        %836 = vst.msk [vmem:[%s214 + $0x34] sm:$0xf] %vm822, %v803
        %837 = vst.msk [vmem:[%s214 + $0x38] sm:$0xf] %vm822, %v804
        %838 = vst.msk [vmem:[%s214 + $0x3c] sm:$0xf] %vm822, %v805
      $region48: #{discriminator_forward.6} parent=35 // pred_fallthru
        _
      %s839 = smul.u32 16, %s20
      %p840 = scmp.lt.s32.totalorder %s839, 15
      %s841 = scalar_select %p840, %s839, 15
      %s842 = smul.addr %s841, 4
      %s843 = scalar_lea.vmem %s4, %s842
      // Predicated region
      $region49: #{discriminator_forward.6} parent=35 // pred_check
        %p844 = pneg %p134
      $region50: #{discriminator_forward.6} parent=35 // pred_check_branch
        %846 = sbr.rel (%p844) target = $region52
      $region51: #{discriminator_forward.6} parent=35 // pred_region
        %s847 = smul.u32 16, %s20
      $region52: #{discriminator_forward.6} parent=35 // pred_fallthru
        _
      // Predicated region
      $region53: #{discriminator_forward.6} parent=35 // pred_check
        %p848 = pneg %p134
      $region54: #{discriminator_forward.6} parent=35 // pred_check_branch
        %850 = sbr.rel (%p848) target = $region56
      $region55: #{discriminator_forward.6} parent=35 // pred_region
        %s851 = smul.u32 16, %s20
        %p852 = scmp.lt.s32.totalorder %s851, 15
        %s853 = scalar_select %p852, %s851, 15
        %s854 = smul.addr %s853, 4
        %s855 = scalar_lea.vmem %s4, %s854
      $region56: #{discriminator_forward.6} parent=35 // pred_fallthru
        _
    $region36: #{discriminator_forward.6} parent=5 // pred_fallthru
      _
    %p856 = scmp.le.s32.totalorder 2, %s10
    // Predicated region
    $region57: #{discriminator_forward.6} parent=5 // pred_check
      %p857 = pneg %p856
    $region58: #{discriminator_forward.6} parent=5 // pred_check_branch
      %859 = sbr.rel (%p857) target = $region60
    $region59: #{discriminator_forward.6} parent=5 // pred_region
      %s860 = ssub.s32 %s10, 2
    $region60: #{discriminator_forward.6} parent=5 // pred_fallthru
      _
  $region6: #{discriminator_forward.6} parent=0 // loop_footer
    %s14 = sadd.s32 1, %s10
  $region7: #{discriminator_forward.6} parent=0 // loop_footer_branch
    %9 = sbr.rel target = $region3
  $region8: #{discriminator_forward.6} parent=0 // loop_exit
    _

// kernel: discriminator_forward.7
$region0: #{discriminator_forward.7}
  #allocation0 [shape = 'u32[]', space=smem, size = 0x4, offset = 0x4, fixed_abs, tag = 'smem constant byte address 0x4 - core index']
  #allocation1 [shape = 'u32[144,128]{1,0:T(1,128)}', space=vmem, size = 0x12000, scoped, tag = 'internal scratch']
  #allocation2 [shape = 'f32[1,64]{1,0:T(1,128)}', space=vmem, size = 0x200, scoped, tag = 'scratch operand']
  #allocation3 [shape = 'f32[1,64]{1,0:T(1,128)}', space=vmem, size = 0x200, scoped, tag = 'scratch operand']
  #allocation4 [shape = 'f32[1,1]{1,0:T(1,128)S(1)}', space=vmem, size = 0x200, scoped, tag = 'scoped memory for discriminator_forward.7']
  %s0 = inlined_call_operand.vmem [shape: bf16[32,512], index: 0, kind: input, shape index: {}]
  %s1 = inlined_call_operand.vmem [shape: bf16[512,64], index: 1, kind: input, shape index: {}]
  %s2 = inlined_call_operand.vmem [shape: f32[1,64], index: 2, kind: input, shape index: {}]
  %s3 = inlined_call_operand.vmem [shape: f32[1,64], index: 3, kind: input, shape index: {}]
  %s4 = inlined_call_operand.vmem [shape: f32[32,64], index: 4, kind: input, shape index: {}]
  %s5 = inlined_call_operand.vmem [shape: f32[2,32], index: 5, kind: input, shape index: {}]
  %s6 = inlined_call_operand.<no memory space> [shape: f32[1,1], index: 6, kind: input, shape index: {}]
  %s7 = inlined_call_operand.vmem [shape: f32[2,1], index: 7, kind: output, shape index: {}]
  %s8 = sld [smem:[#allocation0]]
  $region81: #{discriminator_forward.7} parent=0
    _
  %s10 = ssub.s32 1, %s8
  %s11 = scalar_select 0, %s10, %s8
  %v12 = vstv %s6
  %13 = vst [vmem:[#allocation4] sm:$0x1] %v12
  loop: start=0, step=1, limit=4
  $region2: #{discriminator_forward.7} parent=0 // loop_pre_header
    _
  $region3: #{discriminator_forward.7} parent=0 // loop_header
    %s15 = sphi 0, %s19
    %p16 = scmp.ge.s32.totalorder %s15, 4
    %s22 = sphi 0, %s34
    %s23 = sphi 0, %s30
    %s24 = sphi 0, %s22
    %s25 = sphi 0, %s23
    %s26 = sphi 0, %s24
    %s27 = sphi 0, %s25
    %s37 = sphi 0, %s39
    %s40 = sphi 0, %s37
    %s41 = sphi 0, %s40
    %s57 = sphi 0, %s41
    %s61 = sphi 0, %s61
    %s63 = sphi 0, %s61
    %s64 = sphi 0, %s63
    %s78 = sphi 0, %s64
    %s82 = sphi 0, %s82
    %s84 = sphi 0, %s82
    %s85 = sphi 0, %s84
    %s99 = sphi 0, %s85
    %s103 = sphi 0, %s103
    %s105 = sphi 0, %s103
    %s106 = sphi 0, %s105
    %s120 = sphi 0, %s106
    %s126 = sphi 0, %s128
    %s129 = sphi 0, %s126
    %s130 = sphi 0, %s129
    %s146 = sphi 0, %s130
    %s152 = sphi 0, %s154
    %s155 = sphi 0, %s152
    %s156 = sphi 0, %s155
    %s172 = sphi 0, %s156
    %s176 = sphi 0, %s176
    %s178 = sphi 0, %s176
    %s179 = sphi 0, %s178
    %s193 = sphi 0, %s179
    %s197 = sphi 0, %s197
    %s199 = sphi 0, %s197
    %s200 = sphi 0, %s199
    %s214 = sphi 0, %s200
  $region4: #{discriminator_forward.7} parent=0 // loop_header_branch
    %18 = sbr.rel (%p16) target = $region8
  $region5: #{discriminator_forward.7} parent=0 // loop_body
    %s20 = ssub.s32 %s15, 1
    %s21 = ssub.s32 %s15, 2
    %s28 = sadd.s32 1, %s23
    %p29 = scmp.ge.s32.totalorder %s28, 1
    %s30 = scalar_select %p29, 0, %s28
    %s31 = sadd.s32 1, %s22
    %s32 = scalar_select %p29, %s31, %s22
    %p33 = scmp.ge.s32.totalorder %s32, 2
    %s34 = scalar_select %p33, 0, %s32
    %s35 = ssub.s32 %s23, %s30
    %p36 = scmp.eq.s32.totalorder %s35, 0
    %s38 = sadd.s32 %s37, 1
    %s39 = scalar_select %p36, %s37, %s38
    %p42 = pneg %p36
    %p43 = scmp.eq.s32.totalorder %s15, 1
    %p44 = por %p42, %p43
    %p45 = scmp.ne.s32.totalorder %s37, %s40
    %p46 = scmp.eq.s32.totalorder %s15, 0
    %p47 = por %p45, %p46
    %p48 = scmp.ne.s32.totalorder %s37, %s40
    %p49 = scmp.eq.s32.totalorder %s20, 1
    %p50 = por %p48, %p49
    %p51 = scmp.ne.s32.totalorder %s40, %s41
    %p52 = scmp.eq.s32.totalorder %s20, 0
    %p53 = por %p51, %p52
    %p54 = scmp.ne.s32.totalorder %s40, %s41
    %p55 = scmp.eq.s32.totalorder %s21, 1
    %p56 = por %p54, %p55
    %p58 = scmp.ne.s32.totalorder %s41, %s57
    %p59 = scmp.eq.s32.totalorder %s21, 0
    %p60 = por %p58, %p59
    %s62 = sadd.s32 %s61, 1
    %p65 = scmp.eq.s32.totalorder %s15, 1
    %p66 = scmp.ne.s32.totalorder %s61, %s63
    %p67 = scmp.eq.s32.totalorder %s15, 0
    %p68 = por %p66, %p67
    %p69 = scmp.ne.s32.totalorder %s61, %s63
    %p70 = scmp.eq.s32.totalorder %s20, 1
    %p71 = por %p69, %p70
    %p72 = scmp.ne.s32.totalorder %s63, %s64
    %p73 = scmp.eq.s32.totalorder %s20, 0
    %p74 = por %p72, %p73
    %p75 = scmp.ne.s32.totalorder %s63, %s64
    %p76 = scmp.eq.s32.totalorder %s21, 1
    %p77 = por %p75, %p76
    %p79 = scmp.ne.s32.totalorder %s64, %s78
    %p80 = scmp.eq.s32.totalorder %s21, 0
    %p81 = por %p79, %p80
    %s83 = sadd.s32 %s82, 1
    %p86 = scmp.eq.s32.totalorder %s15, 1
    %p87 = scmp.ne.s32.totalorder %s82, %s84
    %p88 = scmp.eq.s32.totalorder %s15, 0
    %p89 = por %p87, %p88
    %p90 = scmp.ne.s32.totalorder %s82, %s84
    %p91 = scmp.eq.s32.totalorder %s20, 1
    %p92 = por %p90, %p91
    %p93 = scmp.ne.s32.totalorder %s84, %s85
    %p94 = scmp.eq.s32.totalorder %s20, 0
    %p95 = por %p93, %p94
    %p96 = scmp.ne.s32.totalorder %s84, %s85
    %p97 = scmp.eq.s32.totalorder %s21, 1
    %p98 = por %p96, %p97
    %p100 = scmp.ne.s32.totalorder %s85, %s99
    %p101 = scmp.eq.s32.totalorder %s21, 0
    %p102 = por %p100, %p101
    %s104 = sadd.s32 %s103, 1
    %p107 = scmp.eq.s32.totalorder %s15, 1
    %p108 = scmp.ne.s32.totalorder %s103, %s105
    %p109 = scmp.eq.s32.totalorder %s15, 0
    %p110 = por %p108, %p109
    %p111 = scmp.ne.s32.totalorder %s103, %s105
    %p112 = scmp.eq.s32.totalorder %s20, 1
    %p113 = por %p111, %p112
    %p114 = scmp.ne.s32.totalorder %s105, %s106
    %p115 = scmp.eq.s32.totalorder %s20, 0
    %p116 = por %p114, %p115
    %p117 = scmp.ne.s32.totalorder %s105, %s106
    %p118 = scmp.eq.s32.totalorder %s21, 1
    %p119 = por %p117, %p118
    %p121 = scmp.ne.s32.totalorder %s106, %s120
    %p122 = scmp.eq.s32.totalorder %s21, 0
    %p123 = por %p121, %p122
    %s124 = ssub.s32 %s23, %s30
    %p125 = scmp.eq.s32.totalorder %s124, 0
    %s127 = sadd.s32 %s126, 1
    %s128 = scalar_select %p125, %s126, %s127
    %p131 = pneg %p125
    %p132 = scmp.eq.s32.totalorder %s15, 1
    %p133 = por %p131, %p132
    %p134 = scmp.ne.s32.totalorder %s126, %s129
    %p135 = scmp.eq.s32.totalorder %s15, 0
    %p136 = por %p134, %p135
    %p137 = scmp.ne.s32.totalorder %s126, %s129
    %p138 = scmp.eq.s32.totalorder %s20, 1
    %p139 = por %p137, %p138
    %p140 = scmp.ne.s32.totalorder %s129, %s130
    %p141 = scmp.eq.s32.totalorder %s20, 0
    %p142 = por %p140, %p141
    %p143 = scmp.ne.s32.totalorder %s129, %s130
    %p144 = scmp.eq.s32.totalorder %s21, 1
    %p145 = por %p143, %p144
    %p147 = scmp.ne.s32.totalorder %s130, %s146
    %p148 = scmp.eq.s32.totalorder %s21, 0
    %p149 = por %p147, %p148
    %s150 = ssub.s32 %s23, %s30
    %p151 = scmp.eq.s32.totalorder %s150, 0
    %s153 = sadd.s32 %s152, 1
    %s154 = scalar_select %p151, %s152, %s153
    %p157 = pneg %p151
    %p158 = scmp.eq.s32.totalorder %s15, 1
    %p159 = por %p157, %p158
    %p160 = scmp.ne.s32.totalorder %s152, %s155
    %p161 = scmp.eq.s32.totalorder %s15, 0
    %p162 = por %p160, %p161
    %p163 = scmp.ne.s32.totalorder %s152, %s155
    %p164 = scmp.eq.s32.totalorder %s20, 1
    %p165 = por %p163, %p164
    %p166 = scmp.ne.s32.totalorder %s155, %s156
    %p167 = scmp.eq.s32.totalorder %s20, 0
    %p168 = por %p166, %p167
    %p169 = scmp.ne.s32.totalorder %s155, %s156
    %p170 = scmp.eq.s32.totalorder %s21, 1
    %p171 = por %p169, %p170
    %p173 = scmp.ne.s32.totalorder %s156, %s172
    %p174 = scmp.eq.s32.totalorder %s21, 0
    %p175 = por %p173, %p174
    %s177 = sadd.s32 %s176, 1
    %p180 = scmp.eq.s32.totalorder %s15, 1
    %p181 = scmp.ne.s32.totalorder %s176, %s178
    %p182 = scmp.eq.s32.totalorder %s15, 0
    %p183 = por %p181, %p182
    %p184 = scmp.ne.s32.totalorder %s176, %s178
    %p185 = scmp.eq.s32.totalorder %s20, 1
    %p186 = por %p184, %p185
    %p187 = scmp.ne.s32.totalorder %s178, %s179
    %p188 = scmp.eq.s32.totalorder %s20, 0
    %p189 = por %p187, %p188
    %p190 = scmp.ne.s32.totalorder %s178, %s179
    %p191 = scmp.eq.s32.totalorder %s21, 1
    %p192 = por %p190, %p191
    %p194 = scmp.ne.s32.totalorder %s179, %s193
    %p195 = scmp.eq.s32.totalorder %s21, 0
    %p196 = por %p194, %p195
    %s198 = sadd.s32 %s197, 1
    %p201 = scmp.eq.s32.totalorder %s15, 1
    %p202 = scmp.ne.s32.totalorder %s197, %s199
    %p203 = scmp.eq.s32.totalorder %s15, 0
    %p204 = por %p202, %p203
    %p205 = scmp.ne.s32.totalorder %s197, %s199
    %p206 = scmp.eq.s32.totalorder %s20, 1
    %p207 = por %p205, %p206
    %p208 = scmp.ne.s32.totalorder %s199, %s200
    %p209 = scmp.eq.s32.totalorder %s20, 0
    %p210 = por %p208, %p209
    %p211 = scmp.ne.s32.totalorder %s199, %s200
    %p212 = scmp.eq.s32.totalorder %s21, 1
    %p213 = por %p211, %p212
    %p215 = scmp.ne.s32.totalorder %s200, %s214
    %p216 = scmp.eq.s32.totalorder %s21, 0
    %p217 = por %p215, %p216
    %p218 = scmp.le.s32.totalorder 1, %s15
    %p219 = scmp.lt.s32.totalorder %s15, 3
    %p220 = pnand %p218, %p219
    %p221 = pneg %p220
    // Predicated region
    $region9: #{discriminator_forward.7} parent=5 // pred_check
      _
    $region10: #{discriminator_forward.7} parent=5 // pred_check_branch
      %223 = sbr.rel (%p220) target = $region12
    $region11: #{discriminator_forward.7} parent=5 // pred_region
      %s224 = ssub.s32 %s15, 1
      // Predicated region
      $region13: #{discriminator_forward.7} parent=11 // pred_check
        %p225 = pneg %p53
      $region14: #{discriminator_forward.7} parent=11 // pred_check_branch
        %227 = sbr.rel (%p225) target = $region16
      $region15: #{discriminator_forward.7} parent=11 // pred_region
        %s228 = smul.u32 4, %s25
        %p229 = scmp.lt.s32.totalorder %s228, 3
        %s230 = scalar_select %p229, %s228, 3
        %s231 = smul.addr %s230, 4
        %s232 = smul.addr %s231, 4
        %s233 = scalar_lea.vmem %s0, %s232
        %s234 = smul.u32 4, %s25
      $region16: #{discriminator_forward.7} parent=11 // pred_fallthru
        _
      // Predicated region
      $region17: #{discriminator_forward.7} parent=11 // pred_check
        %p235 = pneg %p74
      $region18: #{discriminator_forward.7} parent=11 // pred_check_branch
        %237 = sbr.rel (%p235) target = $region20
      $region19: #{discriminator_forward.7} parent=11 // pred_region
        _
      $region20: #{discriminator_forward.7} parent=11 // pred_fallthru
        _
      // Predicated region
      $region21: #{discriminator_forward.7} parent=11 // pred_check
        %p238 = pneg %p95
      $region22: #{discriminator_forward.7} parent=11 // pred_check_branch
        %240 = sbr.rel (%p238) target = $region24
      $region23: #{discriminator_forward.7} parent=11 // pred_region
        _
      $region24: #{discriminator_forward.7} parent=11 // pred_fallthru
        _
      // Predicated region
      $region25: #{discriminator_forward.7} parent=11 // pred_check
        %p241 = pneg %p116
      $region26: #{discriminator_forward.7} parent=11 // pred_check_branch
        %243 = sbr.rel (%p241) target = $region28
      $region27: #{discriminator_forward.7} parent=11 // pred_region
        _
      $region28: #{discriminator_forward.7} parent=11 // pred_fallthru
        _
      // Predicated region
      $region29: #{discriminator_forward.7} parent=11 // pred_check
        %p244 = pneg %p142
      $region30: #{discriminator_forward.7} parent=11 // pred_check_branch
        %246 = sbr.rel (%p244) target = $region32
      $region31: #{discriminator_forward.7} parent=11 // pred_region
        %s247 = smul.u32 4, %s25
        %p248 = scmp.lt.s32.totalorder %s247, 3
        %s249 = scalar_select %p248, %s247, 3
        %s250 = smul.addr %s249, 8
        %s251 = scalar_lea.vmem %s4, %s250
        %s252 = smul.u32 4, %s25
      $region32: #{discriminator_forward.7} parent=11 // pred_fallthru
        _
      // Predicated region
      $region33: #{discriminator_forward.7} parent=11 // pred_check
        %p253 = pneg %p168
      $region34: #{discriminator_forward.7} parent=11 // pred_check_branch
        %255 = sbr.rel (%p253) target = $region36
      $region35: #{discriminator_forward.7} parent=11 // pred_region
        %p256 = scmp.lt.s32.totalorder %s25, 0
        %s257 = scalar_select %p256, %s25, 0
        %s258 = smul.addr %s257, 2
        %s259 = scalar_lea.vmem %s5, %s258
      $region36: #{discriminator_forward.7} parent=11 // pred_fallthru
        _
      // Predicated region
      $region37: #{discriminator_forward.7} parent=11 // pred_check
        %p260 = pneg %p189
      $region38: #{discriminator_forward.7} parent=11 // pred_check_branch
        %262 = sbr.rel (%p260) target = $region40
      $region39: #{discriminator_forward.7} parent=11 // pred_region
        _
      $region40: #{discriminator_forward.7} parent=11 // pred_fallthru
        _
    $region12: #{discriminator_forward.7} parent=5 // pred_fallthru
      _
    %p263 = scmp.lt.s32.totalorder %s15, 2
    // Predicated region
    $region41: #{discriminator_forward.7} parent=5 // pred_check
      %p264 = pneg %p263
    $region42: #{discriminator_forward.7} parent=5 // pred_check_branch
      %266 = sbr.rel (%p264) target = $region44
    $region43: #{discriminator_forward.7} parent=5 // pred_region
      _
    $region44: #{discriminator_forward.7} parent=5 // pred_fallthru
      _
    %p267 = scmp.le.s32.totalorder 1, %s15
    %p268 = scmp.lt.s32.totalorder %s15, 3
    %p269 = pnand %p267, %p268
    %p270 = pneg %p269
    // Predicated region
    $region45: #{discriminator_forward.7} parent=5 // pred_check
      _
    $region46: #{discriminator_forward.7} parent=5 // pred_check_branch
      %272 = sbr.rel (%p269) target = $region48
    $region47: #{discriminator_forward.7} parent=5 // pred_region
      %s273 = ssub.s32 %s15, 1
      %s274 = smul.u32 4, %s25
      %p275 = scmp.lt.s32.totalorder %s274, 3
      %s276 = scalar_select %p275, %s274, 3
      %s277 = smul.addr %s276, 4
      %s278 = smul.addr %s277, 4
      %s279 = scalar_lea.vmem %s0, %s278
      %p280 = pneg %p53
      %p281 = pneg %p50
      %p282 = pneg %p74
      %p283 = pneg %p71
      %p284 = pneg %p95
      %p285 = pneg %p92
      %p286 = pneg %p116
      %p287 = pneg %p113
      %s288 = smul.u32 4, %s25
      %p289 = scmp.lt.s32.totalorder %s288, 3
      %s290 = scalar_select %p289, %s288, 3
      %s291 = smul.addr %s290, 8
      %s292 = scalar_lea.vmem %s4, %s291
      %p293 = pneg %p142
      %p294 = pneg %p139
      %p295 = scmp.lt.s32.totalorder %s25, 0
      %s296 = scalar_select %p295, %s25, 0
      %s297 = smul.addr %s296, 2
      %s298 = scalar_lea.vmem %s5, %s297
      %p299 = pneg %p168
      %p300 = pneg %p165
      %p301 = pneg %p189
      %p302 = pneg %p186
      %p303 = pneg %p210
      %p304 = pneg %p207
      %s305 = smul.u32 4, %s25
      %p306 = scmp.lt.s32.totalorder %s305, 3
      %s307 = scalar_select %p306, %s305, 3
      %s308 = smul.addr %s307, 4
      %s309 = smul.addr %s308, 4
      %s310 = scalar_lea.vmem %s0, %s309
      %s311 = smul.u32 4, %s25
      %s312 = smul.u32 4, %s25
      %p313 = scmp.lt.s32.totalorder %s312, 3
      %s314 = scalar_select %p313, %s312, 3
      %s315 = smul.addr %s314, 8
      %s316 = scalar_lea.vmem %s4, %s315
      %s317 = smul.u32 4, %s25
      %p318 = scmp.lt.s32.totalorder %s25, 0
      %s319 = scalar_select %p318, %s25, 0
      %s320 = smul.addr %s319, 2
      %s321 = scalar_lea.vmem %s5, %s320
      %v323 = vld [vmem:[%s310] sm:$0xff]
      %v324 = vld [vmem:[%s310 + $0x8] sm:$0xff]
      %v325 = vld [vmem:[%s310 + $0x10] sm:$0xff]
      %v326 = vld [vmem:[%s310 + $0x18] sm:$0xff]
      %v327 = vld [vmem:[%s310 + $0x20] sm:$0xff]
      %v328 = vld [vmem:[%s310 + $0x28] sm:$0xff]
      %v329 = vld [vmem:[%s310 + $0x30] sm:$0xff]
      %v330 = vld [vmem:[%s310 + $0x38] sm:$0xff]
      %v331 = vld [vmem:[%s1] sm:$0xf]
      %v332 = vld [vmem:[%s1 + $0x4] sm:$0xf]
      %v333 = vld [vmem:[%s1 + $0x8] sm:$0xf]
      %v334 = vld [vmem:[%s1 + $0xc] sm:$0xf]
      %v335 = vld [vmem:[%s1 + $0x10] sm:$0xf]
      %v336 = vld [vmem:[%s1 + $0x14] sm:$0xf]
      %v337 = vld [vmem:[%s1 + $0x18] sm:$0xf]
      %v338 = vld [vmem:[%s1 + $0x1c] sm:$0xf]
      %v339 = vld [vmem:[%s1 + $0x20] sm:$0xf]
      %v340 = vld [vmem:[%s1 + $0x24] sm:$0xf]
      %v341 = vld [vmem:[%s1 + $0x28] sm:$0xf]
      %v342 = vld [vmem:[%s1 + $0x2c] sm:$0xf]
      %v343 = vld [vmem:[%s1 + $0x30] sm:$0xf]
      %v344 = vld [vmem:[%s1 + $0x34] sm:$0xf]
      %v345 = vld [vmem:[%s1 + $0x38] sm:$0xf]
      %v346 = vld [vmem:[%s1 + $0x3c] sm:$0xf]
      %v347 = vld [vmem:[%s1 + $0x40] sm:$0xf]
      %v348 = vld [vmem:[%s1 + $0x44] sm:$0xf]
      %v349 = vld [vmem:[%s1 + $0x48] sm:$0xf]
      %v350 = vld [vmem:[%s1 + $0x4c] sm:$0xf]
      %v351 = vld [vmem:[%s1 + $0x50] sm:$0xf]
      %v352 = vld [vmem:[%s1 + $0x54] sm:$0xf]
      %v353 = vld [vmem:[%s1 + $0x58] sm:$0xf]
      %v354 = vld [vmem:[%s1 + $0x5c] sm:$0xf]
      %v355 = vld [vmem:[%s1 + $0x60] sm:$0xf]
      %v356 = vld [vmem:[%s1 + $0x64] sm:$0xf]
      %v357 = vld [vmem:[%s1 + $0x68] sm:$0xf]
      %v358 = vld [vmem:[%s1 + $0x6c] sm:$0xf]
      %v359 = vld [vmem:[%s1 + $0x70] sm:$0xf]
      %v360 = vld [vmem:[%s1 + $0x74] sm:$0xf]
      %v361 = vld [vmem:[%s1 + $0x78] sm:$0xf]
      %v362 = vld [vmem:[%s1 + $0x7c] sm:$0xf]
      %v363 = vld [vmem:[%s1 + $0x80] sm:$0xf]
      %v364 = vld [vmem:[%s1 + $0x84] sm:$0xf]
      %v365 = vld [vmem:[%s1 + $0x88] sm:$0xf]
      %v366 = vld [vmem:[%s1 + $0x8c] sm:$0xf]
      %v367 = vld [vmem:[%s1 + $0x90] sm:$0xf]
      %v368 = vld [vmem:[%s1 + $0x94] sm:$0xf]
      %v369 = vld [vmem:[%s1 + $0x98] sm:$0xf]
      %v370 = vld [vmem:[%s1 + $0x9c] sm:$0xf]
      %v371 = vld [vmem:[%s1 + $0xa0] sm:$0xf]
      %v372 = vld [vmem:[%s1 + $0xa4] sm:$0xf]
      %v373 = vld [vmem:[%s1 + $0xa8] sm:$0xf]
      %v374 = vld [vmem:[%s1 + $0xac] sm:$0xf]
      %v375 = vld [vmem:[%s1 + $0xb0] sm:$0xf]
      %v376 = vld [vmem:[%s1 + $0xb4] sm:$0xf]
      %v377 = vld [vmem:[%s1 + $0xb8] sm:$0xf]
      %v378 = vld [vmem:[%s1 + $0xbc] sm:$0xf]
      %v379 = vld [vmem:[%s1 + $0xc0] sm:$0xf]
      %v380 = vld [vmem:[%s1 + $0xc4] sm:$0xf]
      %v381 = vld [vmem:[%s1 + $0xc8] sm:$0xf]
      %v382 = vld [vmem:[%s1 + $0xcc] sm:$0xf]
      %v383 = vld [vmem:[%s1 + $0xd0] sm:$0xf]
      %v384 = vld [vmem:[%s1 + $0xd4] sm:$0xf]
      %v385 = vld [vmem:[%s1 + $0xd8] sm:$0xf]
      %v386 = vld [vmem:[%s1 + $0xdc] sm:$0xf]
      %v387 = vld [vmem:[%s1 + $0xe0] sm:$0xf]
      %v388 = vld [vmem:[%s1 + $0xe4] sm:$0xf]
      %v389 = vld [vmem:[%s1 + $0xe8] sm:$0xf]
      %v390 = vld [vmem:[%s1 + $0xec] sm:$0xf]
      %v391 = vld [vmem:[%s1 + $0xf0] sm:$0xf]
      %v392 = vld [vmem:[%s1 + $0xf4] sm:$0xf]
      %v393 = vld [vmem:[%s1 + $0xf8] sm:$0xf]
      %v394 = vld [vmem:[%s1 + $0xfc] sm:$0xf]
      %v403 = vunpack.c.l.b16 %v323
      %v404 = vunpack.c.h.b16 %v323
      %v405 = vunpack.c.l.b16 %v324
      %v406 = vunpack.c.h.b16 %v324
      %v407 = vunpack.c.l.b16 %v325
      %v408 = vunpack.c.h.b16 %v325
      %v409 = vunpack.c.l.b16 %v326
      %v410 = vunpack.c.h.b16 %v326
      %v411 = vunpack.c.l.b16 %v327
      %v412 = vunpack.c.h.b16 %v327
      %v413 = vunpack.c.l.b16 %v328
      %v414 = vunpack.c.h.b16 %v328
      %v415 = vunpack.c.l.b16 %v329
      %v416 = vunpack.c.h.b16 %v329
      %v417 = vunpack.c.l.b16 %v330
      %v418 = vunpack.c.h.b16 %v330
      %v419 = vpack.c.b16 %v407, %v403
      %v420 = vpack.c.b16 %v408, %v404
      %v421 = vpack.c.b16 %v409, %v405
      %v422 = vpack.c.b16 %v410, %v406
      %v423 = vpack.c.b16 %v415, %v411
      %v424 = vpack.c.b16 %v416, %v412
      %v425 = vpack.c.b16 %v417, %v413
      %v426 = vpack.c.b16 %v418, %v414
      %v499 = vunpack.c.l.b16 %v331
      %v500 = vunpack.c.l.b16 %v332
      %v501 = vunpack.c.l.b16 %v333
      %v502 = vunpack.c.l.b16 %v334
      %v503 = vunpack.c.l.b16 %v335
      %v504 = vunpack.c.l.b16 %v336
      %v505 = vunpack.c.l.b16 %v337
      %v506 = vunpack.c.l.b16 %v338
      %v507 = vunpack.c.l.b16 %v339
      %v508 = vunpack.c.l.b16 %v340
      %v509 = vunpack.c.l.b16 %v341
      %v510 = vunpack.c.l.b16 %v342
      %v511 = vunpack.c.l.b16 %v343
      %v512 = vunpack.c.l.b16 %v344
      %v513 = vunpack.c.l.b16 %v345
      %v514 = vunpack.c.l.b16 %v346
      %v515 = vunpack.c.l.b16 %v347
      %v516 = vunpack.c.l.b16 %v348
      %v517 = vunpack.c.l.b16 %v349
      %v518 = vunpack.c.l.b16 %v350
      %v519 = vunpack.c.l.b16 %v351
      %v520 = vunpack.c.l.b16 %v352
      %v521 = vunpack.c.l.b16 %v353
      %v522 = vunpack.c.l.b16 %v354
      %v523 = vunpack.c.l.b16 %v355
      %v524 = vunpack.c.l.b16 %v356
      %v525 = vunpack.c.l.b16 %v357
      %v526 = vunpack.c.l.b16 %v358
      %v527 = vunpack.c.l.b16 %v359
      %v528 = vunpack.c.l.b16 %v360
      %v529 = vunpack.c.l.b16 %v361
      %v530 = vunpack.c.l.b16 %v362
      %v531 = vunpack.c.l.b16 %v363
      %v532 = vunpack.c.l.b16 %v364
      %v533 = vunpack.c.l.b16 %v365
      %v534 = vunpack.c.l.b16 %v366
      %v535 = vunpack.c.l.b16 %v367
      %v536 = vunpack.c.l.b16 %v368
      %v537 = vunpack.c.l.b16 %v369
      %v538 = vunpack.c.l.b16 %v370
      %v539 = vunpack.c.l.b16 %v371
      %v540 = vunpack.c.l.b16 %v372
      %v541 = vunpack.c.l.b16 %v373
      %v542 = vunpack.c.l.b16 %v374
      %v543 = vunpack.c.l.b16 %v375
      %v544 = vunpack.c.l.b16 %v376
      %v545 = vunpack.c.l.b16 %v377
      %v546 = vunpack.c.l.b16 %v378
      %v547 = vunpack.c.l.b16 %v379
      %v548 = vunpack.c.l.b16 %v380
      %v549 = vunpack.c.l.b16 %v381
      %v550 = vunpack.c.l.b16 %v382
      %v551 = vunpack.c.l.b16 %v383
      %v552 = vunpack.c.l.b16 %v384
      %v553 = vunpack.c.l.b16 %v385
      %v554 = vunpack.c.l.b16 %v386
      %v555 = vunpack.c.l.b16 %v387
      %v556 = vunpack.c.l.b16 %v388
      %v557 = vunpack.c.l.b16 %v389
      %v558 = vunpack.c.l.b16 %v390
      %v559 = vunpack.c.l.b16 %v391
      %v560 = vunpack.c.l.b16 %v392
      %v561 = vunpack.c.l.b16 %v393
      %v562 = vunpack.c.l.b16 %v394
      %v563 = vpack.c.b16 %v500, %v499
      %v564 = vpack.c.b16 %v502, %v501
      %v565 = vpack.c.b16 %v504, %v503
      %v566 = vpack.c.b16 %v506, %v505
      %v567 = vpack.c.b16 %v508, %v507
      %v568 = vpack.c.b16 %v510, %v509
      %v569 = vpack.c.b16 %v512, %v511
      %v570 = vpack.c.b16 %v514, %v513
      %v571 = vpack.c.b16 %v516, %v515
      %v572 = vpack.c.b16 %v518, %v517
      %v573 = vpack.c.b16 %v520, %v519
      %v574 = vpack.c.b16 %v522, %v521
      %v575 = vpack.c.b16 %v524, %v523
      %v576 = vpack.c.b16 %v526, %v525
      %v577 = vpack.c.b16 %v528, %v527
      %v578 = vpack.c.b16 %v530, %v529
      %v579 = vpack.c.b16 %v532, %v531
      %v580 = vpack.c.b16 %v534, %v533
      %v581 = vpack.c.b16 %v536, %v535
      %v582 = vpack.c.b16 %v538, %v537
      %v583 = vpack.c.b16 %v540, %v539
      %v584 = vpack.c.b16 %v542, %v541
      %v585 = vpack.c.b16 %v544, %v543
      %v586 = vpack.c.b16 %v546, %v545
      %v587 = vpack.c.b16 %v548, %v547
      %v588 = vpack.c.b16 %v550, %v549
      %v589 = vpack.c.b16 %v552, %v551
      %v590 = vpack.c.b16 %v554, %v553
      %v591 = vpack.c.b16 %v556, %v555
      %v592 = vpack.c.b16 %v558, %v557
      %v593 = vpack.c.b16 %v560, %v559
      %v594 = vpack.c.b16 %v562, %v561
      %627 = vmatprep.subr.bf16.mxu0 0
      %628 = vmatpush1.bf16.msra.mxu0 %v563
      %629 = vmatprep.subr.bf16.mxu0 0
      %630 = vmatpush1.bf16.msra.mxu0 %v564
      %631 = vmatprep.subr.bf16.mxu0 0
      %632 = vmatpush1.bf16.msra.mxu0 %v565
      %633 = vmatprep.subr.bf16.mxu0 0
      %634 = vmatpush1.bf16.msra.mxu0 %v566
      %635 = vmatprep.subr.bf16.mxu0 0
      %636 = vmatpush1.bf16.msra.mxu0 %v567
      %637 = vmatprep.subr.bf16.mxu0 0
      %638 = vmatpush1.bf16.msra.mxu0 %v568
      %639 = vmatprep.subr.bf16.mxu0 0
      %640 = vmatpush1.bf16.msra.mxu0 %v569
      %641 = vmatprep.subr.bf16.mxu0 0
      %642 = vmatpush1.bf16.msra.mxu0 %v570
      %643 = vmatprep.subr.bf16.mxu0 0
      %644 = vmatpush1.bf16.msra.mxu0 %v571
      %645 = vmatprep.subr.bf16.mxu0 0
      %646 = vmatpush1.bf16.msra.mxu0 %v572
      %647 = vmatprep.subr.bf16.mxu0 0
      %648 = vmatpush1.bf16.msra.mxu0 %v573
      %649 = vmatprep.subr.bf16.mxu0 0
      %650 = vmatpush1.bf16.msra.mxu0 %v574
      %651 = vmatprep.subr.bf16.mxu0 0
      %652 = vmatpush1.bf16.msra.mxu0 %v575
      %653 = vmatprep.subr.bf16.mxu0 0
      %654 = vmatpush1.bf16.msra.mxu0 %v576
      %655 = vmatprep.subr.bf16.mxu0 0
      %656 = vmatpush1.bf16.msra.mxu0 %v577
      %657 = vmatprep.subr.bf16.mxu0 0
      %658 = vmatpush1.bf16.msra.mxu0 %v578
      %659 = vmatprep.mubr.bf16.mxu0 %v420
      %660 = vmatmul.mubr.bf16.gmra.mrb[0].mxu0 %v419
      %v661 = vpop.f32.mrb[0].mxu0
      %v662 = vadd.f32 0.0, %v661
      %v663 = vpop.f32.mrb[0].mxu0
      %v664 = vpop.f32.mrb[0].mxu0
      %v665 = vadd.f32 0.0, %v664
      %v666 = vpop.f32.mrb[0].mxu0
      %667 = vmatprep.mubr.bf16.mxu0 %v424
      %668 = vmatmul.mubr.bf16.gmra.mrb[0].mxu0 %v423
      %v669 = vpop.f32.mrb[0].mxu0
      %v670 = vadd.f32 0.0, %v669
      %v671 = vpop.f32.mrb[0].mxu0
      %v672 = vpop.f32.mrb[0].mxu0
      %v673 = vadd.f32 0.0, %v672
      %v674 = vpop.f32.mrb[0].mxu0
      %675 = vdwg.mxu0
      %676 = vmatprep.subr.bf16.mxu0 0
      %677 = vmatpush1.bf16.msra.mxu0 %v579
      %678 = vmatprep.subr.bf16.mxu0 0
      %679 = vmatpush1.bf16.msra.mxu0 %v580
      %680 = vmatprep.subr.bf16.mxu0 0
      %681 = vmatpush1.bf16.msra.mxu0 %v581
      %682 = vmatprep.subr.bf16.mxu0 0
      %683 = vmatpush1.bf16.msra.mxu0 %v582
      %684 = vmatprep.subr.bf16.mxu0 0
      %685 = vmatpush1.bf16.msra.mxu0 %v583
      %686 = vmatprep.subr.bf16.mxu0 0
      %687 = vmatpush1.bf16.msra.mxu0 %v584
      %688 = vmatprep.subr.bf16.mxu0 0
      %689 = vmatpush1.bf16.msra.mxu0 %v585
      %690 = vmatprep.subr.bf16.mxu0 0
      %691 = vmatpush1.bf16.msra.mxu0 %v586
      %692 = vmatprep.subr.bf16.mxu0 0
      %693 = vmatpush1.bf16.msra.mxu0 %v587
      %694 = vmatprep.subr.bf16.mxu0 0
      %695 = vmatpush1.bf16.msra.mxu0 %v588
      %696 = vmatprep.subr.bf16.mxu0 0
      %697 = vmatpush1.bf16.msra.mxu0 %v589
      %698 = vmatprep.subr.bf16.mxu0 0
      %699 = vmatpush1.bf16.msra.mxu0 %v590
      %700 = vmatprep.subr.bf16.mxu0 0
      %701 = vmatpush1.bf16.msra.mxu0 %v591
      %702 = vmatprep.subr.bf16.mxu0 0
      %703 = vmatpush1.bf16.msra.mxu0 %v592
      %704 = vmatprep.subr.bf16.mxu0 0
      %705 = vmatpush1.bf16.msra.mxu0 %v593
      %706 = vmatprep.subr.bf16.mxu0 0
      %707 = vmatpush1.bf16.msra.mxu0 %v594
      %708 = vmatprep.mubr.bf16.mxu0 %v422
      %709 = vmatmul.mubr.bf16.gmra.mrb[0].mxu0 %v421
      %v710 = vpop.f32.mrb[0].mxu0
      %v711 = vadd.f32 %v662, %v710
      %v712 = vpop.f32.mrb[0].mxu0
      %v713 = vpop.f32.mrb[0].mxu0
      %v714 = vadd.f32 %v665, %v713
      %v715 = vpop.f32.mrb[0].mxu0
      %716 = vmatprep.mubr.bf16.mxu0 %v426
      %717 = vmatmul.mubr.bf16.gmra.mrb[0].mxu0 %v425
      %v718 = vpop.f32.mrb[0].mxu0
      %v719 = vadd.f32 %v670, %v718
      %v720 = vpop.f32.mrb[0].mxu0
      %v721 = vpop.f32.mrb[0].mxu0
      %v722 = vadd.f32 %v673, %v721
      %v723 = vpop.f32.mrb[0].mxu0
      %724 = vdwg.mxu0
      %p725 = scmp.eq.s32.totalorder %s24, 0
      %p726 = scmp.eq.s32.totalorder %s25, 0
      %p727 = pnand %p725, %p726
      %p728 = pneg %p727
      // Predicated region
      $region49: #{discriminator_forward.7} parent=47 // pred_check
        _
      $region50: #{discriminator_forward.7} parent=47 // pred_check_branch
        %730 = sbr.rel (%p727) target = $region52
      $region51: #{discriminator_forward.7} parent=47 // pred_region
        %vm731 = vcmask 516096
        %732 = vst.msk [vmem:[#allocation2] sm:$0x1] %vm731, 0.0
        %733 = vst.msk [vmem:[#allocation3] sm:$0x1] %vm731, 0.0
      $region52: #{discriminator_forward.7} parent=47 // pred_fallthru
        _
      // Predicated region
      $region53: #{discriminator_forward.7} parent=47 // pred_check
        %p734 = pneg %p725
      $region54: #{discriminator_forward.7} parent=47 // pred_check_branch
        %736 = sbr.rel (%p734) target = $region56
      $region55: #{discriminator_forward.7} parent=47 // pred_region
        %v737 = vld [vmem:[#allocation2] sm:$0x1]
        %vm738 = vcmask 523264
        %v739 = vsel %vm738, %v711, 0.0
        %v740 = vsel %vm738, %v714, 0.0
        %v741 = vadd.f32 %v739, %v740
        %v742 = vsel %vm738, %v719, 0.0
        %v743 = vadd.f32 %v741, %v742
        %v744 = vsel %vm738, %v722, 0.0
        %v745 = vadd.f32 %v743, %v744
        %v746 = vrot.slane %v745, 4
        %v747 = vadd.f32 %v745, %v746
        %v748 = vrot.slane %v747, 2
        %v749 = vadd.f32 %v747, %v748
        %v750 = vrot.slane %v749, 1
        %v751 = vadd.f32 %v749, %v750
        %v752 = vadd.f32 %v737, %v751
        %vm753 = vcmask 516096
        %754 = vst.msk [vmem:[#allocation2] sm:$0x1] %vm753, %v752
        %v755 = vld [vmem:[#allocation3] sm:$0x1]
        %v756 = vmul.f32 %v711, %v711
        %v757 = vmul.f32 %v714, %v714
        %v758 = vmul.f32 %v719, %v719
        %v759 = vmul.f32 %v722, %v722
        %v760 = vsel %vm738, %v756, 0.0
        %v761 = vsel %vm738, %v757, 0.0
        %v762 = vadd.f32 %v760, %v761
        %v763 = vsel %vm738, %v758, 0.0
        %v764 = vadd.f32 %v762, %v763
        %v765 = vsel %vm738, %v759, 0.0
        %v766 = vadd.f32 %v764, %v765
        %v767 = vrot.slane %v766, 4
        %v768 = vadd.f32 %v766, %v767
        %v769 = vrot.slane %v768, 2
        %v770 = vadd.f32 %v768, %v769
        %v771 = vrot.slane %v770, 1
        %v772 = vadd.f32 %v770, %v771
        %v773 = vadd.f32 %v755, %v772
        %774 = vst.msk [vmem:[#allocation3] sm:$0x1] %vm753, %v773
      $region56: #{discriminator_forward.7} parent=47 // pred_fallthru
        _
      %p775 = scmp.eq.s32.totalorder %s24, 1
      // Predicated region
      $region57: #{discriminator_forward.7} parent=47 // pred_check
        %p776 = pneg %p775
      $region58: #{discriminator_forward.7} parent=47 // pred_check_branch
        %778 = sbr.rel (%p776) target = $region60
      $region59: #{discriminator_forward.7} parent=47 // pred_region
        %v779 = vld [vmem:[#allocation2] sm:$0x1]
        %v780 = vmul.f32 %v779, 0.03125
        %v781 = vld [vmem:[#allocation3] sm:$0x1]
        %v782 = vmul.f32 %v781, 0.03125
        %v783 = vmul.f32 %v780, %v780
        %v784 = vsub.f32 %v782, %v783
        %v785 = vmax.f32 %v784, 0.0
        %v786 = vld [vmem:[%s2] sm:$0x1]
        %v787 = vadd.f32 %v785, 1e-05
        %v788 = vrsqrt.pop %v787
        %v789 = vmul.f32 %v786, %v788
        %v790 = vld [vmem:[%s3] sm:$0x1]
        %v791 = vmul.f32 %v780, %v789
        %v792 = vsub.f32 %v790, %v791
        %v794 = vlaneseq
        %v795 = vshrl.u32 %v794, 7
        %v796 = vsub.s32 0, %v795
        %v797 = vrot.slane %v789, %v796
        %v799 = vmul.f32 %v711, %v797
        %v800 = vmul.f32 %v714, %v797
        %v801 = vmul.f32 %v719, %v797
        %v802 = vmul.f32 %v722, %v797
        %v804 = vlaneseq
        %v805 = vshrl.u32 %v804, 7
        %v806 = vsub.s32 0, %v805
        %v807 = vrot.slane %v792, %v806
        %v809 = vadd.f32 %v799, %v807
        %v810 = vadd.f32 %v800, %v807
        %v811 = vadd.f32 %v801, %v807
        %v812 = vadd.f32 %v802, %v807
        %vm813 = vcmp.gt.f32.partialorder %v809, 0.0
        %vm814 = vcmp.gt.f32.partialorder %v810, 0.0
        %vm815 = vcmp.gt.f32.partialorder %v811, 0.0
        %vm816 = vcmp.gt.f32.partialorder %v812, 0.0
        %v817 = vmul.f32 %v809, 0.2
        %v818 = vmul.f32 %v810, 0.2
        %v819 = vmul.f32 %v811, 0.2
        %v820 = vmul.f32 %v812, 0.2
        %v821 = vsel %vm813, %v809, %v817
        %v822 = vsel %vm814, %v810, %v818
        %v823 = vsel %vm815, %v811, %v819
        %v824 = vsel %vm816, %v812, %v820
        %v825 = vld [vmem:[%s316] sm:$0xff]
        %v826 = vld [vmem:[%s316 + $0x8] sm:$0xff]
        %v827 = vld [vmem:[%s316 + $0x10] sm:$0xff]
        %v828 = vld [vmem:[%s316 + $0x18] sm:$0xff]
        %v829 = vmul.f32 %v821, %v825
        %v830 = vmul.f32 %v822, %v826
        %v831 = vmul.f32 %v823, %v827
        %v832 = vmul.f32 %v824, %v828
        %vm833 = vcmask 523264
        %v834 = vsel %vm833, %v829, 0.0
        %835 = vadd.xlane.f32.xlu0 %v834
        %v836 = vpop.xlane.xlu0 %835
        %v837 = vsel %vm833, %v830, 0.0
        %838 = vadd.xlane.f32.xlu0 %v837
        %v839 = vpop.xlane.xlu0 %838
        %v840 = vsel %vm833, %v831, 0.0
        %841 = vadd.xlane.f32.xlu0 %v840
        %v842 = vpop.xlane.xlu0 %841
        %v843 = vsel %vm833, %v832, 0.0
        %844 = vadd.xlane.f32.xlu0 %v843
        %v845 = vpop.xlane.xlu0 %844
        %v846 = vld [vmem:[%s321] sm:$0x3]
        %vm847 = vcmask 261120
        %v849 = vsel %vm847, %v846, 0
        %851 = vmatprep.subr.mxu0 0.0
        %852 = vmatpush1.msra.mxu0 %v836
        %853 = vmatprep.subr.mxu0 0.0
        %854 = vmatpush1.msra.mxu0 %v839
        %855 = vmatprep.subr.mxu0 0.0
        %856 = vmatpush1.msra.mxu0 %v842
        %857 = vmatprep.subr.mxu0 0.0
        %858 = vmatpush1.msra.mxu0 %v845
        %859 = vmatprep.subr.mxu0 0.0
        %860 = vmatpush1.msra.mxu0 0.0
        %861 = vmatprep.subr.mxu0 0.0
        %862 = vmatpush1.msra.mxu0 0.0
        %863 = vmatprep.subr.mxu0 0.0
        %864 = vmatpush1.msra.mxu0 0.0
        %865 = vmatprep.subr.mxu0 0.0
        %866 = vmatpush1.msra.mxu0 0.0
        %867 = vmatprep.subr.mxu0 0.0
        %868 = vmatpush1.msra.mxu0 0.0
        %869 = vmatprep.subr.mxu0 0.0
        %870 = vmatpush1.msra.mxu0 0.0
        %871 = vmatprep.subr.mxu0 0.0
        %872 = vmatpush1.msra.mxu0 0.0
        %873 = vmatprep.subr.mxu0 0.0
        %874 = vmatpush1.msra.mxu0 0.0
        %875 = vmatprep.subr.mxu0 0.0
        %876 = vmatpush1.msra.mxu0 0.0
        %877 = vmatprep.subr.mxu0 0.0
        %878 = vmatpush1.msra.mxu0 0.0
        %879 = vmatprep.subr.mxu0 0.0
        %880 = vmatpush1.msra.mxu0 0.0
        %881 = vmatprep.subr.mxu0 0.0
        %882 = vmatpush1.msra.mxu0 0.0
        %883 = vmatprep.subr.mxu0 0.0
        %884 = vmatpush1.msra.mxu0 0.0
        %885 = vmatprep.subr.mxu0 0.0
        %886 = vmatpush1.msra.mxu0 0.0
        %887 = vmatprep.subr.mxu0 0.0
        %888 = vmatpush1.msra.mxu0 0.0
        %889 = vmatprep.subr.mxu0 0.0
        %890 = vmatpush1.msra.mxu0 0.0
        %891 = vmatprep.subr.mxu0 0.0
        %892 = vmatpush1.msra.mxu0 0.0
        %893 = vmatprep.subr.mxu0 0.0
        %894 = vmatpush1.msra.mxu0 0.0
        %895 = vmatprep.subr.mxu0 0.0
        %896 = vmatpush1.msra.mxu0 0.0
        %897 = vmatprep.subr.mxu0 0.0
        %898 = vmatpush1.msra.mxu0 0.0
        %899 = vmatprep.subr.mxu0 0.0
        %900 = vmatpush1.msra.mxu0 0.0
        %901 = vmatprep.subr.mxu0 0.0
        %902 = vmatpush1.msra.mxu0 0.0
        %903 = vmatprep.subr.mxu0 0.0
        %904 = vmatpush1.msra.mxu0 0.0
        %905 = vmatprep.subr.mxu0 0.0
        %906 = vmatpush1.msra.mxu0 0.0
        %907 = vmatprep.subr.mxu0 0.0
        %908 = vmatpush1.msra.mxu0 0.0
        %909 = vmatprep.subr.mxu0 0.0
        %910 = vmatpush1.msra.mxu0 0.0
        %911 = vmatprep.subr.mxu0 0.0
        %912 = vmatpush1.msra.mxu0 0.0
        %913 = vmatprep.subr.mxu0 0.0
        %914 = vmatpush1.msra.mxu0 0.0
        %915 = vmatprep.mubr.f32.mxu0 0.0
        %916 = vmatmul.mubr.f32.gmra.mrb[0].mxu0 %v849
        %v917 = vpop.f32.mrb[0].mxu0
        %v918 = vadd.f32 0.0, %v917
        %v919 = vpop.f32.mrb[0].mxu0
        %920 = vdwg.mxu0
        // Predicated region
        $region61: #{discriminator_forward.7} parent=59 // pred_check
          %p921 = pneg %p726
        $region62: #{discriminator_forward.7} parent=59 // pred_check_branch
          %923 = sbr.rel (%p921) target = $region64
        $region63: #{discriminator_forward.7} parent=59 // pred_region
          %vm924 = vcmask 1024
          %925 = vst.msk [vmem:[%s7] sm:$0x3] %vm924, 0.0
        $region64: #{discriminator_forward.7} parent=59 // pred_fallthru
          _
        %v926 = vld [vmem:[%s7] sm:$0x3]
        %v927 = vadd.f32 %v926, %v918
        %vm928 = vcmask 1024
        %929 = vst.msk [vmem:[%s7] sm:$0x3] %vm928, %v927
        // Predicated region
        $region65: #{discriminator_forward.7} parent=59 // pred_check
          %p930 = pneg %p726
        $region66: #{discriminator_forward.7} parent=59 // pred_check_branch
          %932 = sbr.rel (%p930) target = $region68
        $region67: #{discriminator_forward.7} parent=59 // pred_region
          %v933 = vld [vmem:[%s7] sm:$0x3]
          %v934 = vld [vmem:[#allocation4] sm:$0x1]
          %v936 = vlaneseq
          %v937 = vshrl.u32 %v936, 7
          %v938 = vsub.s32 0, %v937
          %v939 = vrot.slane %v934, %v938
          %v941 = vadd.f32 %v933, %v939
          %v942 = vxor.u32 %v941, 2147483648
          %v943 = vmul.f32 %v942, 1.442695
          %v944 = vpow.pop %v943
          %v945 = vadd.f32 %v944, 1.0
          %v946 = vrcp.pop %v945
          %v947 = vmul.f32 1.0, %v946
          %948 = vst.msk [vmem:[%s7] sm:$0x3] %vm928, %v947
        $region68: #{discriminator_forward.7} parent=59 // pred_fallthru
          _
      $region60: #{discriminator_forward.7} parent=47 // pred_fallthru
        _
      // Predicated region
      $region69: #{discriminator_forward.7} parent=47 // pred_check
        %p949 = pneg %p207
      $region70: #{discriminator_forward.7} parent=47 // pred_check_branch
        %951 = sbr.rel (%p949) target = $region72
      $region71: #{discriminator_forward.7} parent=47 // pred_region
        _
      $region72: #{discriminator_forward.7} parent=47 // pred_fallthru
        _
      // Predicated region
      $region73: #{discriminator_forward.7} parent=47 // pred_check
        %p952 = pneg %p207
      $region74: #{discriminator_forward.7} parent=47 // pred_check_branch
        %954 = sbr.rel (%p952) target = $region76
      $region75: #{discriminator_forward.7} parent=47 // pred_region
        _
      $region76: #{discriminator_forward.7} parent=47 // pred_fallthru
        _
    $region48: #{discriminator_forward.7} parent=5 // pred_fallthru
      _
    %p955 = scmp.le.s32.totalorder 2, %s15
    // Predicated region
    $region77: #{discriminator_forward.7} parent=5 // pred_check
      %p956 = pneg %p955
    $region78: #{discriminator_forward.7} parent=5 // pred_check_branch
      %958 = sbr.rel (%p956) target = $region80
    $region79: #{discriminator_forward.7} parent=5 // pred_region
      %s959 = ssub.s32 %s15, 2
    $region80: #{discriminator_forward.7} parent=5 // pred_fallthru
      _
  $region6: #{discriminator_forward.7} parent=0 // loop_footer
    %s19 = sadd.s32 1, %s15
  $region7: #{discriminator_forward.7} parent=0 // loop_footer_branch
    %14 = sbr.rel target = $region3
  $region8: #{discriminator_forward.7} parent=0 // loop_exit
    _

</llo_original>
